<compile_context>
chip_gen: v7x
topology: tpu7x:2x2x1
jax: 0.10.0
libtpu: 0.0.40
codegen_flags: <defaults>
</compile_context>

<pallas_src>
import functools

import jax
import jax.numpy as jnp
from jax.experimental import pallas as pl
from jax.experimental.pallas import tpu as pltpu

_MM_DTYPE = jnp.bfloat16   # MXU operand dtype; accumulation stays f32.


def _wave_generator_kernel(num_rates, bb, hidden, seq_len,
                           x_ref, z_ref,
                           wc_ref, bc_ref,
                           wsg_ref, wcsg_ref, wrs_ref,
                           w1_ref, b1_ref, w2_ref, b2_ref,
                           out_ref):
    C = hidden
    L = seq_len
    BL = x_ref.shape[-1]          # bb * L lanes (batch folded onto the lane axis)
    f32 = jnp.float32
    mm = _MM_DTYPE

    # Per-sample local time index + causal masks, hoisted out of all loops.
    # The lane roll wraps sample b's tail into sample b+1's first s lanes; the
    # (t mod L) >= s mask zeroes exactly those lanes, matching per-sample
    # zero padding of the reference.
    lane = jax.lax.broadcasted_iota(jnp.int32, (C, BL), 1)
    if bb == 1:
        t_local = lane
    elif (L & (L - 1)) == 0:
        t_local = lane & (L - 1)
    else:
        t_local = lane % L
    shifts_per_rate = [(2 * (2 ** ii) + 1, (2 ** ii) + 1, 1)
                       for ii in range(num_rates)]
    masks = {s: t_local >= s
             for s in sorted({s for sh in shifts_per_rate for s in sh if s < L})}

    # Wave_head.causal_blocks[0]: 1x1 conv + bias -> (C, Ccls) @ (Ccls, BL)
    h = jnp.dot(wc_ref[...], x_ref[...].astype(mm),
                preferred_element_type=f32) + bc_ref[...]
    orig = h
    cum_skip = jnp.zeros((C, BL), f32)

    for ii in range(num_rates):
        # Conditional signal|gate: one fused broadcast multiply initializes sg.
        sg = wcsg_ref[ii] * z_ref[...]                          # (2C, BL) f32
        # Causal taps: out[t] = sum_j W_j @ h[t + j*d - (2d+1)].
        # No tap concatenate: three accumulating (2C, C) @ (C, BL) dots feed sg
        # straight from vregs (no store-slot round trip).
        for j, s in enumerate(shifts_per_rate[ii]):
            if s >= L:
                continue                                        # tap fully masked
            tap = jnp.where(masks[s], pltpu.roll(h, shift=s, axis=1), 0.0)
            sg = sg + jnp.dot(wsg_ref[3 * ii + j], tap.astype(mm),
                              preferred_element_type=f32)
        xg = sg[:C] * jax.nn.sigmoid(sg[C:])                    # gated act (C, BL)

        # Fused residual|skip: one (2C, C) @ (C, BL) matmul.
        rs = jnp.dot(wrs_ref[ii], xg.astype(mm), preferred_element_type=f32)
        res, skip = rs[:C], rs[C:]

        # Matches PyTorch: ii==0 adds to orig, ii>0 adds to the gated value.
        h = (orig + res) if ii == 0 else (res + xg)
        cum_skip = cum_skip + skip

    # Top_head: relu -> 1x1 conv (+bias) -> relu -> 1x1 conv (+bias)
    a = jnp.maximum(cum_skip, 0.0)
    a = jnp.maximum(
        jnp.dot(w1_ref[...], a.astype(mm), preferred_element_type=f32) + b1_ref[...],
        0.0)
    logits = jnp.dot(w2_ref[...], a.astype(mm),
                     preferred_element_type=f32) + b2_ref[...]  # (Ccls, BL)

    # Per-sample lane slices at multiples of L (>=128) -> lane-dense stores.
    for b in range(bb):
        out_ref[b] = logits[:, b * L:(b + 1) * L].astype(out_ref.dtype)


def _pack_params(params):
    """Host-side packing: fused + per-tap weights, MXU operands cast to bf16."""
    R, C = params["Wres"].shape[0], params["Wres"].shape[1]
    mm = _MM_DTYPE
    # (R, C_out, C_in, 3) -> per-tap (R, 3, [sig|gate]=2C, C_in) -> flat (3R, 2C, C)
    sig = jnp.transpose(params["Wsig"], (0, 3, 1, 2))
    gate = jnp.transpose(params["Wgate"], (0, 3, 1, 2))
    wsg = jnp.concatenate([sig, gate], axis=2).reshape(3 * R, 2 * C, C).astype(mm)
    wcsg = jnp.concatenate([params["Wcs"], params["Wcg"]], axis=1)       # f32 (VPU)
    wrs = jnp.concatenate([params["Wres"], params["Wskip"]], axis=1).astype(mm)
    wc = params["Wc"].astype(mm)
    w1 = params["W1"].astype(mm)
    w2 = params["W2"].astype(mm)
    return wc, params["bc"], wsg, wcsg, wrs, w1, params["b1"], w2, params["b2"]


def _pick_batch_block(B, L, target_lanes=256):
    """Group samples so each grid step sees >= ~256 lanes (and divides B)."""
    bb = max(1, min(B, -(-target_lanes // L)))
    while B % bb:
        bb -= 1
    return bb


def wave_generator_forward(x, z, params, num_rates, batch_block=None):
    """x: (B, class_labels, L), z: (B, 1, L) -> logits (B, class_labels, L). NCL."""
    B, Ccls, L = x.shape
    C = params["Wc"].shape[0]
    bb = _pick_batch_block(B, L) if batch_block is None else batch_block
    assert B % bb == 0
    nblk = B // bb
    BL = bb * L

    # Host-side batch fold onto the lane axis (per-sample time layout intact).
    xf = jnp.transpose(x, (1, 0, 2)).reshape(Ccls, B * L)
    zf = jnp.transpose(z, (1, 0, 2)).reshape(1, B * L)

    weights = list(_pack_params(params))

    def wspec(a):
        nd = a.ndim
        return pl.BlockSpec(a.shape, lambda g, nd=nd: (0,) * nd)

    in_specs = [
        pl.BlockSpec((Ccls, BL), lambda g: (0, g)),
        pl.BlockSpec((1, BL), lambda g: (0, g)),
    ] + [wspec(w) for w in weights]

    kernel = functools.partial(_wave_generator_kernel, num_rates, bb, C, L)
    return pl.pallas_call(
        kernel,
        out_shape=jax.ShapeDtypeStruct((B, Ccls, L), jnp.float32),
        grid=(nblk,),
        in_specs=in_specs,
        out_specs=pl.BlockSpec((bb, Ccls, L), lambda g: (g, 0, 0)),
        compiler_params=pltpu.CompilerParams(
            dimension_semantics=("parallel",)),   # batch groups shard on v7x
    )(xf, zf, *weights)


def reference_forward(x, z, params, num_rates):
    """Pure-JAX f32 NCL reference mirroring the PyTorch forward, for verification."""
    P = jax.lax.Precision.HIGHEST
    L = x.shape[-1]

    def conv1x1(w, a):   # (Co, Ci) @ (B, Ci, L) -> (B, Co, L)
        return jnp.einsum("oc,bcl->bol", w, a, precision=P)

    def shift(a, s):
        if s >= L:
            return jnp.zeros_like(a)
        return jnp.pad(a, ((0, 0), (0, 0), (s, 0)))[:, :, :L]

    h = conv1x1(params["Wc"], x) + params["bc"][None]
    orig = h
    cum_skip = jnp.zeros_like(h)
    for ii in range(num_rates):
        d = 2 ** ii
        shifts = (2 * d + 1, d + 1, 1)
        sig = params["Wcs"][ii][None] * z
        gate = params["Wcg"][ii][None] * z
        for j, s in enumerate(shifts):
            hs = shift(h, s)
            sig = sig + conv1x1(params["Wsig"][ii, :, :, j], hs)
            gate = gate + conv1x1(params["Wgate"][ii, :, :, j], hs)
        xg = sig * jax.nn.sigmoid(gate)
        skip = conv1x1(params["Wskip"][ii], xg)
        res = conv1x1(params["Wres"][ii], xg)
        h = orig + res if ii == 0 else res + xg
        cum_skip = cum_skip + skip
    a = jnp.maximum(cum_skip, 0.0)
    a = jnp.maximum(conv1x1(params["W1"], a) + params["b1"][None], 0.0)
    return conv1x1(params["W2"], a) + params["b2"][None]


if __name__ == "__main__":
    B = 2
    protein_len = 128       # time axis -> lanes (lane-dense output)
    class_labels = 8
    wave_hidden = 32
    head_hidden = 64
    num_dil_rates = 4

    key = jax.random.PRNGKey(0)
    keys = jax.random.split(key, 16)

    def nrm(k, shape, scale=0.1):
        return scale * jax.random.normal(k, shape, dtype=jnp.float32)

    # Weights in PyTorch Conv1d layout (squeezed): 1x1 -> (C_out, C_in),
    # dilated k=3 -> (C_out, C_in, 3), biases -> (C_out, 1).
    params = {
        "Wc":    nrm(keys[0],  (wave_hidden, class_labels)),
        "bc":    nrm(keys[1],  (wave_hidden, 1)),
        "Wsig":  nrm(keys[2],  (num_dil_rates, wave_hidden, wave_hidden, 3)),
        "Wgate": nrm(keys[3],  (num_dil_rates, wave_hidden, wave_hidden, 3)),
        "Wcs":   nrm(keys[4],  (num_dil_rates, wave_hidden, 1)),
        "Wcg":   nrm(keys[5],  (num_dil_rates, wave_hidden, 1)),
        "Wres":  nrm(keys[6],  (num_dil_rates, wave_hidden, wave_hidden)),
        "Wskip": nrm(keys[7],  (num_dil_rates, wave_hidden, wave_hidden)),
        "W1":    nrm(keys[8],  (head_hidden, wave_hidden)),
        "b1":    nrm(keys[9],  (head_hidden, 1)),
        "W2":    nrm(keys[10], (class_labels, head_hidden)),
        "b2":    nrm(keys[11], (class_labels, 1)),
    }

    # PyTorch NCL inputs: x (B, class_labels, L), conditioning z (B, 1, L)
    x = jax.random.normal(keys[12], (B, class_labels, protein_len), jnp.float32)
    z = jax.random.normal(keys[13], (B, 1, protein_len), jnp.float32)

    out = wave_generator_forward(x, z, params, num_dil_rates)
    out = jax.block_until_ready(out)
    ref = reference_forward(x, z, params, num_dil_rates)

    assert out.shape == (B, class_labels, protein_len)
    max_err = float(jnp.max(jnp.abs(out - ref)))
    # Tolerance deliberately loosened: kernel uses bf16 MXU operands with f32
    # accumulation, validated against the f32 reference.
    assert jnp.allclose(out, ref, atol=3e-2, rtol=3e-2), max_err
    print("KERNEL_OK")
</pallas_src>

<mosaic_0001>
module attributes {stable_mosaic.version = 11 : i64} {
  func.func @_wave_generator_kernel(%arg0: i32, %arg1: memref<8x256xf32, #tpu.memory_space<vmem>>, %arg2: memref<1x256xf32, #tpu.memory_space<vmem>>, %arg3: memref<32x8xbf16, #tpu.memory_space<vmem>>, %arg4: memref<32x1xf32, #tpu.memory_space<vmem>>, %arg5: memref<12x64x32xbf16, #tpu.memory_space<vmem>>, %arg6: memref<4x64x1xf32, #tpu.memory_space<vmem>>, %arg7: memref<4x64x32xbf16, #tpu.memory_space<vmem>>, %arg8: memref<64x32xbf16, #tpu.memory_space<vmem>>, %arg9: memref<64x1xf32, #tpu.memory_space<vmem>>, %arg10: memref<8x64xbf16, #tpu.memory_space<vmem>>, %arg11: memref<8x1xf32, #tpu.memory_space<vmem>>, %arg12: memref<2x8x128xf32, #tpu.memory_space<vmem>>) attributes {dimension_semantics = [#tpu.dimension_semantics<parallel>], iteration_bounds = array<i64: 1>, scalar_prefetch = 0 : i64, scratch_operands = 0 : i64, tpu.core_type = #tpu.core_type<tc>, window_params = [{transform_indices = @transform_0, window_bounds = array<i64: 8, 256>}, {transform_indices = @transform_1, window_bounds = array<i64: 1, 256>}, {pipeline_mode = #tpu.pipeline_mode<synchronous>, transform_indices = @transform_2, window_bounds = array<i64: 32, 8>}, {pipeline_mode = #tpu.pipeline_mode<synchronous>, transform_indices = @transform_3, window_bounds = array<i64: 32, 1>}, {pipeline_mode = #tpu.pipeline_mode<synchronous>, transform_indices = @transform_4, window_bounds = array<i64: 12, 64, 32>}, {pipeline_mode = #tpu.pipeline_mode<synchronous>, transform_indices = @transform_5, window_bounds = array<i64: 4, 64, 1>}, {pipeline_mode = #tpu.pipeline_mode<synchronous>, transform_indices = @transform_6, window_bounds = array<i64: 4, 64, 32>}, {pipeline_mode = #tpu.pipeline_mode<synchronous>, transform_indices = @transform_7, window_bounds = array<i64: 64, 32>}, {pipeline_mode = #tpu.pipeline_mode<synchronous>, transform_indices = @transform_8, window_bounds = array<i64: 64, 1>}, {pipeline_mode = #tpu.pipeline_mode<synchronous>, transform_indices = @transform_9, window_bounds = array<i64: 8, 64>}, {pipeline_mode = #tpu.pipeline_mode<synchronous>, transform_indices = @transform_10, window_bounds = array<i64: 8, 1>}, {transform_indices = @transform_11, window_bounds = array<i64: 2, 8, 128>}]} {
    %0 = tpu.iota {dimensions = array<i32: 1>} : vector<32x256xi32>
    %c127_i32 = arith.constant 127 : i32
    %1 = vector.broadcast %c127_i32 : i32 to vector<32x256xi32>
    %2 = arith.andi %0, %1 : vector<32x256xi32>
    %c1_i32 = arith.constant 1 : i32
    %3 = vector.broadcast %c1_i32 : i32 to vector<32x256xi32>
    %4 = arith.cmpi sge, %2, %3 : vector<32x256xi32>
    %c2_i32 = arith.constant 2 : i32
    %5 = vector.broadcast %c2_i32 : i32 to vector<32x256xi32>
    %6 = arith.cmpi sge, %2, %5 : vector<32x256xi32>
    %c3_i32 = arith.constant 3 : i32
    %7 = vector.broadcast %c3_i32 : i32 to vector<32x256xi32>
    %8 = arith.cmpi sge, %2, %7 : vector<32x256xi32>
    %c5_i32 = arith.constant 5 : i32
    %9 = vector.broadcast %c5_i32 : i32 to vector<32x256xi32>
    %10 = arith.cmpi sge, %2, %9 : vector<32x256xi32>
    %c9_i32 = arith.constant 9 : i32
    %11 = vector.broadcast %c9_i32 : i32 to vector<32x256xi32>
    %12 = arith.cmpi sge, %2, %11 : vector<32x256xi32>
    %c17_i32 = arith.constant 17 : i32
    %13 = vector.broadcast %c17_i32 : i32 to vector<32x256xi32>
    %14 = arith.cmpi sge, %2, %13 : vector<32x256xi32>
    %c0 = arith.constant 0 : index
    %c0_0 = arith.constant 0 : index
    %15 = vector.load %arg3[%c0, %c0_0] : memref<32x8xbf16, #tpu.memory_space<vmem>>, vector<32x8xbf16>
    %c0_1 = arith.constant 0 : index
    %c0_2 = arith.constant 0 : index
    %16 = vector.load %arg1[%c0_1, %c0_2] : memref<8x256xf32, #tpu.memory_space<vmem>>, vector<8x256xf32>
    %17 = arith.truncf %16 : vector<8x256xf32> to vector<8x256xbf16>
    %cst = arith.constant dense<0.000000e+00> : vector<32x256xf32>
    %18 = tpu.matmul %15, %17, %cst {dimension_numbers = #tpu.dot_dimension_numbers<[1], [0], [0], [1], [0, 0, 1, 1], [], []>} : vector<32x8xbf16>, vector<8x256xbf16>, vector<32x256xf32> -> vector<32x256xf32>
    %c0_3 = arith.constant 0 : index
    %c0_4 = arith.constant 0 : index
    %19 = vector.load %arg4[%c0_3, %c0_4] : memref<32x1xf32, #tpu.memory_space<vmem>>, vector<32x1xf32>
    %20 = vector.broadcast %19 : vector<32x1xf32> to vector<32x256xf32>
    %21 = arith.addf %18, %20 : vector<32x256xf32>
    %cst_5 = arith.constant 0.000000e+00 : f32
    %22 = vector.broadcast %cst_5 : f32 to vector<32x256xf32>
    %c0_6 = arith.constant 0 : index
    %c0_7 = arith.constant 0 : index
    %c0_8 = arith.constant 0 : index
    %23 = vector.load %arg6[%c0_6, %c0_7, %c0_8] : memref<4x64x1xf32, #tpu.memory_space<vmem>>, vector<1x64x1xf32>
    %24 = vector.shape_cast %23 : vector<1x64x1xf32> to vector<64x1xf32>
    %c0_9 = arith.constant 0 : index
    %c0_10 = arith.constant 0 : index
    %25 = vector.load %arg2[%c0_9, %c0_10] : memref<1x256xf32, #tpu.memory_space<vmem>>, vector<1x256xf32>
    %26 = vector.broadcast %24 : vector<64x1xf32> to vector<64x256xf32>
    %27 = vector.broadcast %25 : vector<1x256xf32> to vector<64x256xf32>
    %28 = arith.mulf %26, %27 : vector<64x256xf32>
    %c3_i32_11 = arith.constant 3 : i32
    %29 = tpu.dynamic_rotate %21 by %c3_i32_11 dim 1 : vector<32x256xf32>, i32 -> vector<32x256xf32>
    %cst_12 = arith.constant 0.000000e+00 : f32
    %30 = vector.broadcast %cst_12 : f32 to vector<32x256xf32>
    %31 = arith.select %8, %29, %30 : vector<32x256xi1>, vector<32x256xf32>
    %c0_13 = arith.constant 0 : index
    %c0_14 = arith.constant 0 : index
    %c0_15 = arith.constant 0 : index
    %32 = vector.load %arg5[%c0_13, %c0_14, %c0_15] : memref<12x64x32xbf16, #tpu.memory_space<vmem>>, vector<1x64x32xbf16>
    %33 = vector.shape_cast %32 : vector<1x64x32xbf16> to vector<64x32xbf16>
    %34 = arith.truncf %31 : vector<32x256xf32> to vector<32x256xbf16>
    %cst_16 = arith.constant dense<0.000000e+00> : vector<64x256xf32>
    %35 = tpu.matmul %33, %34, %cst_16 {dimension_numbers = #tpu.dot_dimension_numbers<[1], [0], [0], [1], [0, 0, 1, 1], [], []>} : vector<64x32xbf16>, vector<32x256xbf16>, vector<64x256xf32> -> vector<64x256xf32>
    %36 = arith.addf %28, %35 : vector<64x256xf32>
    %c2_i32_17 = arith.constant 2 : i32
    %37 = tpu.dynamic_rotate %21 by %c2_i32_17 dim 1 : vector<32x256xf32>, i32 -> vector<32x256xf32>
    %cst_18 = arith.constant 0.000000e+00 : f32
    %38 = vector.broadcast %cst_18 : f32 to vector<32x256xf32>
    %39 = arith.select %6, %37, %38 : vector<32x256xi1>, vector<32x256xf32>
    %c1 = arith.constant 1 : index
    %c0_19 = arith.constant 0 : index
    %c0_20 = arith.constant 0 : index
    %40 = vector.load %arg5[%c1, %c0_19, %c0_20] : memref<12x64x32xbf16, #tpu.memory_space<vmem>>, vector<1x64x32xbf16>
    %41 = vector.shape_cast %40 : vector<1x64x32xbf16> to vector<64x32xbf16>
    %42 = arith.truncf %39 : vector<32x256xf32> to vector<32x256xbf16>
    %cst_21 = arith.constant dense<0.000000e+00> : vector<64x256xf32>
    %43 = tpu.matmul %41, %42, %cst_21 {dimension_numbers = #tpu.dot_dimension_numbers<[1], [0], [0], [1], [0, 0, 1, 1], [], []>} : vector<64x32xbf16>, vector<32x256xbf16>, vector<64x256xf32> -> vector<64x256xf32>
    %44 = arith.addf %36, %43 : vector<64x256xf32>
    %c1_i32_22 = arith.constant 1 : i32
    %45 = tpu.dynamic_rotate %21 by %c1_i32_22 dim 1 : vector<32x256xf32>, i32 -> vector<32x256xf32>
    %cst_23 = arith.constant 0.000000e+00 : f32
    %46 = vector.broadcast %cst_23 : f32 to vector<32x256xf32>
    %47 = arith.select %4, %45, %46 : vector<32x256xi1>, vector<32x256xf32>
    %c2 = arith.constant 2 : index
    %c0_24 = arith.constant 0 : index
    %c0_25 = arith.constant 0 : index
    %48 = vector.load %arg5[%c2, %c0_24, %c0_25] : memref<12x64x32xbf16, #tpu.memory_space<vmem>>, vector<1x64x32xbf16>
    %49 = vector.shape_cast %48 : vector<1x64x32xbf16> to vector<64x32xbf16>
    %50 = arith.truncf %47 : vector<32x256xf32> to vector<32x256xbf16>
    %cst_26 = arith.constant dense<0.000000e+00> : vector<64x256xf32>
    %51 = tpu.matmul %49, %50, %cst_26 {dimension_numbers = #tpu.dot_dimension_numbers<[1], [0], [0], [1], [0, 0, 1, 1], [], []>} : vector<64x32xbf16>, vector<32x256xbf16>, vector<64x256xf32> -> vector<64x256xf32>
    %52 = arith.addf %44, %51 : vector<64x256xf32>
    %53 = vector.extract_strided_slice %52 {offsets = [0, 0], sizes = [32, 256], strides = [1, 1]} : vector<64x256xf32> to vector<32x256xf32>
    %54 = vector.extract_strided_slice %52 {offsets = [32, 0], sizes = [32, 256], strides = [1, 1]} : vector<64x256xf32> to vector<32x256xf32>
    %55 = arith.negf %54 : vector<32x256xf32>
    %56 = math.exp %55 : vector<32x256xf32>
    %cst_27 = arith.constant 1.000000e+00 : f32
    %57 = vector.broadcast %cst_27 : f32 to vector<32x256xf32>
    %58 = arith.addf %57, %56 : vector<32x256xf32>
    %59 = arith.divf %57, %58 : vector<32x256xf32>
    %60 = arith.mulf %53, %59 : vector<32x256xf32>
    %c0_28 = arith.constant 0 : index
    %c0_29 = arith.constant 0 : index
    %c0_30 = arith.constant 0 : index
    %61 = vector.load %arg7[%c0_28, %c0_29, %c0_30] : memref<4x64x32xbf16, #tpu.memory_space<vmem>>, vector<1x64x32xbf16>
    %62 = vector.shape_cast %61 : vector<1x64x32xbf16> to vector<64x32xbf16>
    %63 = arith.truncf %60 : vector<32x256xf32> to vector<32x256xbf16>
    %cst_31 = arith.constant dense<0.000000e+00> : vector<64x256xf32>
    %64 = tpu.matmul %62, %63, %cst_31 {dimension_numbers = #tpu.dot_dimension_numbers<[1], [0], [0], [1], [0, 0, 1, 1], [], []>} : vector<64x32xbf16>, vector<32x256xbf16>, vector<64x256xf32> -> vector<64x256xf32>
    %65 = vector.extract_strided_slice %64 {offsets = [0, 0], sizes = [32, 256], strides = [1, 1]} : vector<64x256xf32> to vector<32x256xf32>
    %66 = vector.extract_strided_slice %64 {offsets = [32, 0], sizes = [32, 256], strides = [1, 1]} : vector<64x256xf32> to vector<32x256xf32>
    %67 = arith.addf %21, %65 : vector<32x256xf32>
    %68 = arith.addf %22, %66 : vector<32x256xf32>
    %c1_32 = arith.constant 1 : index
    %c0_33 = arith.constant 0 : index
    %c0_34 = arith.constant 0 : index
    %69 = vector.load %arg6[%c1_32, %c0_33, %c0_34] : memref<4x64x1xf32, #tpu.memory_space<vmem>>, vector<1x64x1xf32>
    %70 = vector.shape_cast %69 : vector<1x64x1xf32> to vector<64x1xf32>
    %c0_35 = arith.constant 0 : index
    %c0_36 = arith.constant 0 : index
    %71 = vector.load %arg2[%c0_35, %c0_36] : memref<1x256xf32, #tpu.memory_space<vmem>>, vector<1x256xf32>
    %72 = vector.broadcast %70 : vector<64x1xf32> to vector<64x256xf32>
    %73 = vector.broadcast %71 : vector<1x256xf32> to vector<64x256xf32>
    %74 = arith.mulf %72, %73 : vector<64x256xf32>
    %c5_i32_37 = arith.constant 5 : i32
    %75 = tpu.dynamic_rotate %67 by %c5_i32_37 dim 1 : vector<32x256xf32>, i32 -> vector<32x256xf32>
    %cst_38 = arith.constant 0.000000e+00 : f32
    %76 = vector.broadcast %cst_38 : f32 to vector<32x256xf32>
    %77 = arith.select %10, %75, %76 : vector<32x256xi1>, vector<32x256xf32>
    %c3 = arith.constant 3 : index
    %c0_39 = arith.constant 0 : index
    %c0_40 = arith.constant 0 : index
    %78 = vector.load %arg5[%c3, %c0_39, %c0_40] : memref<12x64x32xbf16, #tpu.memory_space<vmem>>, vector<1x64x32xbf16>
    %79 = vector.shape_cast %78 : vector<1x64x32xbf16> to vector<64x32xbf16>
    %80 = arith.truncf %77 : vector<32x256xf32> to vector<32x256xbf16>
    %cst_41 = arith.constant dense<0.000000e+00> : vector<64x256xf32>
    %81 = tpu.matmul %79, %80, %cst_41 {dimension_numbers = #tpu.dot_dimension_numbers<[1], [0], [0], [1], [0, 0, 1, 1], [], []>} : vector<64x32xbf16>, vector<32x256xbf16>, vector<64x256xf32> -> vector<64x256xf32>
    %82 = arith.addf %74, %81 : vector<64x256xf32>
    %c3_i32_42 = arith.constant 3 : i32
    %83 = tpu.dynamic_rotate %67 by %c3_i32_42 dim 1 : vector<32x256xf32>, i32 -> vector<32x256xf32>
    %cst_43 = arith.constant 0.000000e+00 : f32
    %84 = vector.broadcast %cst_43 : f32 to vector<32x256xf32>
    %85 = arith.select %8, %83, %84 : vector<32x256xi1>, vector<32x256xf32>
    %c4 = arith.constant 4 : index
    %c0_44 = arith.constant 0 : index
    %c0_45 = arith.constant 0 : index
    %86 = vector.load %arg5[%c4, %c0_44, %c0_45] : memref<12x64x32xbf16, #tpu.memory_space<vmem>>, vector<1x64x32xbf16>
    %87 = vector.shape_cast %86 : vector<1x64x32xbf16> to vector<64x32xbf16>
    %88 = arith.truncf %85 : vector<32x256xf32> to vector<32x256xbf16>
    %cst_46 = arith.constant dense<0.000000e+00> : vector<64x256xf32>
    %89 = tpu.matmul %87, %88, %cst_46 {dimension_numbers = #tpu.dot_dimension_numbers<[1], [0], [0], [1], [0, 0, 1, 1], [], []>} : vector<64x32xbf16>, vector<32x256xbf16>, vector<64x256xf32> -> vector<64x256xf32>
    %90 = arith.addf %82, %89 : vector<64x256xf32>
    %c1_i32_47 = arith.constant 1 : i32
    %91 = tpu.dynamic_rotate %67 by %c1_i32_47 dim 1 : vector<32x256xf32>, i32 -> vector<32x256xf32>
    %cst_48 = arith.constant 0.000000e+00 : f32
    %92 = vector.broadcast %cst_48 : f32 to vector<32x256xf32>
    %93 = arith.select %4, %91, %92 : vector<32x256xi1>, vector<32x256xf32>
    %c5 = arith.constant 5 : index
    %c0_49 = arith.constant 0 : index
    %c0_50 = arith.constant 0 : index
    %94 = vector.load %arg5[%c5, %c0_49, %c0_50] : memref<12x64x32xbf16, #tpu.memory_space<vmem>>, vector<1x64x32xbf16>
    %95 = vector.shape_cast %94 : vector<1x64x32xbf16> to vector<64x32xbf16>
    %96 = arith.truncf %93 : vector<32x256xf32> to vector<32x256xbf16>
    %cst_51 = arith.constant dense<0.000000e+00> : vector<64x256xf32>
    %97 = tpu.matmul %95, %96, %cst_51 {dimension_numbers = #tpu.dot_dimension_numbers<[1], [0], [0], [1], [0, 0, 1, 1], [], []>} : vector<64x32xbf16>, vector<32x256xbf16>, vector<64x256xf32> -> vector<64x256xf32>
    %98 = arith.addf %90, %97 : vector<64x256xf32>
    %99 = vector.extract_strided_slice %98 {offsets = [0, 0], sizes = [32, 256], strides = [1, 1]} : vector<64x256xf32> to vector<32x256xf32>
    %100 = vector.extract_strided_slice %98 {offsets = [32, 0], sizes = [32, 256], strides = [1, 1]} : vector<64x256xf32> to vector<32x256xf32>
    %101 = arith.negf %100 : vector<32x256xf32>
    %102 = math.exp %101 : vector<32x256xf32>
    %cst_52 = arith.constant 1.000000e+00 : f32
    %103 = vector.broadcast %cst_52 : f32 to vector<32x256xf32>
    %104 = arith.addf %103, %102 : vector<32x256xf32>
    %105 = arith.divf %103, %104 : vector<32x256xf32>
    %106 = arith.mulf %99, %105 : vector<32x256xf32>
    %c1_53 = arith.constant 1 : index
    %c0_54 = arith.constant 0 : index
    %c0_55 = arith.constant 0 : index
    %107 = vector.load %arg7[%c1_53, %c0_54, %c0_55] : memref<4x64x32xbf16, #tpu.memory_space<vmem>>, vector<1x64x32xbf16>
    %108 = vector.shape_cast %107 : vector<1x64x32xbf16> to vector<64x32xbf16>
    %109 = arith.truncf %106 : vector<32x256xf32> to vector<32x256xbf16>
    %cst_56 = arith.constant dense<0.000000e+00> : vector<64x256xf32>
    %110 = tpu.matmul %108, %109, %cst_56 {dimension_numbers = #tpu.dot_dimension_numbers<[1], [0], [0], [1], [0, 0, 1, 1], [], []>} : vector<64x32xbf16>, vector<32x256xbf16>, vector<64x256xf32> -> vector<64x256xf32>
    %111 = vector.extract_strided_slice %110 {offsets = [0, 0], sizes = [32, 256], strides = [1, 1]} : vector<64x256xf32> to vector<32x256xf32>
    %112 = vector.extract_strided_slice %110 {offsets = [32, 0], sizes = [32, 256], strides = [1, 1]} : vector<64x256xf32> to vector<32x256xf32>
    %113 = arith.addf %111, %106 : vector<32x256xf32>
    %114 = arith.addf %68, %112 : vector<32x256xf32>
    %c2_57 = arith.constant 2 : index
    %c0_58 = arith.constant 0 : index
    %c0_59 = arith.constant 0 : index
    %115 = vector.load %arg6[%c2_57, %c0_58, %c0_59] : memref<4x64x1xf32, #tpu.memory_space<vmem>>, vector<1x64x1xf32>
    %116 = vector.shape_cast %115 : vector<1x64x1xf32> to vector<64x1xf32>
    %c0_60 = arith.constant 0 : index
    %c0_61 = arith.constant 0 : index
    %117 = vector.load %arg2[%c0_60, %c0_61] : memref<1x256xf32, #tpu.memory_space<vmem>>, vector<1x256xf32>
    %118 = vector.broadcast %116 : vector<64x1xf32> to vector<64x256xf32>
    %119 = vector.broadcast %117 : vector<1x256xf32> to vector<64x256xf32>
    %120 = arith.mulf %118, %119 : vector<64x256xf32>
    %c9_i32_62 = arith.constant 9 : i32
    %121 = tpu.dynamic_rotate %113 by %c9_i32_62 dim 1 : vector<32x256xf32>, i32 -> vector<32x256xf32>
    %cst_63 = arith.constant 0.000000e+00 : f32
    %122 = vector.broadcast %cst_63 : f32 to vector<32x256xf32>
    %123 = arith.select %12, %121, %122 : vector<32x256xi1>, vector<32x256xf32>
    %c6 = arith.constant 6 : index
    %c0_64 = arith.constant 0 : index
    %c0_65 = arith.constant 0 : index
    %124 = vector.load %arg5[%c6, %c0_64, %c0_65] : memref<12x64x32xbf16, #tpu.memory_space<vmem>>, vector<1x64x32xbf16>
    %125 = vector.shape_cast %124 : vector<1x64x32xbf16> to vector<64x32xbf16>
    %126 = arith.truncf %123 : vector<32x256xf32> to vector<32x256xbf16>
    %cst_66 = arith.constant dense<0.000000e+00> : vector<64x256xf32>
    %127 = tpu.matmul %125, %126, %cst_66 {dimension_numbers = #tpu.dot_dimension_numbers<[1], [0], [0], [1], [0, 0, 1, 1], [], []>} : vector<64x32xbf16>, vector<32x256xbf16>, vector<64x256xf32> -> vector<64x256xf32>
    %128 = arith.addf %120, %127 : vector<64x256xf32>
    %c5_i32_67 = arith.constant 5 : i32
    %129 = tpu.dynamic_rotate %113 by %c5_i32_67 dim 1 : vector<32x256xf32>, i32 -> vector<32x256xf32>
    %cst_68 = arith.constant 0.000000e+00 : f32
    %130 = vector.broadcast %cst_68 : f32 to vector<32x256xf32>
    %131 = arith.select %10, %129, %130 : vector<32x256xi1>, vector<32x256xf32>
    %c7 = arith.constant 7 : index
    %c0_69 = arith.constant 0 : index
    %c0_70 = arith.constant 0 : index
    %132 = vector.load %arg5[%c7, %c0_69, %c0_70] : memref<12x64x32xbf16, #tpu.memory_space<vmem>>, vector<1x64x32xbf16>
    %133 = vector.shape_cast %132 : vector<1x64x32xbf16> to vector<64x32xbf16>
    %134 = arith.truncf %131 : vector<32x256xf32> to vector<32x256xbf16>
    %cst_71 = arith.constant dense<0.000000e+00> : vector<64x256xf32>
    %135 = tpu.matmul %133, %134, %cst_71 {dimension_numbers = #tpu.dot_dimension_numbers<[1], [0], [0], [1], [0, 0, 1, 1], [], []>} : vector<64x32xbf16>, vector<32x256xbf16>, vector<64x256xf32> -> vector<64x256xf32>
    %136 = arith.addf %128, %135 : vector<64x256xf32>
    %c1_i32_72 = arith.constant 1 : i32
    %137 = tpu.dynamic_rotate %113 by %c1_i32_72 dim 1 : vector<32x256xf32>, i32 -> vector<32x256xf32>
    %cst_73 = arith.constant 0.000000e+00 : f32
    %138 = vector.broadcast %cst_73 : f32 to vector<32x256xf32>
    %139 = arith.select %4, %137, %138 : vector<32x256xi1>, vector<32x256xf32>
    %c8 = arith.constant 8 : index
    %c0_74 = arith.constant 0 : index
    %c0_75 = arith.constant 0 : index
    %140 = vector.load %arg5[%c8, %c0_74, %c0_75] : memref<12x64x32xbf16, #tpu.memory_space<vmem>>, vector<1x64x32xbf16>
    %141 = vector.shape_cast %140 : vector<1x64x32xbf16> to vector<64x32xbf16>
    %142 = arith.truncf %139 : vector<32x256xf32> to vector<32x256xbf16>
    %cst_76 = arith.constant dense<0.000000e+00> : vector<64x256xf32>
    %143 = tpu.matmul %141, %142, %cst_76 {dimension_numbers = #tpu.dot_dimension_numbers<[1], [0], [0], [1], [0, 0, 1, 1], [], []>} : vector<64x32xbf16>, vector<32x256xbf16>, vector<64x256xf32> -> vector<64x256xf32>
    %144 = arith.addf %136, %143 : vector<64x256xf32>
    %145 = vector.extract_strided_slice %144 {offsets = [0, 0], sizes = [32, 256], strides = [1, 1]} : vector<64x256xf32> to vector<32x256xf32>
    %146 = vector.extract_strided_slice %144 {offsets = [32, 0], sizes = [32, 256], strides = [1, 1]} : vector<64x256xf32> to vector<32x256xf32>
    %147 = arith.negf %146 : vector<32x256xf32>
    %148 = math.exp %147 : vector<32x256xf32>
    %cst_77 = arith.constant 1.000000e+00 : f32
    %149 = vector.broadcast %cst_77 : f32 to vector<32x256xf32>
    %150 = arith.addf %149, %148 : vector<32x256xf32>
    %151 = arith.divf %149, %150 : vector<32x256xf32>
    %152 = arith.mulf %145, %151 : vector<32x256xf32>
    %c2_78 = arith.constant 2 : index
    %c0_79 = arith.constant 0 : index
    %c0_80 = arith.constant 0 : index
    %153 = vector.load %arg7[%c2_78, %c0_79, %c0_80] : memref<4x64x32xbf16, #tpu.memory_space<vmem>>, vector<1x64x32xbf16>
    %154 = vector.shape_cast %153 : vector<1x64x32xbf16> to vector<64x32xbf16>
    %155 = arith.truncf %152 : vector<32x256xf32> to vector<32x256xbf16>
    %cst_81 = arith.constant dense<0.000000e+00> : vector<64x256xf32>
    %156 = tpu.matmul %154, %155, %cst_81 {dimension_numbers = #tpu.dot_dimension_numbers<[1], [0], [0], [1], [0, 0, 1, 1], [], []>} : vector<64x32xbf16>, vector<32x256xbf16>, vector<64x256xf32> -> vector<64x256xf32>
    %157 = vector.extract_strided_slice %156 {offsets = [0, 0], sizes = [32, 256], strides = [1, 1]} : vector<64x256xf32> to vector<32x256xf32>
    %158 = vector.extract_strided_slice %156 {offsets = [32, 0], sizes = [32, 256], strides = [1, 1]} : vector<64x256xf32> to vector<32x256xf32>
    %159 = arith.addf %157, %152 : vector<32x256xf32>
    %160 = arith.addf %114, %158 : vector<32x256xf32>
    %c3_82 = arith.constant 3 : index
    %c0_83 = arith.constant 0 : index
    %c0_84 = arith.constant 0 : index
    %161 = vector.load %arg6[%c3_82, %c0_83, %c0_84] : memref<4x64x1xf32, #tpu.memory_space<vmem>>, vector<1x64x1xf32>
    %162 = vector.shape_cast %161 : vector<1x64x1xf32> to vector<64x1xf32>
    %c0_85 = arith.constant 0 : index
    %c0_86 = arith.constant 0 : index
    %163 = vector.load %arg2[%c0_85, %c0_86] : memref<1x256xf32, #tpu.memory_space<vmem>>, vector<1x256xf32>
    %164 = vector.broadcast %162 : vector<64x1xf32> to vector<64x256xf32>
    %165 = vector.broadcast %163 : vector<1x256xf32> to vector<64x256xf32>
    %166 = arith.mulf %164, %165 : vector<64x256xf32>
    %c17_i32_87 = arith.constant 17 : i32
    %167 = tpu.dynamic_rotate %159 by %c17_i32_87 dim 1 : vector<32x256xf32>, i32 -> vector<32x256xf32>
    %cst_88 = arith.constant 0.000000e+00 : f32
    %168 = vector.broadcast %cst_88 : f32 to vector<32x256xf32>
    %169 = arith.select %14, %167, %168 : vector<32x256xi1>, vector<32x256xf32>
    %c9 = arith.constant 9 : index
    %c0_89 = arith.constant 0 : index
    %c0_90 = arith.constant 0 : index
    %170 = vector.load %arg5[%c9, %c0_89, %c0_90] : memref<12x64x32xbf16, #tpu.memory_space<vmem>>, vector<1x64x32xbf16>
    %171 = vector.shape_cast %170 : vector<1x64x32xbf16> to vector<64x32xbf16>
    %172 = arith.truncf %169 : vector<32x256xf32> to vector<32x256xbf16>
    %cst_91 = arith.constant dense<0.000000e+00> : vector<64x256xf32>
    %173 = tpu.matmul %171, %172, %cst_91 {dimension_numbers = #tpu.dot_dimension_numbers<[1], [0], [0], [1], [0, 0, 1, 1], [], []>} : vector<64x32xbf16>, vector<32x256xbf16>, vector<64x256xf32> -> vector<64x256xf32>
    %174 = arith.addf %166, %173 : vector<64x256xf32>
    %c9_i32_92 = arith.constant 9 : i32
    %175 = tpu.dynamic_rotate %159 by %c9_i32_92 dim 1 : vector<32x256xf32>, i32 -> vector<32x256xf32>
    %cst_93 = arith.constant 0.000000e+00 : f32
    %176 = vector.broadcast %cst_93 : f32 to vector<32x256xf32>
    %177 = arith.select %12, %175, %176 : vector<32x256xi1>, vector<32x256xf32>
    %c10 = arith.constant 10 : index
    %c0_94 = arith.constant 0 : index
    %c0_95 = arith.constant 0 : index
    %178 = vector.load %arg5[%c10, %c0_94, %c0_95] : memref<12x64x32xbf16, #tpu.memory_space<vmem>>, vector<1x64x32xbf16>
    %179 = vector.shape_cast %178 : vector<1x64x32xbf16> to vector<64x32xbf16>
    %180 = arith.truncf %177 : vector<32x256xf32> to vector<32x256xbf16>
    %cst_96 = arith.constant dense<0.000000e+00> : vector<64x256xf32>
    %181 = tpu.matmul %179, %180, %cst_96 {dimension_numbers = #tpu.dot_dimension_numbers<[1], [0], [0], [1], [0, 0, 1, 1], [], []>} : vector<64x32xbf16>, vector<32x256xbf16>, vector<64x256xf32> -> vector<64x256xf32>
    %182 = arith.addf %174, %181 : vector<64x256xf32>
    %c1_i32_97 = arith.constant 1 : i32
    %183 = tpu.dynamic_rotate %159 by %c1_i32_97 dim 1 : vector<32x256xf32>, i32 -> vector<32x256xf32>
    %cst_98 = arith.constant 0.000000e+00 : f32
    %184 = vector.broadcast %cst_98 : f32 to vector<32x256xf32>
    %185 = arith.select %4, %183, %184 : vector<32x256xi1>, vector<32x256xf32>
    %c11 = arith.constant 11 : index
    %c0_99 = arith.constant 0 : index
    %c0_100 = arith.constant 0 : index
    %186 = vector.load %arg5[%c11, %c0_99, %c0_100] : memref<12x64x32xbf16, #tpu.memory_space<vmem>>, vector<1x64x32xbf16>
    %187 = vector.shape_cast %186 : vector<1x64x32xbf16> to vector<64x32xbf16>
    %188 = arith.truncf %185 : vector<32x256xf32> to vector<32x256xbf16>
    %cst_101 = arith.constant dense<0.000000e+00> : vector<64x256xf32>
    %189 = tpu.matmul %187, %188, %cst_101 {dimension_numbers = #tpu.dot_dimension_numbers<[1], [0], [0], [1], [0, 0, 1, 1], [], []>} : vector<64x32xbf16>, vector<32x256xbf16>, vector<64x256xf32> -> vector<64x256xf32>
    %190 = arith.addf %182, %189 : vector<64x256xf32>
    %191 = vector.extract_strided_slice %190 {offsets = [0, 0], sizes = [32, 256], strides = [1, 1]} : vector<64x256xf32> to vector<32x256xf32>
    %192 = vector.extract_strided_slice %190 {offsets = [32, 0], sizes = [32, 256], strides = [1, 1]} : vector<64x256xf32> to vector<32x256xf32>
    %193 = arith.negf %192 : vector<32x256xf32>
    %194 = math.exp %193 : vector<32x256xf32>
    %cst_102 = arith.constant 1.000000e+00 : f32
    %195 = vector.broadcast %cst_102 : f32 to vector<32x256xf32>
    %196 = arith.addf %195, %194 : vector<32x256xf32>
    %197 = arith.divf %195, %196 : vector<32x256xf32>
    %198 = arith.mulf %191, %197 : vector<32x256xf32>
    %c3_103 = arith.constant 3 : index
    %c0_104 = arith.constant 0 : index
    %c0_105 = arith.constant 0 : index
    %199 = vector.load %arg7[%c3_103, %c0_104, %c0_105] : memref<4x64x32xbf16, #tpu.memory_space<vmem>>, vector<1x64x32xbf16>
    %200 = vector.shape_cast %199 : vector<1x64x32xbf16> to vector<64x32xbf16>
    %201 = arith.truncf %198 : vector<32x256xf32> to vector<32x256xbf16>
    %cst_106 = arith.constant dense<0.000000e+00> : vector<64x256xf32>
    %202 = tpu.matmul %200, %201, %cst_106 {dimension_numbers = #tpu.dot_dimension_numbers<[1], [0], [0], [1], [0, 0, 1, 1], [], []>} : vector<64x32xbf16>, vector<32x256xbf16>, vector<64x256xf32> -> vector<64x256xf32>
    %203 = vector.extract_strided_slice %202 {offsets = [32, 0], sizes = [32, 256], strides = [1, 1]} : vector<64x256xf32> to vector<32x256xf32>
    %204 = arith.addf %160, %203 : vector<32x256xf32>
    %cst_107 = arith.constant 0.000000e+00 : f32
    %205 = vector.broadcast %cst_107 : f32 to vector<32x256xf32>
    %206 = arith.maximumf %204, %205 : vector<32x256xf32>
    %c0_108 = arith.constant 0 : index
    %c0_109 = arith.constant 0 : index
    %207 = vector.load %arg8[%c0_108, %c0_109] : memref<64x32xbf16, #tpu.memory_space<vmem>>, vector<64x32xbf16>
    %208 = arith.truncf %206 : vector<32x256xf32> to vector<32x256xbf16>
    %cst_110 = arith.constant dense<0.000000e+00> : vector<64x256xf32>
    %209 = tpu.matmul %207, %208, %cst_110 {dimension_numbers = #tpu.dot_dimension_numbers<[1], [0], [0], [1], [0, 0, 1, 1], [], []>} : vector<64x32xbf16>, vector<32x256xbf16>, vector<64x256xf32> -> vector<64x256xf32>
    %c0_111 = arith.constant 0 : index
    %c0_112 = arith.constant 0 : index
    %210 = vector.load %arg9[%c0_111, %c0_112] : memref<64x1xf32, #tpu.memory_space<vmem>>, vector<64x1xf32>
    %211 = vector.broadcast %210 : vector<64x1xf32> to vector<64x256xf32>
    %212 = arith.addf %209, %211 : vector<64x256xf32>
    %cst_113 = arith.constant 0.000000e+00 : f32
    %213 = vector.broadcast %cst_113 : f32 to vector<64x256xf32>
    %214 = arith.maximumf %212, %213 : vector<64x256xf32>
    %c0_114 = arith.constant 0 : index
    %c0_115 = arith.constant 0 : index
    %215 = vector.load %arg10[%c0_114, %c0_115] : memref<8x64xbf16, #tpu.memory_space<vmem>>, vector<8x64xbf16>
    %216 = arith.truncf %214 : vector<64x256xf32> to vector<64x256xbf16>
    %cst_116 = arith.constant dense<0.000000e+00> : vector<8x256xf32>
    %217 = tpu.matmul %215, %216, %cst_116 {dimension_numbers = #tpu.dot_dimension_numbers<[1], [0], [0], [1], [0, 0, 1, 1], [], []>} : vector<8x64xbf16>, vector<64x256xbf16>, vector<8x256xf32> -> vector<8x256xf32>
    %c0_117 = arith.constant 0 : index
    %c0_118 = arith.constant 0 : index
    %218 = vector.load %arg11[%c0_117, %c0_118] : memref<8x1xf32, #tpu.memory_space<vmem>>, vector<8x1xf32>
    %219 = vector.broadcast %218 : vector<8x1xf32> to vector<8x256xf32>
    %220 = arith.addf %217, %219 : vector<8x256xf32>
    %221 = vector.extract_strided_slice %220 {offsets = [0, 0], sizes = [8, 128], strides = [1, 1]} : vector<8x256xf32> to vector<8x128xf32>
    %c0_119 = arith.constant 0 : index
    %c0_120 = arith.constant 0 : index
    %c0_121 = arith.constant 0 : index
    %222 = vector.load %arg12[%c0_119, %c0_120, %c0_121] : memref<2x8x128xf32, #tpu.memory_space<vmem>>, vector<1x8x128xf32>
    %223 = vector.shape_cast %222 : vector<1x8x128xf32> to vector<8x128xf32>
    %224 = vector.shape_cast %221 : vector<8x128xf32> to vector<1x8x128xf32>
    tpu.vector_store %arg12[%c0_119, %c0_120, %c0_121], %224 {strides = array<i32>} : memref<2x8x128xf32, #tpu.memory_space<vmem>>, vector<1x8x128xf32>,
    %225 = vector.extract_strided_slice %220 {offsets = [0, 128], sizes = [8, 128], strides = [1, 1]} : vector<8x256xf32> to vector<8x128xf32>
    %c1_122 = arith.constant 1 : index
    %c0_123 = arith.constant 0 : index
    %c0_124 = arith.constant 0 : index
    %226 = vector.load %arg12[%c1_122, %c0_123, %c0_124] : memref<2x8x128xf32, #tpu.memory_space<vmem>>, vector<1x8x128xf32>
    %227 = vector.shape_cast %226 : vector<1x8x128xf32> to vector<8x128xf32>
    %228 = vector.shape_cast %225 : vector<8x128xf32> to vector<1x8x128xf32>
    tpu.vector_store %arg12[%c1_122, %c0_123, %c0_124], %228 {strides = array<i32>} : memref<2x8x128xf32, #tpu.memory_space<vmem>>, vector<1x8x128xf32>,
    return
  }
  func.func @transform_0(%arg0: i32) -> (i32, i32) {
    %c0_i32 = arith.constant 0 : i32
    %c0_i32_0 = arith.constant 0 : i32
    return %c0_i32, %arg0 : i32, i32
  }
  func.func @transform_1(%arg0: i32) -> (i32, i32) {
    %c0_i32 = arith.constant 0 : i32
    %c0_i32_0 = arith.constant 0 : i32
    return %c0_i32, %arg0 : i32, i32
  }
  func.func @transform_2(%arg0: i32) -> (i32, i32) {
    %c0_i32 = arith.constant 0 : i32
    %c0_i32_0 = arith.constant 0 : i32
    %c0_i32_1 = arith.constant 0 : i32
    return %c0_i32, %c0_i32_0 : i32, i32
  }
  func.func @transform_3(%arg0: i32) -> (i32, i32) {
    %c0_i32 = arith.constant 0 : i32
    %c0_i32_0 = arith.constant 0 : i32
    %c0_i32_1 = arith.constant 0 : i32
    return %c0_i32, %c0_i32_0 : i32, i32
  }
  func.func @transform_4(%arg0: i32) -> (i32, i32, i32) {
    %c0_i32 = arith.constant 0 : i32
    %c0_i32_0 = arith.constant 0 : i32
    %c0_i32_1 = arith.constant 0 : i32
    %c0_i32_2 = arith.constant 0 : i32
    return %c0_i32, %c0_i32_0, %c0_i32_1 : i32, i32, i32
  }
  func.func @transform_5(%arg0: i32) -> (i32, i32, i32) {
    %c0_i32 = arith.constant 0 : i32
    %c0_i32_0 = arith.constant 0 : i32
    %c0_i32_1 = arith.constant 0 : i32
    %c0_i32_2 = arith.constant 0 : i32
    return %c0_i32, %c0_i32_0, %c0_i32_1 : i32, i32, i32
  }
  func.func @transform_6(%arg0: i32) -> (i32, i32, i32) {
    %c0_i32 = arith.constant 0 : i32
    %c0_i32_0 = arith.constant 0 : i32
    %c0_i32_1 = arith.constant 0 : i32
    %c0_i32_2 = arith.constant 0 : i32
    return %c0_i32, %c0_i32_0, %c0_i32_1 : i32, i32, i32
  }
  func.func @transform_7(%arg0: i32) -> (i32, i32) {
    %c0_i32 = arith.constant 0 : i32
    %c0_i32_0 = arith.constant 0 : i32
    %c0_i32_1 = arith.constant 0 : i32
    return %c0_i32, %c0_i32_0 : i32, i32
  }
  func.func @transform_8(%arg0: i32) -> (i32, i32) {
    %c0_i32 = arith.constant 0 : i32
    %c0_i32_0 = arith.constant 0 : i32
    %c0_i32_1 = arith.constant 0 : i32
    return %c0_i32, %c0_i32_0 : i32, i32
  }
  func.func @transform_9(%arg0: i32) -> (i32, i32) {
    %c0_i32 = arith.constant 0 : i32
    %c0_i32_0 = arith.constant 0 : i32
    %c0_i32_1 = arith.constant 0 : i32
    return %c0_i32, %c0_i32_0 : i32, i32
  }
  func.func @transform_10(%arg0: i32) -> (i32, i32) {
    %c0_i32 = arith.constant 0 : i32
    %c0_i32_0 = arith.constant 0 : i32
    %c0_i32_1 = arith.constant 0 : i32
    return %c0_i32, %c0_i32_0 : i32, i32
  }
  func.func @transform_11(%arg0: i32) -> (i32, i32, i32) {
    %c0_i32 = arith.constant 0 : i32
    %c0_i32_0 = arith.constant 0 : i32
    %c0_i32_1 = arith.constant 0 : i32
    return %arg0, %c0_i32, %c0_i32_0 : i32, i32, i32
  }
}

</mosaic_0001>

<llo_original>
// kernel: tpu_custom_call.1
$region0: #{tpu_custom_call.1}
  #allocation0 [shape = 'u32[]', space=smem, size = 0x4, offset = 0x4, fixed_abs, tag = 'smem constant byte address 0x4 - core index']
  #allocation1 [shape = 'u32[144,128]{1,0:T(1,128)}', space=vmem, size = 0x12000, scoped, tag = 'internal scratch']
  %s0 = inlined_call_operand.vmem [shape: f32[8,256], index: 0, kind: input, shape index: {}]
  %s1 = inlined_call_operand.vmem [shape: f32[1,256], index: 1, kind: input, shape index: {}]
  %s2 = inlined_call_operand.vmem [shape: bf16[32,8], index: 2, kind: input, shape index: {}]
  %s3 = inlined_call_operand.vmem [shape: f32[32,1], index: 3, kind: input, shape index: {}]
  %s4 = inlined_call_operand.vmem [shape: bf16[12,64,32], index: 4, kind: input, shape index: {}]
  %s5 = inlined_call_operand.vmem [shape: f32[4,64,1], index: 5, kind: input, shape index: {}]
  %s6 = inlined_call_operand.vmem [shape: bf16[4,64,32], index: 6, kind: input, shape index: {}]
  %s7 = inlined_call_operand.vmem [shape: bf16[64,32], index: 7, kind: input, shape index: {}]
  %s8 = inlined_call_operand.vmem [shape: f32[64,1], index: 8, kind: input, shape index: {}]
  %s9 = inlined_call_operand.vmem [shape: bf16[8,64], index: 9, kind: input, shape index: {}]
  %s10 = inlined_call_operand.vmem [shape: f32[8,1], index: 10, kind: input, shape index: {}]
  %s11 = inlined_call_operand.hbm [shape: f32[2,8,128], index: 11, kind: output, shape index: {}]
  %s12 = sld [smem:[#allocation0]]
  $region54: #{tpu_custom_call.1} parent=0
    _
  %s14 = ssub.s32 1, %s12
  %s15 = scalar_select 0, %s14, %s12
  $region1: #{tpu_custom_call.1} parent=0
    #allocation2 [shape = 'u8[8192]{0}', space=vmem, size = 0x2000, scoped, tag = 'output window, operand 0, single buffered']
    #allocation3 [shape = 's32[1]{0}', space=sflag, size = 0x4, scoped, tag = 'scoped memory for tpu_custom_call.1']
    %16 = vsyncpa [#allocation3], 0
    // Predicated region
    $region2: #{tpu_custom_call.1} parent=1 // pred_check
      _
    $region3: #{tpu_custom_call.1} parent=1 // pred_check_branch
      %18 = sbr.rel (0) target = $region5
    $region4: #{tpu_custom_call.1} parent=1 // pred_region
      _
    $region5: #{tpu_custom_call.1} parent=1 // pred_fallthru
      _
    // Predicated region
    $region6: #{tpu_custom_call.1} parent=1 // pred_check
      _
    $region7: #{tpu_custom_call.1} parent=1 // pred_check_branch
      %20 = sbr.rel (0) target = $region9
    $region8: #{tpu_custom_call.1} parent=1 // pred_region
      _
    $region9: #{tpu_custom_call.1} parent=1 // pred_fallthru
      _
    // Predicated region
    $region10: #{tpu_custom_call.1} parent=1 // pred_check
      _
    $region11: #{tpu_custom_call.1} parent=1 // pred_check_branch
      %22 = sbr.rel (0) target = $region13
    $region12: #{tpu_custom_call.1} parent=1 // pred_region
      _
    $region13: #{tpu_custom_call.1} parent=1 // pred_fallthru
      _
    // Predicated region
    $region14: #{tpu_custom_call.1} parent=1 // pred_check
      _
    $region15: #{tpu_custom_call.1} parent=1 // pred_check_branch
      %24 = sbr.rel (0) target = $region17
    $region16: #{tpu_custom_call.1} parent=1 // pred_region
      _
    $region17: #{tpu_custom_call.1} parent=1 // pred_fallthru
      _
    // Predicated region
    $region18: #{tpu_custom_call.1} parent=1 // pred_check
      _
    $region19: #{tpu_custom_call.1} parent=1 // pred_check_branch
      %26 = sbr.rel (0) target = $region21
    $region20: #{tpu_custom_call.1} parent=1 // pred_region
      _
    $region21: #{tpu_custom_call.1} parent=1 // pred_fallthru
      _
    // Predicated region
    $region22: #{tpu_custom_call.1} parent=1 // pred_check
      _
    $region23: #{tpu_custom_call.1} parent=1 // pred_check_branch
      %28 = sbr.rel (0) target = $region25
    $region24: #{tpu_custom_call.1} parent=1 // pred_region
      _
    $region25: #{tpu_custom_call.1} parent=1 // pred_fallthru
      _
    // Predicated region
    $region26: #{tpu_custom_call.1} parent=1 // pred_check
      _
    $region27: #{tpu_custom_call.1} parent=1 // pred_check_branch
      %30 = sbr.rel (0) target = $region29
    $region28: #{tpu_custom_call.1} parent=1 // pred_region
      _
    $region29: #{tpu_custom_call.1} parent=1 // pred_fallthru
      _
    // Predicated region
    $region30: #{tpu_custom_call.1} parent=1 // pred_check
      _
    $region31: #{tpu_custom_call.1} parent=1 // pred_check_branch
      %32 = sbr.rel (0) target = $region33
    $region32: #{tpu_custom_call.1} parent=1 // pred_region
      _
    $region33: #{tpu_custom_call.1} parent=1 // pred_fallthru
      _
    // Predicated region
    $region34: #{tpu_custom_call.1} parent=1 // pred_check
      _
    $region35: #{tpu_custom_call.1} parent=1 // pred_check_branch
      %34 = sbr.rel (0) target = $region37
    $region36: #{tpu_custom_call.1} parent=1 // pred_region
      _
    $region37: #{tpu_custom_call.1} parent=1 // pred_fallthru
      _
    // Predicated region
    $region38: #{tpu_custom_call.1} parent=1 // pred_check
      _
    $region39: #{tpu_custom_call.1} parent=1 // pred_check_branch
      %36 = sbr.rel (0) target = $region41
    $region40: #{tpu_custom_call.1} parent=1 // pred_region
      _
    $region41: #{tpu_custom_call.1} parent=1 // pred_fallthru
      _
    // Predicated region
    $region42: #{tpu_custom_call.1} parent=1 // pred_check
      _
    $region43: #{tpu_custom_call.1} parent=1 // pred_check_branch
      %38 = sbr.rel (0) target = $region45
    $region44: #{tpu_custom_call.1} parent=1 // pred_region
      _
    $region45: #{tpu_custom_call.1} parent=1 // pred_fallthru
      _
    %v40 = vlaneseq
    %v41 = vand.u32 %v40, 127
    %v42 = vadd.s32 %v41, 128
    %v43 = vand.u32 %v41, 127
    %v44 = vand.u32 %v42, 127
    %vm45 = vcmp.ge.s32.totalorder %v43, 1
    %vm46 = vcmp.ge.s32.totalorder %v44, 1
    %vm47 = vcmp.ge.s32.totalorder %v43, 2
    %vm48 = vcmp.ge.s32.totalorder %v44, 2
    %vm49 = vcmp.ge.s32.totalorder %v43, 3
    %vm50 = vcmp.ge.s32.totalorder %v44, 3
    %vm51 = vcmp.ge.s32.totalorder %v43, 5
    %vm52 = vcmp.ge.s32.totalorder %v44, 5
    %vm53 = vcmp.ge.s32.totalorder %v43, 9
    %vm54 = vcmp.ge.s32.totalorder %v44, 9
    %vm55 = vcmp.ge.s32.totalorder %v43, 17
    %vm56 = vcmp.ge.s32.totalorder %v44, 17
    %v57 = vld [vmem:[%s2] sm:$0xf]
    %v58 = vld [vmem:[%s2 + $0x4] sm:$0xf]
    %v59 = vld [vmem:[%s2 + $0x8] sm:$0xf]
    %v60 = vld [vmem:[%s2 + $0xc] sm:$0xf]
    %v61 = vld [vmem:[%s0] sm:$0xff]
    %v62 = vld [vmem:[%s0 + $0x8] sm:$0xff]
    %v63 = vpack.c.bf16 %v61, %v61
    %v64 = vpack.c.bf16 %v62, %v62
    %v65 = vld [vmem:[%s3] sm:$0xff]
    %v66 = vld [vmem:[%s3 + $0x8] sm:$0xff]
    %v67 = vld [vmem:[%s3 + $0x10] sm:$0xff]
    %v68 = vld [vmem:[%s3 + $0x18] sm:$0xff]
    %70 = vset.pattern.permute.xlu0 0
    %71 = vperm.xlu0 %70, %v65
    %v72 = vpop.permute.xlu0 %71
    %75 = vset.pattern.permute.xlu0 0
    %76 = vperm.xlu0 %75, %v66
    %v77 = vpop.permute.xlu0 %76
    %80 = vset.pattern.permute.xlu0 0
    %81 = vperm.xlu0 %80, %v67
    %v82 = vpop.permute.xlu0 %81
    %85 = vset.pattern.permute.xlu0 0
    %86 = vperm.xlu0 %85, %v68
    %v87 = vpop.permute.xlu0 %86
    %v93 = vunpack.c.l.b16 %v57
    %v94 = vunpack.c.l.b16 %v58
    %v95 = vunpack.c.l.b16 %v59
    %v96 = vunpack.c.l.b16 %v60
    %v97 = vpack.c.b16 %v94, %v93
    %v98 = vpack.c.b16 %v96, %v95
    %vm99 = vcmask 64512
    %v101 = vsel %vm99, %v97, 0
    %v104 = vsel %vm99, %v98, 0
    %vm106 = vcmask 1043456
    %v108 = vsel %vm106, %v63, 0
    %v111 = vsel %vm106, %v64, 0
    %113 = vmatprep.subr.bf16.mxu0 %v111
    %114 = vmatpush1.bf16.msra.mxu0 %v108
    %115 = vmatprep.subr.bf16.mxu0 0
    %116 = vmatpush1.bf16.msra.mxu0 0
    %117 = vmatprep.subr.bf16.mxu0 0
    %118 = vmatpush1.bf16.msra.mxu0 0
    %119 = vmatprep.subr.bf16.mxu0 0
    %120 = vmatpush1.bf16.msra.mxu0 0
    %121 = vmatprep.subr.bf16.mxu0 0
    %122 = vmatpush1.bf16.msra.mxu0 0
    %123 = vmatprep.subr.bf16.mxu0 0
    %124 = vmatpush1.bf16.msra.mxu0 0
    %125 = vmatprep.subr.bf16.mxu0 0
    %126 = vmatpush1.bf16.msra.mxu0 0
    %127 = vmatprep.subr.bf16.mxu0 0
    %128 = vmatpush1.bf16.msra.mxu0 0
    %129 = vmatprep.subr.bf16.mxu0 0
    %130 = vmatpush1.bf16.msra.mxu0 0
    %131 = vmatprep.subr.bf16.mxu0 0
    %132 = vmatpush1.bf16.msra.mxu0 0
    %133 = vmatprep.subr.bf16.mxu0 0
    %134 = vmatpush1.bf16.msra.mxu0 0
    %135 = vmatprep.subr.bf16.mxu0 0
    %136 = vmatpush1.bf16.msra.mxu0 0
    %137 = vmatprep.subr.bf16.mxu0 0
    %138 = vmatpush1.bf16.msra.mxu0 0
    %139 = vmatprep.subr.bf16.mxu0 0
    %140 = vmatpush1.bf16.msra.mxu0 0
    %141 = vmatprep.subr.bf16.mxu0 0
    %142 = vmatpush1.bf16.msra.mxu0 0
    %143 = vmatprep.subr.bf16.mxu0 0
    %144 = vmatpush1.bf16.msra.mxu0 0
    %145 = vmatprep.mubr.bf16.mxu0 0
    %146 = vmatmul.mubr.bf16.gmra.mrb[0].mxu0 %v101
    %v147 = vpop.f32.mrb[0].mxu0
    %v148 = vadd.f32 %v72, %v147
    %v149 = vpop.f32.mrb[0].mxu0
    %v150 = vadd.f32 %v72, %v149
    %v151 = vpop.f32.mrb[0].mxu0
    %v152 = vadd.f32 %v77, %v151
    %v153 = vpop.f32.mrb[0].mxu0
    %v154 = vadd.f32 %v77, %v153
    %155 = vmatprep.mubr.bf16.mxu0 0
    %156 = vmatmul.mubr.bf16.gmra.mrb[0].mxu0 %v104
    %v157 = vpop.f32.mrb[0].mxu0
    %v158 = vadd.f32 %v82, %v157
    %v159 = vpop.f32.mrb[0].mxu0
    %v160 = vadd.f32 %v82, %v159
    %v161 = vpop.f32.mrb[0].mxu0
    %v162 = vadd.f32 %v87, %v161
    %v163 = vpop.f32.mrb[0].mxu0
    %v164 = vadd.f32 %v87, %v163
    %165 = vdwg.mxu0
    %v166 = vld [vmem:[%s5] sm:$0xff]
    %v167 = vld [vmem:[%s5 + $0x8] sm:$0xff]
    %v168 = vld [vmem:[%s5 + $0x10] sm:$0xff]
    %v169 = vld [vmem:[%s5 + $0x18] sm:$0xff]
    %v170 = vld [vmem:[%s5 + $0x20] sm:$0xff]
    %v171 = vld [vmem:[%s5 + $0x28] sm:$0xff]
    %v172 = vld [vmem:[%s5 + $0x30] sm:$0xff]
    %v173 = vld [vmem:[%s5 + $0x38] sm:$0xff]
    %v174 = vld [vmem:[%s1] sm:$0x3]
    %176 = vset.pattern.permute.xlu0 0
    %177 = vperm.xlu0 %176, %v166
    %v178 = vpop.permute.xlu0 %177
    %181 = vset.pattern.permute.xlu0 0
    %182 = vperm.xlu0 %181, %v167
    %v183 = vpop.permute.xlu0 %182
    %186 = vset.pattern.permute.xlu0 0
    %187 = vperm.xlu0 %186, %v168
    %v188 = vpop.permute.xlu0 %187
    %191 = vset.pattern.permute.xlu0 0
    %192 = vperm.xlu0 %191, %v169
    %v193 = vpop.permute.xlu0 %192
    %196 = vset.pattern.permute.xlu0 0
    %197 = vperm.xlu0 %196, %v170
    %v198 = vpop.permute.xlu0 %197
    %201 = vset.pattern.permute.xlu0 0
    %202 = vperm.xlu0 %201, %v171
    %v203 = vpop.permute.xlu0 %202
    %206 = vset.pattern.permute.xlu0 0
    %207 = vperm.xlu0 %206, %v172
    %v208 = vpop.permute.xlu0 %207
    %211 = vset.pattern.permute.xlu0 0
    %212 = vperm.xlu0 %211, %v173
    %v213 = vpop.permute.xlu0 %212
    %v216 = vlaneseq
    %v217 = vshrl.u32 %v216, 7
    %v218 = vsub.s32 0, %v217
    %v219 = vrot.slane %v174, %v218
    %v220 = vlaneseq
    %v221 = vshrl.u32 %v220, 7
    %v222 = vsub.s32 1, %v221
    %v223 = vrot.slane %v174, %v222
    %v226 = vmul.f32 %v178, %v219
    %v227 = vmul.f32 %v178, %v223
    %v228 = vmul.f32 %v183, %v219
    %v229 = vmul.f32 %v183, %v223
    %v230 = vmul.f32 %v188, %v219
    %v231 = vmul.f32 %v188, %v223
    %v232 = vmul.f32 %v193, %v219
    %v233 = vmul.f32 %v193, %v223
    %v234 = vmul.f32 %v198, %v219
    %v235 = vmul.f32 %v198, %v223
    %v236 = vmul.f32 %v203, %v219
    %v237 = vmul.f32 %v203, %v223
    %v238 = vmul.f32 %v208, %v219
    %v239 = vmul.f32 %v208, %v223
    %v240 = vmul.f32 %v213, %v219
    %v241 = vmul.f32 %v213, %v223
    %242 = vrot.lane.b32.xlu0 %v148, 3
    %v243 = vpop.permute.xlu0 %242
    %244 = vrot.lane.b32.xlu0 %v152, 3
    %v245 = vpop.permute.xlu0 %244
    %246 = vrot.lane.b32.xlu0 %v158, 3
    %v247 = vpop.permute.xlu0 %246
    %248 = vrot.lane.b32.xlu0 %v162, 3
    %v249 = vpop.permute.xlu0 %248
    %250 = vrot.lane.b32.xlu0 %v150, 3
    %v251 = vpop.permute.xlu0 %250
    %252 = vrot.lane.b32.xlu0 %v154, 3
    %v253 = vpop.permute.xlu0 %252
    %254 = vrot.lane.b32.xlu0 %v160, 3
    %v255 = vpop.permute.xlu0 %254
    %256 = vrot.lane.b32.xlu0 %v164, 3
    %v257 = vpop.permute.xlu0 %256
    %vm258 = vcmp.lt.s32.totalorder %v41, 3
    %v259 = vsel %vm258, %v243, %v251
    %v260 = vsel %vm258, %v245, %v253
    %v261 = vsel %vm258, %v247, %v255
    %v262 = vsel %vm258, %v249, %v257
    %v263 = vsel %vm258, %v251, %v243
    %v264 = vsel %vm258, %v253, %v245
    %v265 = vsel %vm258, %v255, %v247
    %v266 = vsel %vm258, %v257, %v249
    %v267 = vsel %vm49, %v263, 0.0
    %v268 = vsel %vm50, %v259, 0.0
    %v269 = vsel %vm49, %v264, 0.0
    %v270 = vsel %vm50, %v260, 0.0
    %v271 = vsel %vm49, %v265, 0.0
    %v272 = vsel %vm50, %v261, 0.0
    %v273 = vsel %vm49, %v266, 0.0
    %v274 = vsel %vm50, %v262, 0.0
    %v275 = vld [vmem:[%s4] sm:$0xf]
    %v276 = vld [vmem:[%s4 + $0x4] sm:$0xf]
    %v277 = vld [vmem:[%s4 + $0x8] sm:$0xf]
    %v278 = vld [vmem:[%s4 + $0xc] sm:$0xf]
    %v279 = vld [vmem:[%s4 + $0x10] sm:$0xf]
    %v280 = vld [vmem:[%s4 + $0x14] sm:$0xf]
    %v281 = vld [vmem:[%s4 + $0x18] sm:$0xf]
    %v282 = vld [vmem:[%s4 + $0x1c] sm:$0xf]
    %v283 = vpack.c.bf16 %v269, %v267
    %v284 = vpack.c.bf16 %v270, %v268
    %v285 = vpack.c.bf16 %v273, %v271
    %v286 = vpack.c.bf16 %v274, %v272
    %v295 = vunpack.c.l.b16 %v275
    %v296 = vunpack.c.l.b16 %v276
    %v297 = vunpack.c.l.b16 %v277
    %v298 = vunpack.c.l.b16 %v278
    %v299 = vunpack.c.l.b16 %v279
    %v300 = vunpack.c.l.b16 %v280
    %v301 = vunpack.c.l.b16 %v281
    %v302 = vunpack.c.l.b16 %v282
    %v303 = vpack.c.b16 %v296, %v295
    %v304 = vpack.c.b16 %v298, %v297
    %v305 = vpack.c.b16 %v300, %v299
    %v306 = vpack.c.b16 %v302, %v301
    %vm307 = vcmask 261120
    %v309 = vsel %vm307, %v303, 0
    %v312 = vsel %vm307, %v304, 0
    %v315 = vsel %vm307, %v305, 0
    %v318 = vsel %vm307, %v306, 0
    %320 = vmatprep.subr.bf16.mxu0 %v284
    %321 = vmatpush1.bf16.msra.mxu0 %v283
    %322 = vmatprep.subr.bf16.mxu0 %v286
    %323 = vmatpush1.bf16.msra.mxu0 %v285
    %324 = vmatprep.subr.bf16.mxu0 0
    %325 = vmatpush1.bf16.msra.mxu0 0
    %326 = vmatprep.subr.bf16.mxu0 0
    %327 = vmatpush1.bf16.msra.mxu0 0
    %328 = vmatprep.subr.bf16.mxu0 0
    %329 = vmatpush1.bf16.msra.mxu0 0
    %330 = vmatprep.subr.bf16.mxu0 0
    %331 = vmatpush1.bf16.msra.mxu0 0
    %332 = vmatprep.subr.bf16.mxu0 0
    %333 = vmatpush1.bf16.msra.mxu0 0
    %334 = vmatprep.subr.bf16.mxu0 0
    %335 = vmatpush1.bf16.msra.mxu0 0
    %336 = vmatprep.subr.bf16.mxu0 0
    %337 = vmatpush1.bf16.msra.mxu0 0
    %338 = vmatprep.subr.bf16.mxu0 0
    %339 = vmatpush1.bf16.msra.mxu0 0
    %340 = vmatprep.subr.bf16.mxu0 0
    %341 = vmatpush1.bf16.msra.mxu0 0
    %342 = vmatprep.subr.bf16.mxu0 0
    %343 = vmatpush1.bf16.msra.mxu0 0
    %344 = vmatprep.subr.bf16.mxu0 0
    %345 = vmatpush1.bf16.msra.mxu0 0
    %346 = vmatprep.subr.bf16.mxu0 0
    %347 = vmatpush1.bf16.msra.mxu0 0
    %348 = vmatprep.subr.bf16.mxu0 0
    %349 = vmatpush1.bf16.msra.mxu0 0
    %350 = vmatprep.subr.bf16.mxu0 0
    %351 = vmatpush1.bf16.msra.mxu0 0
    %352 = vmatprep.mubr.bf16.mxu0 0
    %353 = vmatmul.mubr.bf16.gmra.mrb[0].mxu0 %v309
    %v354 = vpop.f32.mrb[0].mxu0
    %v355 = vadd.f32 0.0, %v354
    %v356 = vpop.f32.mrb[0].mxu0
    %v357 = vadd.f32 0.0, %v356
    %v358 = vpop.f32.mrb[0].mxu0
    %v359 = vadd.f32 0.0, %v358
    %v360 = vpop.f32.mrb[0].mxu0
    %v361 = vadd.f32 0.0, %v360
    %362 = vmatprep.mubr.bf16.mxu0 0
    %363 = vmatmul.mubr.bf16.gmra.mrb[0].mxu0 %v312
    %v364 = vpop.f32.mrb[0].mxu0
    %v365 = vadd.f32 0.0, %v364
    %v366 = vpop.f32.mrb[0].mxu0
    %v367 = vadd.f32 0.0, %v366
    %v368 = vpop.f32.mrb[0].mxu0
    %v369 = vadd.f32 0.0, %v368
    %v370 = vpop.f32.mrb[0].mxu0
    %v371 = vadd.f32 0.0, %v370
    %372 = vmatprep.mubr.bf16.mxu0 0
    %373 = vmatmul.mubr.bf16.gmra.mrb[0].mxu0 %v315
    %v374 = vpop.f32.mrb[0].mxu0
    %v375 = vadd.f32 0.0, %v374
    %v376 = vpop.f32.mrb[0].mxu0
    %v377 = vadd.f32 0.0, %v376
    %v378 = vpop.f32.mrb[0].mxu0
    %v379 = vadd.f32 0.0, %v378
    %v380 = vpop.f32.mrb[0].mxu0
    %v381 = vadd.f32 0.0, %v380
    %382 = vmatprep.mubr.bf16.mxu0 0
    %383 = vmatmul.mubr.bf16.gmra.mrb[0].mxu0 %v318
    %v384 = vpop.f32.mrb[0].mxu0
    %v385 = vadd.f32 0.0, %v384
    %v386 = vpop.f32.mrb[0].mxu0
    %v387 = vadd.f32 0.0, %v386
    %v388 = vpop.f32.mrb[0].mxu0
    %v389 = vadd.f32 0.0, %v388
    %v390 = vpop.f32.mrb[0].mxu0
    %v391 = vadd.f32 0.0, %v390
    %392 = vdwg.mxu0
    %v393 = vadd.f32 %v226, %v355
    %v394 = vadd.f32 %v227, %v357
    %v395 = vadd.f32 %v228, %v359
    %v396 = vadd.f32 %v229, %v361
    %v397 = vadd.f32 %v230, %v365
    %v398 = vadd.f32 %v231, %v367
    %v399 = vadd.f32 %v232, %v369
    %v400 = vadd.f32 %v233, %v371
    %v401 = vadd.f32 %v234, %v375
    %v402 = vadd.f32 %v235, %v377
    %v403 = vadd.f32 %v236, %v379
    %v404 = vadd.f32 %v237, %v381
    %v405 = vadd.f32 %v238, %v385
    %v406 = vadd.f32 %v239, %v387
    %v407 = vadd.f32 %v240, %v389
    %v408 = vadd.f32 %v241, %v391
    %409 = vrot.lane.b32.xlu0 %v148, 2
    %v410 = vpop.permute.xlu0 %409
    %411 = vrot.lane.b32.xlu0 %v152, 2
    %v412 = vpop.permute.xlu0 %411
    %413 = vrot.lane.b32.xlu0 %v158, 2
    %v414 = vpop.permute.xlu0 %413
    %415 = vrot.lane.b32.xlu0 %v162, 2
    %v416 = vpop.permute.xlu0 %415
    %417 = vrot.lane.b32.xlu0 %v150, 2
    %v418 = vpop.permute.xlu0 %417
    %419 = vrot.lane.b32.xlu0 %v154, 2
    %v420 = vpop.permute.xlu0 %419
    %421 = vrot.lane.b32.xlu0 %v160, 2
    %v422 = vpop.permute.xlu0 %421
    %423 = vrot.lane.b32.xlu0 %v164, 2
    %v424 = vpop.permute.xlu0 %423
    %vm425 = vcmp.lt.s32.totalorder %v41, 2
    %v426 = vsel %vm425, %v410, %v418
    %v427 = vsel %vm425, %v412, %v420
    %v428 = vsel %vm425, %v414, %v422
    %v429 = vsel %vm425, %v416, %v424
    %v430 = vsel %vm425, %v418, %v410
    %v431 = vsel %vm425, %v420, %v412
    %v432 = vsel %vm425, %v422, %v414
    %v433 = vsel %vm425, %v424, %v416
    %v434 = vsel %vm47, %v430, 0.0
    %v435 = vsel %vm48, %v426, 0.0
    %v436 = vsel %vm47, %v431, 0.0
    %v437 = vsel %vm48, %v427, 0.0
    %v438 = vsel %vm47, %v432, 0.0
    %v439 = vsel %vm48, %v428, 0.0
    %v440 = vsel %vm47, %v433, 0.0
    %v441 = vsel %vm48, %v429, 0.0
    %s442 = scalar_lea.vmem %s4, 32
    %v443 = vld [vmem:[%s442] sm:$0xf]
    %v444 = vld [vmem:[%s442 + $0x4] sm:$0xf]
    %v445 = vld [vmem:[%s442 + $0x8] sm:$0xf]
    %v446 = vld [vmem:[%s442 + $0xc] sm:$0xf]
    %v447 = vld [vmem:[%s442 + $0x10] sm:$0xf]
    %v448 = vld [vmem:[%s442 + $0x14] sm:$0xf]
    %v449 = vld [vmem:[%s442 + $0x18] sm:$0xf]
    %v450 = vld [vmem:[%s442 + $0x1c] sm:$0xf]
    %v451 = vpack.c.bf16 %v436, %v434
    %v452 = vpack.c.bf16 %v437, %v435
    %v453 = vpack.c.bf16 %v440, %v438
    %v454 = vpack.c.bf16 %v441, %v439
    %v463 = vunpack.c.l.b16 %v443
    %v464 = vunpack.c.l.b16 %v444
    %v465 = vunpack.c.l.b16 %v445
    %v466 = vunpack.c.l.b16 %v446
    %v467 = vunpack.c.l.b16 %v447
    %v468 = vunpack.c.l.b16 %v448
    %v469 = vunpack.c.l.b16 %v449
    %v470 = vunpack.c.l.b16 %v450
    %v471 = vpack.c.b16 %v464, %v463
    %v472 = vpack.c.b16 %v466, %v465
    %v473 = vpack.c.b16 %v468, %v467
    %v474 = vpack.c.b16 %v470, %v469
    %v476 = vsel %vm307, %v471, 0
    %v479 = vsel %vm307, %v472, 0
    %v482 = vsel %vm307, %v473, 0
    %v485 = vsel %vm307, %v474, 0
    %487 = vmatprep.subr.bf16.mxu0 %v452
    %488 = vmatpush1.bf16.msra.mxu0 %v451
    %489 = vmatprep.subr.bf16.mxu0 %v454
    %490 = vmatpush1.bf16.msra.mxu0 %v453
    %491 = vmatprep.subr.bf16.mxu0 0
    %492 = vmatpush1.bf16.msra.mxu0 0
    %493 = vmatprep.subr.bf16.mxu0 0
    %494 = vmatpush1.bf16.msra.mxu0 0
    %495 = vmatprep.subr.bf16.mxu0 0
    %496 = vmatpush1.bf16.msra.mxu0 0
    %497 = vmatprep.subr.bf16.mxu0 0
    %498 = vmatpush1.bf16.msra.mxu0 0
    %499 = vmatprep.subr.bf16.mxu0 0
    %500 = vmatpush1.bf16.msra.mxu0 0
    %501 = vmatprep.subr.bf16.mxu0 0
    %502 = vmatpush1.bf16.msra.mxu0 0
    %503 = vmatprep.subr.bf16.mxu0 0
    %504 = vmatpush1.bf16.msra.mxu0 0
    %505 = vmatprep.subr.bf16.mxu0 0
    %506 = vmatpush1.bf16.msra.mxu0 0
    %507 = vmatprep.subr.bf16.mxu0 0
    %508 = vmatpush1.bf16.msra.mxu0 0
    %509 = vmatprep.subr.bf16.mxu0 0
    %510 = vmatpush1.bf16.msra.mxu0 0
    %511 = vmatprep.subr.bf16.mxu0 0
    %512 = vmatpush1.bf16.msra.mxu0 0
    %513 = vmatprep.subr.bf16.mxu0 0
    %514 = vmatpush1.bf16.msra.mxu0 0
    %515 = vmatprep.subr.bf16.mxu0 0
    %516 = vmatpush1.bf16.msra.mxu0 0
    %517 = vmatprep.subr.bf16.mxu0 0
    %518 = vmatpush1.bf16.msra.mxu0 0
    %519 = vmatprep.mubr.bf16.mxu0 0
    %520 = vmatmul.mubr.bf16.gmra.mrb[0].mxu0 %v476
    %v521 = vpop.f32.mrb[0].mxu0
    %v522 = vadd.f32 0.0, %v521
    %v523 = vpop.f32.mrb[0].mxu0
    %v524 = vadd.f32 0.0, %v523
    %v525 = vpop.f32.mrb[0].mxu0
    %v526 = vadd.f32 0.0, %v525
    %v527 = vpop.f32.mrb[0].mxu0
    %v528 = vadd.f32 0.0, %v527
    %529 = vmatprep.mubr.bf16.mxu0 0
    %530 = vmatmul.mubr.bf16.gmra.mrb[0].mxu0 %v479
    %v531 = vpop.f32.mrb[0].mxu0
    %v532 = vadd.f32 0.0, %v531
    %v533 = vpop.f32.mrb[0].mxu0
    %v534 = vadd.f32 0.0, %v533
    %v535 = vpop.f32.mrb[0].mxu0
    %v536 = vadd.f32 0.0, %v535
    %v537 = vpop.f32.mrb[0].mxu0
    %v538 = vadd.f32 0.0, %v537
    %539 = vmatprep.mubr.bf16.mxu0 0
    %540 = vmatmul.mubr.bf16.gmra.mrb[0].mxu0 %v482
    %v541 = vpop.f32.mrb[0].mxu0
    %v542 = vadd.f32 0.0, %v541
    %v543 = vpop.f32.mrb[0].mxu0
    %v544 = vadd.f32 0.0, %v543
    %v545 = vpop.f32.mrb[0].mxu0
    %v546 = vadd.f32 0.0, %v545
    %v547 = vpop.f32.mrb[0].mxu0
    %v548 = vadd.f32 0.0, %v547
    %549 = vmatprep.mubr.bf16.mxu0 0
    %550 = vmatmul.mubr.bf16.gmra.mrb[0].mxu0 %v485
    %v551 = vpop.f32.mrb[0].mxu0
    %v552 = vadd.f32 0.0, %v551
    %v553 = vpop.f32.mrb[0].mxu0
    %v554 = vadd.f32 0.0, %v553
    %v555 = vpop.f32.mrb[0].mxu0
    %v556 = vadd.f32 0.0, %v555
    %v557 = vpop.f32.mrb[0].mxu0
    %v558 = vadd.f32 0.0, %v557
    %559 = vdwg.mxu0
    %v560 = vadd.f32 %v393, %v522
    %v561 = vadd.f32 %v394, %v524
    %v562 = vadd.f32 %v395, %v526
    %v563 = vadd.f32 %v396, %v528
    %v564 = vadd.f32 %v397, %v532
    %v565 = vadd.f32 %v398, %v534
    %v566 = vadd.f32 %v399, %v536
    %v567 = vadd.f32 %v400, %v538
    %v568 = vadd.f32 %v401, %v542
    %v569 = vadd.f32 %v402, %v544
    %v570 = vadd.f32 %v403, %v546
    %v571 = vadd.f32 %v404, %v548
    %v572 = vadd.f32 %v405, %v552
    %v573 = vadd.f32 %v406, %v554
    %v574 = vadd.f32 %v407, %v556
    %v575 = vadd.f32 %v408, %v558
    %576 = vrot.lane.b32.xlu0 %v148, 1
    %v577 = vpop.permute.xlu0 %576
    %578 = vrot.lane.b32.xlu0 %v152, 1
    %v579 = vpop.permute.xlu0 %578
    %580 = vrot.lane.b32.xlu0 %v158, 1
    %v581 = vpop.permute.xlu0 %580
    %582 = vrot.lane.b32.xlu0 %v162, 1
    %v583 = vpop.permute.xlu0 %582
    %584 = vrot.lane.b32.xlu0 %v150, 1
    %v585 = vpop.permute.xlu0 %584
    %586 = vrot.lane.b32.xlu0 %v154, 1
    %v587 = vpop.permute.xlu0 %586
    %588 = vrot.lane.b32.xlu0 %v160, 1
    %v589 = vpop.permute.xlu0 %588
    %590 = vrot.lane.b32.xlu0 %v164, 1
    %v591 = vpop.permute.xlu0 %590
    %vm592 = vcmp.lt.s32.totalorder %v41, 1
    %v593 = vsel %vm592, %v577, %v585
    %v594 = vsel %vm592, %v579, %v587
    %v595 = vsel %vm592, %v581, %v589
    %v596 = vsel %vm592, %v583, %v591
    %v597 = vsel %vm592, %v585, %v577
    %v598 = vsel %vm592, %v587, %v579
    %v599 = vsel %vm592, %v589, %v581
    %v600 = vsel %vm592, %v591, %v583
    %v601 = vsel %vm45, %v597, 0.0
    %v602 = vsel %vm46, %v593, 0.0
    %v603 = vsel %vm45, %v598, 0.0
    %v604 = vsel %vm46, %v594, 0.0
    %v605 = vsel %vm45, %v599, 0.0
    %v606 = vsel %vm46, %v595, 0.0
    %v607 = vsel %vm45, %v600, 0.0
    %v608 = vsel %vm46, %v596, 0.0
    %s609 = scalar_lea.vmem %s4, 64
    %v610 = vld [vmem:[%s609] sm:$0xf]
    %v611 = vld [vmem:[%s609 + $0x4] sm:$0xf]
    %v612 = vld [vmem:[%s609 + $0x8] sm:$0xf]
    %v613 = vld [vmem:[%s609 + $0xc] sm:$0xf]
    %v614 = vld [vmem:[%s609 + $0x10] sm:$0xf]
    %v615 = vld [vmem:[%s609 + $0x14] sm:$0xf]
    %v616 = vld [vmem:[%s609 + $0x18] sm:$0xf]
    %v617 = vld [vmem:[%s609 + $0x1c] sm:$0xf]
    %v618 = vpack.c.bf16 %v603, %v601
    %v619 = vpack.c.bf16 %v604, %v602
    %v620 = vpack.c.bf16 %v607, %v605
    %v621 = vpack.c.bf16 %v608, %v606
    %v630 = vunpack.c.l.b16 %v610
    %v631 = vunpack.c.l.b16 %v611
    %v632 = vunpack.c.l.b16 %v612
    %v633 = vunpack.c.l.b16 %v613
    %v634 = vunpack.c.l.b16 %v614
    %v635 = vunpack.c.l.b16 %v615
    %v636 = vunpack.c.l.b16 %v616
    %v637 = vunpack.c.l.b16 %v617
    %v638 = vpack.c.b16 %v631, %v630
    %v639 = vpack.c.b16 %v633, %v632
    %v640 = vpack.c.b16 %v635, %v634
    %v641 = vpack.c.b16 %v637, %v636
    %v643 = vsel %vm307, %v638, 0
    %v646 = vsel %vm307, %v639, 0
    %v649 = vsel %vm307, %v640, 0
    %v652 = vsel %vm307, %v641, 0
    %654 = vmatprep.subr.bf16.mxu0 %v619
    %655 = vmatpush1.bf16.msra.mxu0 %v618
    %656 = vmatprep.subr.bf16.mxu0 %v621
    %657 = vmatpush1.bf16.msra.mxu0 %v620
    %658 = vmatprep.subr.bf16.mxu0 0
    %659 = vmatpush1.bf16.msra.mxu0 0
    %660 = vmatprep.subr.bf16.mxu0 0
    %661 = vmatpush1.bf16.msra.mxu0 0
    %662 = vmatprep.subr.bf16.mxu0 0
    %663 = vmatpush1.bf16.msra.mxu0 0
    %664 = vmatprep.subr.bf16.mxu0 0
    %665 = vmatpush1.bf16.msra.mxu0 0
    %666 = vmatprep.subr.bf16.mxu0 0
    %667 = vmatpush1.bf16.msra.mxu0 0
    %668 = vmatprep.subr.bf16.mxu0 0
    %669 = vmatpush1.bf16.msra.mxu0 0
    %670 = vmatprep.subr.bf16.mxu0 0
    %671 = vmatpush1.bf16.msra.mxu0 0
    %672 = vmatprep.subr.bf16.mxu0 0
    %673 = vmatpush1.bf16.msra.mxu0 0
    %674 = vmatprep.subr.bf16.mxu0 0
    %675 = vmatpush1.bf16.msra.mxu0 0
    %676 = vmatprep.subr.bf16.mxu0 0
    %677 = vmatpush1.bf16.msra.mxu0 0
    %678 = vmatprep.subr.bf16.mxu0 0
    %679 = vmatpush1.bf16.msra.mxu0 0
    %680 = vmatprep.subr.bf16.mxu0 0
    %681 = vmatpush1.bf16.msra.mxu0 0
    %682 = vmatprep.subr.bf16.mxu0 0
    %683 = vmatpush1.bf16.msra.mxu0 0
    %684 = vmatprep.subr.bf16.mxu0 0
    %685 = vmatpush1.bf16.msra.mxu0 0
    %686 = vmatprep.mubr.bf16.mxu0 0
    %687 = vmatmul.mubr.bf16.gmra.mrb[0].mxu0 %v643
    %v688 = vpop.f32.mrb[0].mxu0
    %v689 = vadd.f32 0.0, %v688
    %v690 = vpop.f32.mrb[0].mxu0
    %v691 = vadd.f32 0.0, %v690
    %v692 = vpop.f32.mrb[0].mxu0
    %v693 = vadd.f32 0.0, %v692
    %v694 = vpop.f32.mrb[0].mxu0
    %v695 = vadd.f32 0.0, %v694
    %696 = vmatprep.mubr.bf16.mxu0 0
    %697 = vmatmul.mubr.bf16.gmra.mrb[0].mxu0 %v646
    %v698 = vpop.f32.mrb[0].mxu0
    %v699 = vadd.f32 0.0, %v698
    %v700 = vpop.f32.mrb[0].mxu0
    %v701 = vadd.f32 0.0, %v700
    %v702 = vpop.f32.mrb[0].mxu0
    %v703 = vadd.f32 0.0, %v702
    %v704 = vpop.f32.mrb[0].mxu0
    %v705 = vadd.f32 0.0, %v704
    %706 = vmatprep.mubr.bf16.mxu0 0
    %707 = vmatmul.mubr.bf16.gmra.mrb[0].mxu0 %v649
    %v708 = vpop.f32.mrb[0].mxu0
    %v709 = vadd.f32 0.0, %v708
    %v710 = vpop.f32.mrb[0].mxu0
    %v711 = vadd.f32 0.0, %v710
    %v712 = vpop.f32.mrb[0].mxu0
    %v713 = vadd.f32 0.0, %v712
    %v714 = vpop.f32.mrb[0].mxu0
    %v715 = vadd.f32 0.0, %v714
    %716 = vmatprep.mubr.bf16.mxu0 0
    %717 = vmatmul.mubr.bf16.gmra.mrb[0].mxu0 %v652
    %v718 = vpop.f32.mrb[0].mxu0
    %v719 = vadd.f32 0.0, %v718
    %v720 = vpop.f32.mrb[0].mxu0
    %v721 = vadd.f32 0.0, %v720
    %v722 = vpop.f32.mrb[0].mxu0
    %v723 = vadd.f32 0.0, %v722
    %v724 = vpop.f32.mrb[0].mxu0
    %v725 = vadd.f32 0.0, %v724
    %726 = vdwg.mxu0
    %v727 = vadd.f32 %v560, %v689
    %v728 = vadd.f32 %v561, %v691
    %v729 = vadd.f32 %v562, %v693
    %v730 = vadd.f32 %v563, %v695
    %v731 = vadd.f32 %v564, %v699
    %v732 = vadd.f32 %v565, %v701
    %v733 = vadd.f32 %v566, %v703
    %v734 = vadd.f32 %v567, %v705
    %v735 = vadd.f32 %v568, %v709
    %v736 = vadd.f32 %v569, %v711
    %v737 = vadd.f32 %v570, %v713
    %v738 = vadd.f32 %v571, %v715
    %v739 = vadd.f32 %v572, %v719
    %v740 = vadd.f32 %v573, %v721
    %v741 = vadd.f32 %v574, %v723
    %v742 = vadd.f32 %v575, %v725
    %v743 = vxor.u32 %v735, 2147483648
    %v744 = vxor.u32 %v736, 2147483648
    %v745 = vxor.u32 %v737, 2147483648
    %v746 = vxor.u32 %v738, 2147483648
    %v747 = vxor.u32 %v739, 2147483648
    %v748 = vxor.u32 %v740, 2147483648
    %v749 = vxor.u32 %v741, 2147483648
    %v750 = vxor.u32 %v742, 2147483648
    %v751 = vmul.f32 %v743, 1.442695
    %v752 = vpow.pop %v751
    %v753 = vmul.f32 %v744, 1.442695
    %v754 = vpow.pop %v753
    %v755 = vmul.f32 %v745, 1.442695
    %v756 = vpow.pop %v755
    %v757 = vmul.f32 %v746, 1.442695
    %v758 = vpow.pop %v757
    %v759 = vmul.f32 %v747, 1.442695
    %v760 = vpow.pop %v759
    %v761 = vmul.f32 %v748, 1.442695
    %v762 = vpow.pop %v761
    %v763 = vmul.f32 %v749, 1.442695
    %v764 = vpow.pop %v763
    %v765 = vmul.f32 %v750, 1.442695
    %v766 = vpow.pop %v765
    %v767 = vadd.f32 %v752, 1.0
    %v768 = vadd.f32 %v754, 1.0
    %v769 = vadd.f32 %v756, 1.0
    %v770 = vadd.f32 %v758, 1.0
    %v771 = vadd.f32 %v760, 1.0
    %v772 = vadd.f32 %v762, 1.0
    %v773 = vadd.f32 %v764, 1.0
    %v774 = vadd.f32 %v766, 1.0
    %v775 = vrcp.pop %v767
    %v776 = vmul.f32 1.0, %v775
    %v777 = vrcp.pop %v768
    %v778 = vmul.f32 1.0, %v777
    %v779 = vrcp.pop %v769
    %v780 = vmul.f32 1.0, %v779
    %v781 = vrcp.pop %v770
    %v782 = vmul.f32 1.0, %v781
    %v783 = vrcp.pop %v771
    %v784 = vmul.f32 1.0, %v783
    %v785 = vrcp.pop %v772
    %v786 = vmul.f32 1.0, %v785
    %v787 = vrcp.pop %v773
    %v788 = vmul.f32 1.0, %v787
    %v789 = vrcp.pop %v774
    %v790 = vmul.f32 1.0, %v789
    %v791 = vmul.f32 %v727, %v776
    %v792 = vmul.f32 %v728, %v778
    %v793 = vmul.f32 %v729, %v780
    %v794 = vmul.f32 %v730, %v782
    %v795 = vmul.f32 %v731, %v784
    %v796 = vmul.f32 %v732, %v786
    %v797 = vmul.f32 %v733, %v788
    %v798 = vmul.f32 %v734, %v790
    %v799 = vld [vmem:[%s6] sm:$0xf]
    %v800 = vld [vmem:[%s6 + $0x4] sm:$0xf]
    %v801 = vld [vmem:[%s6 + $0x8] sm:$0xf]
    %v802 = vld [vmem:[%s6 + $0xc] sm:$0xf]
    %v803 = vld [vmem:[%s6 + $0x10] sm:$0xf]
    %v804 = vld [vmem:[%s6 + $0x14] sm:$0xf]
    %v805 = vld [vmem:[%s6 + $0x18] sm:$0xf]
    %v806 = vld [vmem:[%s6 + $0x1c] sm:$0xf]
    %v807 = vpack.c.bf16 %v793, %v791
    %v808 = vpack.c.bf16 %v794, %v792
    %v809 = vpack.c.bf16 %v797, %v795
    %v810 = vpack.c.bf16 %v798, %v796
    %v819 = vunpack.c.l.b16 %v799
    %v820 = vunpack.c.l.b16 %v800
    %v821 = vunpack.c.l.b16 %v801
    %v822 = vunpack.c.l.b16 %v802
    %v823 = vunpack.c.l.b16 %v803
    %v824 = vunpack.c.l.b16 %v804
    %v825 = vunpack.c.l.b16 %v805
    %v826 = vunpack.c.l.b16 %v806
    %v827 = vpack.c.b16 %v820, %v819
    %v828 = vpack.c.b16 %v822, %v821
    %v829 = vpack.c.b16 %v824, %v823
    %v830 = vpack.c.b16 %v826, %v825
    %v832 = vsel %vm307, %v827, 0
    %v835 = vsel %vm307, %v828, 0
    %v838 = vsel %vm307, %v829, 0
    %v841 = vsel %vm307, %v830, 0
    %843 = vmatprep.subr.bf16.mxu0 %v808
    %844 = vmatpush1.bf16.msra.mxu0 %v807
    %845 = vmatprep.subr.bf16.mxu0 %v810
    %846 = vmatpush1.bf16.msra.mxu0 %v809
    %847 = vmatprep.subr.bf16.mxu0 0
    %848 = vmatpush1.bf16.msra.mxu0 0
    %849 = vmatprep.subr.bf16.mxu0 0
    %850 = vmatpush1.bf16.msra.mxu0 0
    %851 = vmatprep.subr.bf16.mxu0 0
    %852 = vmatpush1.bf16.msra.mxu0 0
    %853 = vmatprep.subr.bf16.mxu0 0
    %854 = vmatpush1.bf16.msra.mxu0 0
    %855 = vmatprep.subr.bf16.mxu0 0
    %856 = vmatpush1.bf16.msra.mxu0 0
    %857 = vmatprep.subr.bf16.mxu0 0
    %858 = vmatpush1.bf16.msra.mxu0 0
    %859 = vmatprep.subr.bf16.mxu0 0
    %860 = vmatpush1.bf16.msra.mxu0 0
    %861 = vmatprep.subr.bf16.mxu0 0
    %862 = vmatpush1.bf16.msra.mxu0 0
    %863 = vmatprep.subr.bf16.mxu0 0
    %864 = vmatpush1.bf16.msra.mxu0 0
    %865 = vmatprep.subr.bf16.mxu0 0
    %866 = vmatpush1.bf16.msra.mxu0 0
    %867 = vmatprep.subr.bf16.mxu0 0
    %868 = vmatpush1.bf16.msra.mxu0 0
    %869 = vmatprep.subr.bf16.mxu0 0
    %870 = vmatpush1.bf16.msra.mxu0 0
    %871 = vmatprep.subr.bf16.mxu0 0
    %872 = vmatpush1.bf16.msra.mxu0 0
    %873 = vmatprep.subr.bf16.mxu0 0
    %874 = vmatpush1.bf16.msra.mxu0 0
    %875 = vmatprep.mubr.bf16.mxu0 0
    %876 = vmatmul.mubr.bf16.gmra.mrb[0].mxu0 %v832
    %v877 = vpop.f32.mrb[0].mxu0
    %v878 = vadd.f32 0.0, %v877
    %v879 = vpop.f32.mrb[0].mxu0
    %v880 = vadd.f32 0.0, %v879
    %v881 = vpop.f32.mrb[0].mxu0
    %v882 = vadd.f32 0.0, %v881
    %v883 = vpop.f32.mrb[0].mxu0
    %v884 = vadd.f32 0.0, %v883
    %885 = vmatprep.mubr.bf16.mxu0 0
    %886 = vmatmul.mubr.bf16.gmra.mrb[0].mxu0 %v835
    %v887 = vpop.f32.mrb[0].mxu0
    %v888 = vadd.f32 0.0, %v887
    %v889 = vpop.f32.mrb[0].mxu0
    %v890 = vadd.f32 0.0, %v889
    %v891 = vpop.f32.mrb[0].mxu0
    %v892 = vadd.f32 0.0, %v891
    %v893 = vpop.f32.mrb[0].mxu0
    %v894 = vadd.f32 0.0, %v893
    %895 = vmatprep.mubr.bf16.mxu0 0
    %896 = vmatmul.mubr.bf16.gmra.mrb[0].mxu0 %v838
    %v897 = vpop.f32.mrb[0].mxu0
    %v898 = vadd.f32 0.0, %v897
    %v899 = vpop.f32.mrb[0].mxu0
    %v900 = vadd.f32 0.0, %v899
    %v901 = vpop.f32.mrb[0].mxu0
    %v902 = vadd.f32 0.0, %v901
    %v903 = vpop.f32.mrb[0].mxu0
    %v904 = vadd.f32 0.0, %v903
    %905 = vmatprep.mubr.bf16.mxu0 0
    %906 = vmatmul.mubr.bf16.gmra.mrb[0].mxu0 %v841
    %v907 = vpop.f32.mrb[0].mxu0
    %v908 = vadd.f32 0.0, %v907
    %v909 = vpop.f32.mrb[0].mxu0
    %v910 = vadd.f32 0.0, %v909
    %v911 = vpop.f32.mrb[0].mxu0
    %v912 = vadd.f32 0.0, %v911
    %v913 = vpop.f32.mrb[0].mxu0
    %v914 = vadd.f32 0.0, %v913
    %915 = vdwg.mxu0
    %v916 = vadd.f32 %v148, %v878
    %v917 = vadd.f32 %v150, %v880
    %v918 = vadd.f32 %v152, %v882
    %v919 = vadd.f32 %v154, %v884
    %v920 = vadd.f32 %v158, %v888
    %v921 = vadd.f32 %v160, %v890
    %v922 = vadd.f32 %v162, %v892
    %v923 = vadd.f32 %v164, %v894
    %v924 = vadd.f32 %v898, 0.0
    %v925 = vadd.f32 %v900, 0.0
    %v926 = vadd.f32 %v902, 0.0
    %v927 = vadd.f32 %v904, 0.0
    %v928 = vadd.f32 %v908, 0.0
    %v929 = vadd.f32 %v910, 0.0
    %v930 = vadd.f32 %v912, 0.0
    %v931 = vadd.f32 %v914, 0.0
    %s932 = scalar_lea.vmem %s5, 64
    %v933 = vld [vmem:[%s932] sm:$0xff]
    %v934 = vld [vmem:[%s932 + $0x8] sm:$0xff]
    %v935 = vld [vmem:[%s932 + $0x10] sm:$0xff]
    %v936 = vld [vmem:[%s932 + $0x18] sm:$0xff]
    %v937 = vld [vmem:[%s932 + $0x20] sm:$0xff]
    %v938 = vld [vmem:[%s932 + $0x28] sm:$0xff]
    %v939 = vld [vmem:[%s932 + $0x30] sm:$0xff]
    %v940 = vld [vmem:[%s932 + $0x38] sm:$0xff]
    %942 = vset.pattern.permute.xlu0 0
    %943 = vperm.xlu0 %942, %v933
    %v944 = vpop.permute.xlu0 %943
    %947 = vset.pattern.permute.xlu0 0
    %948 = vperm.xlu0 %947, %v934
    %v949 = vpop.permute.xlu0 %948
    %952 = vset.pattern.permute.xlu0 0
    %953 = vperm.xlu0 %952, %v935
    %v954 = vpop.permute.xlu0 %953
    %957 = vset.pattern.permute.xlu0 0
    %958 = vperm.xlu0 %957, %v936
    %v959 = vpop.permute.xlu0 %958
    %962 = vset.pattern.permute.xlu0 0
    %963 = vperm.xlu0 %962, %v937
    %v964 = vpop.permute.xlu0 %963
    %967 = vset.pattern.permute.xlu0 0
    %968 = vperm.xlu0 %967, %v938
    %v969 = vpop.permute.xlu0 %968
    %972 = vset.pattern.permute.xlu0 0
    %973 = vperm.xlu0 %972, %v939
    %v974 = vpop.permute.xlu0 %973
    %977 = vset.pattern.permute.xlu0 0
    %978 = vperm.xlu0 %977, %v940
    %v979 = vpop.permute.xlu0 %978
    %v981 = vmul.f32 %v944, %v219
    %v982 = vmul.f32 %v944, %v223
    %v983 = vmul.f32 %v949, %v219
    %v984 = vmul.f32 %v949, %v223
    %v985 = vmul.f32 %v954, %v219
    %v986 = vmul.f32 %v954, %v223
    %v987 = vmul.f32 %v959, %v219
    %v988 = vmul.f32 %v959, %v223
    %v989 = vmul.f32 %v964, %v219
    %v990 = vmul.f32 %v964, %v223
    %v991 = vmul.f32 %v969, %v219
    %v992 = vmul.f32 %v969, %v223
    %v993 = vmul.f32 %v974, %v219
    %v994 = vmul.f32 %v974, %v223
    %v995 = vmul.f32 %v979, %v219
    %v996 = vmul.f32 %v979, %v223
    %997 = vrot.lane.b32.xlu0 %v916, 5
    %v998 = vpop.permute.xlu0 %997
    %999 = vrot.lane.b32.xlu0 %v918, 5
    %v1000 = vpop.permute.xlu0 %999
    %1001 = vrot.lane.b32.xlu0 %v920, 5
    %v1002 = vpop.permute.xlu0 %1001
    %1003 = vrot.lane.b32.xlu0 %v922, 5
    %v1004 = vpop.permute.xlu0 %1003
    %1005 = vrot.lane.b32.xlu0 %v917, 5
    %v1006 = vpop.permute.xlu0 %1005
    %1007 = vrot.lane.b32.xlu0 %v919, 5
    %v1008 = vpop.permute.xlu0 %1007
    %1009 = vrot.lane.b32.xlu0 %v921, 5
    %v1010 = vpop.permute.xlu0 %1009
    %1011 = vrot.lane.b32.xlu0 %v923, 5
    %v1012 = vpop.permute.xlu0 %1011
    %vm1013 = vcmp.lt.s32.totalorder %v41, 5
    %v1014 = vsel %vm1013, %v998, %v1006
    %v1015 = vsel %vm1013, %v1000, %v1008
    %v1016 = vsel %vm1013, %v1002, %v1010
    %v1017 = vsel %vm1013, %v1004, %v1012
    %v1018 = vsel %vm1013, %v1006, %v998
    %v1019 = vsel %vm1013, %v1008, %v1000
    %v1020 = vsel %vm1013, %v1010, %v1002
    %v1021 = vsel %vm1013, %v1012, %v1004
    %v1022 = vsel %vm51, %v1018, 0.0
    %v1023 = vsel %vm52, %v1014, 0.0
    %v1024 = vsel %vm51, %v1019, 0.0
    %v1025 = vsel %vm52, %v1015, 0.0
    %v1026 = vsel %vm51, %v1020, 0.0
    %v1027 = vsel %vm52, %v1016, 0.0
    %v1028 = vsel %vm51, %v1021, 0.0
    %v1029 = vsel %vm52, %v1017, 0.0
    %s1030 = scalar_lea.vmem %s4, 96
    %v1031 = vld [vmem:[%s1030] sm:$0xf]
    %v1032 = vld [vmem:[%s1030 + $0x4] sm:$0xf]
    %v1033 = vld [vmem:[%s1030 + $0x8] sm:$0xf]
    %v1034 = vld [vmem:[%s1030 + $0xc] sm:$0xf]
    %v1035 = vld [vmem:[%s1030 + $0x10] sm:$0xf]
    %v1036 = vld [vmem:[%s1030 + $0x14] sm:$0xf]
    %v1037 = vld [vmem:[%s1030 + $0x18] sm:$0xf]
    %v1038 = vld [vmem:[%s1030 + $0x1c] sm:$0xf]
    %v1039 = vpack.c.bf16 %v1024, %v1022
    %v1040 = vpack.c.bf16 %v1025, %v1023
    %v1041 = vpack.c.bf16 %v1028, %v1026
    %v1042 = vpack.c.bf16 %v1029, %v1027
    %v1051 = vunpack.c.l.b16 %v1031
    %v1052 = vunpack.c.l.b16 %v1032
    %v1053 = vunpack.c.l.b16 %v1033
    %v1054 = vunpack.c.l.b16 %v1034
    %v1055 = vunpack.c.l.b16 %v1035
    %v1056 = vunpack.c.l.b16 %v1036
    %v1057 = vunpack.c.l.b16 %v1037
    %v1058 = vunpack.c.l.b16 %v1038
    %v1059 = vpack.c.b16 %v1052, %v1051
    %v1060 = vpack.c.b16 %v1054, %v1053
    %v1061 = vpack.c.b16 %v1056, %v1055
    %v1062 = vpack.c.b16 %v1058, %v1057
    %v1064 = vsel %vm307, %v1059, 0
    %v1067 = vsel %vm307, %v1060, 0
    %v1070 = vsel %vm307, %v1061, 0
    %v1073 = vsel %vm307, %v1062, 0
    %1075 = vmatprep.subr.bf16.mxu0 %v1040
    %1076 = vmatpush1.bf16.msra.mxu0 %v1039
    %1077 = vmatprep.subr.bf16.mxu0 %v1042
    %1078 = vmatpush1.bf16.msra.mxu0 %v1041
    %1079 = vmatprep.subr.bf16.mxu0 0
    %1080 = vmatpush1.bf16.msra.mxu0 0
    %1081 = vmatprep.subr.bf16.mxu0 0
    %1082 = vmatpush1.bf16.msra.mxu0 0
    %1083 = vmatprep.subr.bf16.mxu0 0
    %1084 = vmatpush1.bf16.msra.mxu0 0
    %1085 = vmatprep.subr.bf16.mxu0 0
    %1086 = vmatpush1.bf16.msra.mxu0 0
    %1087 = vmatprep.subr.bf16.mxu0 0
    %1088 = vmatpush1.bf16.msra.mxu0 0
    %1089 = vmatprep.subr.bf16.mxu0 0
    %1090 = vmatpush1.bf16.msra.mxu0 0
    %1091 = vmatprep.subr.bf16.mxu0 0
    %1092 = vmatpush1.bf16.msra.mxu0 0
    %1093 = vmatprep.subr.bf16.mxu0 0
    %1094 = vmatpush1.bf16.msra.mxu0 0
    %1095 = vmatprep.subr.bf16.mxu0 0
    %1096 = vmatpush1.bf16.msra.mxu0 0
    %1097 = vmatprep.subr.bf16.mxu0 0
    %1098 = vmatpush1.bf16.msra.mxu0 0
    %1099 = vmatprep.subr.bf16.mxu0 0
    %1100 = vmatpush1.bf16.msra.mxu0 0
    %1101 = vmatprep.subr.bf16.mxu0 0
    %1102 = vmatpush1.bf16.msra.mxu0 0
    %1103 = vmatprep.subr.bf16.mxu0 0
    %1104 = vmatpush1.bf16.msra.mxu0 0
    %1105 = vmatprep.subr.bf16.mxu0 0
    %1106 = vmatpush1.bf16.msra.mxu0 0
    %1107 = vmatprep.mubr.bf16.mxu0 0
    %1108 = vmatmul.mubr.bf16.gmra.mrb[0].mxu0 %v1064
    %v1109 = vpop.f32.mrb[0].mxu0
    %v1110 = vadd.f32 0.0, %v1109
    %v1111 = vpop.f32.mrb[0].mxu0
    %v1112 = vadd.f32 0.0, %v1111
    %v1113 = vpop.f32.mrb[0].mxu0
    %v1114 = vadd.f32 0.0, %v1113
    %v1115 = vpop.f32.mrb[0].mxu0
    %v1116 = vadd.f32 0.0, %v1115
    %1117 = vmatprep.mubr.bf16.mxu0 0
    %1118 = vmatmul.mubr.bf16.gmra.mrb[0].mxu0 %v1067
    %v1119 = vpop.f32.mrb[0].mxu0
    %v1120 = vadd.f32 0.0, %v1119
    %v1121 = vpop.f32.mrb[0].mxu0
    %v1122 = vadd.f32 0.0, %v1121
    %v1123 = vpop.f32.mrb[0].mxu0
    %v1124 = vadd.f32 0.0, %v1123
    %v1125 = vpop.f32.mrb[0].mxu0
    %v1126 = vadd.f32 0.0, %v1125
    %1127 = vmatprep.mubr.bf16.mxu0 0
    %1128 = vmatmul.mubr.bf16.gmra.mrb[0].mxu0 %v1070
    %v1129 = vpop.f32.mrb[0].mxu0
    %v1130 = vadd.f32 0.0, %v1129
    %v1131 = vpop.f32.mrb[0].mxu0
    %v1132 = vadd.f32 0.0, %v1131
    %v1133 = vpop.f32.mrb[0].mxu0
    %v1134 = vadd.f32 0.0, %v1133
    %v1135 = vpop.f32.mrb[0].mxu0
    %v1136 = vadd.f32 0.0, %v1135
    %1137 = vmatprep.mubr.bf16.mxu0 0
    %1138 = vmatmul.mubr.bf16.gmra.mrb[0].mxu0 %v1073
    %v1139 = vpop.f32.mrb[0].mxu0
    %v1140 = vadd.f32 0.0, %v1139
    %v1141 = vpop.f32.mrb[0].mxu0
    %v1142 = vadd.f32 0.0, %v1141
    %v1143 = vpop.f32.mrb[0].mxu0
    %v1144 = vadd.f32 0.0, %v1143
    %v1145 = vpop.f32.mrb[0].mxu0
    %v1146 = vadd.f32 0.0, %v1145
    %1147 = vdwg.mxu0
    %v1148 = vadd.f32 %v981, %v1110
    %v1149 = vadd.f32 %v982, %v1112
    %v1150 = vadd.f32 %v983, %v1114
    %v1151 = vadd.f32 %v984, %v1116
    %v1152 = vadd.f32 %v985, %v1120
    %v1153 = vadd.f32 %v986, %v1122
    %v1154 = vadd.f32 %v987, %v1124
    %v1155 = vadd.f32 %v988, %v1126
    %v1156 = vadd.f32 %v989, %v1130
    %v1157 = vadd.f32 %v990, %v1132
    %v1158 = vadd.f32 %v991, %v1134
    %v1159 = vadd.f32 %v992, %v1136
    %v1160 = vadd.f32 %v993, %v1140
    %v1161 = vadd.f32 %v994, %v1142
    %v1162 = vadd.f32 %v995, %v1144
    %v1163 = vadd.f32 %v996, %v1146
    %1164 = vrot.lane.b32.xlu0 %v916, 3
    %v1165 = vpop.permute.xlu0 %1164
    %1166 = vrot.lane.b32.xlu0 %v918, 3
    %v1167 = vpop.permute.xlu0 %1166
    %1168 = vrot.lane.b32.xlu0 %v920, 3
    %v1169 = vpop.permute.xlu0 %1168
    %1170 = vrot.lane.b32.xlu0 %v922, 3
    %v1171 = vpop.permute.xlu0 %1170
    %1172 = vrot.lane.b32.xlu0 %v917, 3
    %v1173 = vpop.permute.xlu0 %1172
    %1174 = vrot.lane.b32.xlu0 %v919, 3
    %v1175 = vpop.permute.xlu0 %1174
    %1176 = vrot.lane.b32.xlu0 %v921, 3
    %v1177 = vpop.permute.xlu0 %1176
    %1178 = vrot.lane.b32.xlu0 %v923, 3
    %v1179 = vpop.permute.xlu0 %1178
    %v1180 = vsel %vm258, %v1165, %v1173
    %v1181 = vsel %vm258, %v1167, %v1175
    %v1182 = vsel %vm258, %v1169, %v1177
    %v1183 = vsel %vm258, %v1171, %v1179
    %v1184 = vsel %vm258, %v1173, %v1165
    %v1185 = vsel %vm258, %v1175, %v1167
    %v1186 = vsel %vm258, %v1177, %v1169
    %v1187 = vsel %vm258, %v1179, %v1171
    %v1188 = vsel %vm49, %v1184, 0.0
    %v1189 = vsel %vm50, %v1180, 0.0
    %v1190 = vsel %vm49, %v1185, 0.0
    %v1191 = vsel %vm50, %v1181, 0.0
    %v1192 = vsel %vm49, %v1186, 0.0
    %v1193 = vsel %vm50, %v1182, 0.0
    %v1194 = vsel %vm49, %v1187, 0.0
    %v1195 = vsel %vm50, %v1183, 0.0
    %s1196 = scalar_lea.vmem %s4, 128
    %v1197 = vld [vmem:[%s1196] sm:$0xf]
    %v1198 = vld [vmem:[%s1196 + $0x4] sm:$0xf]
    %v1199 = vld [vmem:[%s1196 + $0x8] sm:$0xf]
    %v1200 = vld [vmem:[%s1196 + $0xc] sm:$0xf]
    %v1201 = vld [vmem:[%s1196 + $0x10] sm:$0xf]
    %v1202 = vld [vmem:[%s1196 + $0x14] sm:$0xf]
    %v1203 = vld [vmem:[%s1196 + $0x18] sm:$0xf]
    %v1204 = vld [vmem:[%s1196 + $0x1c] sm:$0xf]
    %v1205 = vpack.c.bf16 %v1190, %v1188
    %v1206 = vpack.c.bf16 %v1191, %v1189
    %v1207 = vpack.c.bf16 %v1194, %v1192
    %v1208 = vpack.c.bf16 %v1195, %v1193
    %v1217 = vunpack.c.l.b16 %v1197
    %v1218 = vunpack.c.l.b16 %v1198
    %v1219 = vunpack.c.l.b16 %v1199
    %v1220 = vunpack.c.l.b16 %v1200
    %v1221 = vunpack.c.l.b16 %v1201
    %v1222 = vunpack.c.l.b16 %v1202
    %v1223 = vunpack.c.l.b16 %v1203
    %v1224 = vunpack.c.l.b16 %v1204
    %v1225 = vpack.c.b16 %v1218, %v1217
    %v1226 = vpack.c.b16 %v1220, %v1219
    %v1227 = vpack.c.b16 %v1222, %v1221
    %v1228 = vpack.c.b16 %v1224, %v1223
    %v1230 = vsel %vm307, %v1225, 0
    %v1233 = vsel %vm307, %v1226, 0
    %v1236 = vsel %vm307, %v1227, 0
    %v1239 = vsel %vm307, %v1228, 0
    %1241 = vmatprep.subr.bf16.mxu0 %v1206
    %1242 = vmatpush1.bf16.msra.mxu0 %v1205
    %1243 = vmatprep.subr.bf16.mxu0 %v1208
    %1244 = vmatpush1.bf16.msra.mxu0 %v1207
    %1245 = vmatprep.subr.bf16.mxu0 0
    %1246 = vmatpush1.bf16.msra.mxu0 0
    %1247 = vmatprep.subr.bf16.mxu0 0
    %1248 = vmatpush1.bf16.msra.mxu0 0
    %1249 = vmatprep.subr.bf16.mxu0 0
    %1250 = vmatpush1.bf16.msra.mxu0 0
    %1251 = vmatprep.subr.bf16.mxu0 0
    %1252 = vmatpush1.bf16.msra.mxu0 0
    %1253 = vmatprep.subr.bf16.mxu0 0
    %1254 = vmatpush1.bf16.msra.mxu0 0
    %1255 = vmatprep.subr.bf16.mxu0 0
    %1256 = vmatpush1.bf16.msra.mxu0 0
    %1257 = vmatprep.subr.bf16.mxu0 0
    %1258 = vmatpush1.bf16.msra.mxu0 0
    %1259 = vmatprep.subr.bf16.mxu0 0
    %1260 = vmatpush1.bf16.msra.mxu0 0
    %1261 = vmatprep.subr.bf16.mxu0 0
    %1262 = vmatpush1.bf16.msra.mxu0 0
    %1263 = vmatprep.subr.bf16.mxu0 0
    %1264 = vmatpush1.bf16.msra.mxu0 0
    %1265 = vmatprep.subr.bf16.mxu0 0
    %1266 = vmatpush1.bf16.msra.mxu0 0
    %1267 = vmatprep.subr.bf16.mxu0 0
    %1268 = vmatpush1.bf16.msra.mxu0 0
    %1269 = vmatprep.subr.bf16.mxu0 0
    %1270 = vmatpush1.bf16.msra.mxu0 0
    %1271 = vmatprep.subr.bf16.mxu0 0
    %1272 = vmatpush1.bf16.msra.mxu0 0
    %1273 = vmatprep.mubr.bf16.mxu0 0
    %1274 = vmatmul.mubr.bf16.gmra.mrb[0].mxu0 %v1230
    %v1275 = vpop.f32.mrb[0].mxu0
    %v1276 = vadd.f32 0.0, %v1275
    %v1277 = vpop.f32.mrb[0].mxu0
    %v1278 = vadd.f32 0.0, %v1277
    %v1279 = vpop.f32.mrb[0].mxu0
    %v1280 = vadd.f32 0.0, %v1279
    %v1281 = vpop.f32.mrb[0].mxu0
    %v1282 = vadd.f32 0.0, %v1281
    %1283 = vmatprep.mubr.bf16.mxu0 0
    %1284 = vmatmul.mubr.bf16.gmra.mrb[0].mxu0 %v1233
    %v1285 = vpop.f32.mrb[0].mxu0
    %v1286 = vadd.f32 0.0, %v1285
    %v1287 = vpop.f32.mrb[0].mxu0
    %v1288 = vadd.f32 0.0, %v1287
    %v1289 = vpop.f32.mrb[0].mxu0
    %v1290 = vadd.f32 0.0, %v1289
    %v1291 = vpop.f32.mrb[0].mxu0
    %v1292 = vadd.f32 0.0, %v1291
    %1293 = vmatprep.mubr.bf16.mxu0 0
    %1294 = vmatmul.mubr.bf16.gmra.mrb[0].mxu0 %v1236
    %v1295 = vpop.f32.mrb[0].mxu0
    %v1296 = vadd.f32 0.0, %v1295
    %v1297 = vpop.f32.mrb[0].mxu0
    %v1298 = vadd.f32 0.0, %v1297
    %v1299 = vpop.f32.mrb[0].mxu0
    %v1300 = vadd.f32 0.0, %v1299
    %v1301 = vpop.f32.mrb[0].mxu0
    %v1302 = vadd.f32 0.0, %v1301
    %1303 = vmatprep.mubr.bf16.mxu0 0
    %1304 = vmatmul.mubr.bf16.gmra.mrb[0].mxu0 %v1239
    %v1305 = vpop.f32.mrb[0].mxu0
    %v1306 = vadd.f32 0.0, %v1305
    %v1307 = vpop.f32.mrb[0].mxu0
    %v1308 = vadd.f32 0.0, %v1307
    %v1309 = vpop.f32.mrb[0].mxu0
    %v1310 = vadd.f32 0.0, %v1309
    %v1311 = vpop.f32.mrb[0].mxu0
    %v1312 = vadd.f32 0.0, %v1311
    %1313 = vdwg.mxu0
    %v1314 = vadd.f32 %v1148, %v1276
    %v1315 = vadd.f32 %v1149, %v1278
    %v1316 = vadd.f32 %v1150, %v1280
    %v1317 = vadd.f32 %v1151, %v1282
    %v1318 = vadd.f32 %v1152, %v1286
    %v1319 = vadd.f32 %v1153, %v1288
    %v1320 = vadd.f32 %v1154, %v1290
    %v1321 = vadd.f32 %v1155, %v1292
    %v1322 = vadd.f32 %v1156, %v1296
    %v1323 = vadd.f32 %v1157, %v1298
    %v1324 = vadd.f32 %v1158, %v1300
    %v1325 = vadd.f32 %v1159, %v1302
    %v1326 = vadd.f32 %v1160, %v1306
    %v1327 = vadd.f32 %v1161, %v1308
    %v1328 = vadd.f32 %v1162, %v1310
    %v1329 = vadd.f32 %v1163, %v1312
    %1330 = vrot.lane.b32.xlu0 %v916, 1
    %v1331 = vpop.permute.xlu0 %1330
    %1332 = vrot.lane.b32.xlu0 %v918, 1
    %v1333 = vpop.permute.xlu0 %1332
    %1334 = vrot.lane.b32.xlu0 %v920, 1
    %v1335 = vpop.permute.xlu0 %1334
    %1336 = vrot.lane.b32.xlu0 %v922, 1
    %v1337 = vpop.permute.xlu0 %1336
    %1338 = vrot.lane.b32.xlu0 %v917, 1
    %v1339 = vpop.permute.xlu0 %1338
    %1340 = vrot.lane.b32.xlu0 %v919, 1
    %v1341 = vpop.permute.xlu0 %1340
    %1342 = vrot.lane.b32.xlu0 %v921, 1
    %v1343 = vpop.permute.xlu0 %1342
    %1344 = vrot.lane.b32.xlu0 %v923, 1
    %v1345 = vpop.permute.xlu0 %1344
    %v1346 = vsel %vm592, %v1331, %v1339
    %v1347 = vsel %vm592, %v1333, %v1341
    %v1348 = vsel %vm592, %v1335, %v1343
    %v1349 = vsel %vm592, %v1337, %v1345
    %v1350 = vsel %vm592, %v1339, %v1331
    %v1351 = vsel %vm592, %v1341, %v1333
    %v1352 = vsel %vm592, %v1343, %v1335
    %v1353 = vsel %vm592, %v1345, %v1337
    %v1354 = vsel %vm45, %v1350, 0.0
    %v1355 = vsel %vm46, %v1346, 0.0
    %v1356 = vsel %vm45, %v1351, 0.0
    %v1357 = vsel %vm46, %v1347, 0.0
    %v1358 = vsel %vm45, %v1352, 0.0
    %v1359 = vsel %vm46, %v1348, 0.0
    %v1360 = vsel %vm45, %v1353, 0.0
    %v1361 = vsel %vm46, %v1349, 0.0
    %s1362 = scalar_lea.vmem %s4, 160
    %v1363 = vld [vmem:[%s1362] sm:$0xf]
    %v1364 = vld [vmem:[%s1362 + $0x4] sm:$0xf]
    %v1365 = vld [vmem:[%s1362 + $0x8] sm:$0xf]
    %v1366 = vld [vmem:[%s1362 + $0xc] sm:$0xf]
    %v1367 = vld [vmem:[%s1362 + $0x10] sm:$0xf]
    %v1368 = vld [vmem:[%s1362 + $0x14] sm:$0xf]
    %v1369 = vld [vmem:[%s1362 + $0x18] sm:$0xf]
    %v1370 = vld [vmem:[%s1362 + $0x1c] sm:$0xf]
    %v1371 = vpack.c.bf16 %v1356, %v1354
    %v1372 = vpack.c.bf16 %v1357, %v1355
    %v1373 = vpack.c.bf16 %v1360, %v1358
    %v1374 = vpack.c.bf16 %v1361, %v1359
    %v1383 = vunpack.c.l.b16 %v1363
    %v1384 = vunpack.c.l.b16 %v1364
    %v1385 = vunpack.c.l.b16 %v1365
    %v1386 = vunpack.c.l.b16 %v1366
    %v1387 = vunpack.c.l.b16 %v1367
    %v1388 = vunpack.c.l.b16 %v1368
    %v1389 = vunpack.c.l.b16 %v1369
    %v1390 = vunpack.c.l.b16 %v1370
    %v1391 = vpack.c.b16 %v1384, %v1383
    %v1392 = vpack.c.b16 %v1386, %v1385
    %v1393 = vpack.c.b16 %v1388, %v1387
    %v1394 = vpack.c.b16 %v1390, %v1389
    %v1396 = vsel %vm307, %v1391, 0
    %v1399 = vsel %vm307, %v1392, 0
    %v1402 = vsel %vm307, %v1393, 0
    %v1405 = vsel %vm307, %v1394, 0
    %1407 = vmatprep.subr.bf16.mxu0 %v1372
    %1408 = vmatpush1.bf16.msra.mxu0 %v1371
    %1409 = vmatprep.subr.bf16.mxu0 %v1374
    %1410 = vmatpush1.bf16.msra.mxu0 %v1373
    %1411 = vmatprep.subr.bf16.mxu0 0
    %1412 = vmatpush1.bf16.msra.mxu0 0
    %1413 = vmatprep.subr.bf16.mxu0 0
    %1414 = vmatpush1.bf16.msra.mxu0 0
    %1415 = vmatprep.subr.bf16.mxu0 0
    %1416 = vmatpush1.bf16.msra.mxu0 0
    %1417 = vmatprep.subr.bf16.mxu0 0
    %1418 = vmatpush1.bf16.msra.mxu0 0
    %1419 = vmatprep.subr.bf16.mxu0 0
    %1420 = vmatpush1.bf16.msra.mxu0 0
    %1421 = vmatprep.subr.bf16.mxu0 0
    %1422 = vmatpush1.bf16.msra.mxu0 0
    %1423 = vmatprep.subr.bf16.mxu0 0
    %1424 = vmatpush1.bf16.msra.mxu0 0
    %1425 = vmatprep.subr.bf16.mxu0 0
    %1426 = vmatpush1.bf16.msra.mxu0 0
    %1427 = vmatprep.subr.bf16.mxu0 0
    %1428 = vmatpush1.bf16.msra.mxu0 0
    %1429 = vmatprep.subr.bf16.mxu0 0
    %1430 = vmatpush1.bf16.msra.mxu0 0
    %1431 = vmatprep.subr.bf16.mxu0 0
    %1432 = vmatpush1.bf16.msra.mxu0 0
    %1433 = vmatprep.subr.bf16.mxu0 0
    %1434 = vmatpush1.bf16.msra.mxu0 0
    %1435 = vmatprep.subr.bf16.mxu0 0
    %1436 = vmatpush1.bf16.msra.mxu0 0
    %1437 = vmatprep.subr.bf16.mxu0 0
    %1438 = vmatpush1.bf16.msra.mxu0 0
    %1439 = vmatprep.mubr.bf16.mxu0 0
    %1440 = vmatmul.mubr.bf16.gmra.mrb[0].mxu0 %v1396
    %v1441 = vpop.f32.mrb[0].mxu0
    %v1442 = vadd.f32 0.0, %v1441
    %v1443 = vpop.f32.mrb[0].mxu0
    %v1444 = vadd.f32 0.0, %v1443
    %v1445 = vpop.f32.mrb[0].mxu0
    %v1446 = vadd.f32 0.0, %v1445
    %v1447 = vpop.f32.mrb[0].mxu0
    %v1448 = vadd.f32 0.0, %v1447
    %1449 = vmatprep.mubr.bf16.mxu0 0
    %1450 = vmatmul.mubr.bf16.gmra.mrb[0].mxu0 %v1399
    %v1451 = vpop.f32.mrb[0].mxu0
    %v1452 = vadd.f32 0.0, %v1451
    %v1453 = vpop.f32.mrb[0].mxu0
    %v1454 = vadd.f32 0.0, %v1453
    %v1455 = vpop.f32.mrb[0].mxu0
    %v1456 = vadd.f32 0.0, %v1455
    %v1457 = vpop.f32.mrb[0].mxu0
    %v1458 = vadd.f32 0.0, %v1457
    %1459 = vmatprep.mubr.bf16.mxu0 0
    %1460 = vmatmul.mubr.bf16.gmra.mrb[0].mxu0 %v1402
    %v1461 = vpop.f32.mrb[0].mxu0
    %v1462 = vadd.f32 0.0, %v1461
    %v1463 = vpop.f32.mrb[0].mxu0
    %v1464 = vadd.f32 0.0, %v1463
    %v1465 = vpop.f32.mrb[0].mxu0
    %v1466 = vadd.f32 0.0, %v1465
    %v1467 = vpop.f32.mrb[0].mxu0
    %v1468 = vadd.f32 0.0, %v1467
    %1469 = vmatprep.mubr.bf16.mxu0 0
    %1470 = vmatmul.mubr.bf16.gmra.mrb[0].mxu0 %v1405
    %v1471 = vpop.f32.mrb[0].mxu0
    %v1472 = vadd.f32 0.0, %v1471
    %v1473 = vpop.f32.mrb[0].mxu0
    %v1474 = vadd.f32 0.0, %v1473
    %v1475 = vpop.f32.mrb[0].mxu0
    %v1476 = vadd.f32 0.0, %v1475
    %v1477 = vpop.f32.mrb[0].mxu0
    %v1478 = vadd.f32 0.0, %v1477
    %1479 = vdwg.mxu0
    %v1480 = vadd.f32 %v1314, %v1442
    %v1481 = vadd.f32 %v1315, %v1444
    %v1482 = vadd.f32 %v1316, %v1446
    %v1483 = vadd.f32 %v1317, %v1448
    %v1484 = vadd.f32 %v1318, %v1452
    %v1485 = vadd.f32 %v1319, %v1454
    %v1486 = vadd.f32 %v1320, %v1456
    %v1487 = vadd.f32 %v1321, %v1458
    %v1488 = vadd.f32 %v1322, %v1462
    %v1489 = vadd.f32 %v1323, %v1464
    %v1490 = vadd.f32 %v1324, %v1466
    %v1491 = vadd.f32 %v1325, %v1468
    %v1492 = vadd.f32 %v1326, %v1472
    %v1493 = vadd.f32 %v1327, %v1474
    %v1494 = vadd.f32 %v1328, %v1476
    %v1495 = vadd.f32 %v1329, %v1478
    %v1496 = vxor.u32 %v1488, 2147483648
    %v1497 = vxor.u32 %v1489, 2147483648
    %v1498 = vxor.u32 %v1490, 2147483648
    %v1499 = vxor.u32 %v1491, 2147483648
    %v1500 = vxor.u32 %v1492, 2147483648
    %v1501 = vxor.u32 %v1493, 2147483648
    %v1502 = vxor.u32 %v1494, 2147483648
    %v1503 = vxor.u32 %v1495, 2147483648
    %v1504 = vmul.f32 %v1496, 1.442695
    %v1505 = vpow.pop %v1504
    %v1506 = vmul.f32 %v1497, 1.442695
    %v1507 = vpow.pop %v1506
    %v1508 = vmul.f32 %v1498, 1.442695
    %v1509 = vpow.pop %v1508
    %v1510 = vmul.f32 %v1499, 1.442695
    %v1511 = vpow.pop %v1510
    %v1512 = vmul.f32 %v1500, 1.442695
    %v1513 = vpow.pop %v1512
    %v1514 = vmul.f32 %v1501, 1.442695
    %v1515 = vpow.pop %v1514
    %v1516 = vmul.f32 %v1502, 1.442695
    %v1517 = vpow.pop %v1516
    %v1518 = vmul.f32 %v1503, 1.442695
    %v1519 = vpow.pop %v1518
    %v1520 = vadd.f32 %v1505, 1.0
    %v1521 = vadd.f32 %v1507, 1.0
    %v1522 = vadd.f32 %v1509, 1.0
    %v1523 = vadd.f32 %v1511, 1.0
    %v1524 = vadd.f32 %v1513, 1.0
    %v1525 = vadd.f32 %v1515, 1.0
    %v1526 = vadd.f32 %v1517, 1.0
    %v1527 = vadd.f32 %v1519, 1.0
    %v1528 = vrcp.pop %v1520
    %v1529 = vmul.f32 1.0, %v1528
    %v1530 = vrcp.pop %v1521
    %v1531 = vmul.f32 1.0, %v1530
    %v1532 = vrcp.pop %v1522
    %v1533 = vmul.f32 1.0, %v1532
    %v1534 = vrcp.pop %v1523
    %v1535 = vmul.f32 1.0, %v1534
    %v1536 = vrcp.pop %v1524
    %v1537 = vmul.f32 1.0, %v1536
    %v1538 = vrcp.pop %v1525
    %v1539 = vmul.f32 1.0, %v1538
    %v1540 = vrcp.pop %v1526
    %v1541 = vmul.f32 1.0, %v1540
    %v1542 = vrcp.pop %v1527
    %v1543 = vmul.f32 1.0, %v1542
    %v1544 = vmul.f32 %v1480, %v1529
    %v1545 = vmul.f32 %v1481, %v1531
    %v1546 = vmul.f32 %v1482, %v1533
    %v1547 = vmul.f32 %v1483, %v1535
    %v1548 = vmul.f32 %v1484, %v1537
    %v1549 = vmul.f32 %v1485, %v1539
    %v1550 = vmul.f32 %v1486, %v1541
    %v1551 = vmul.f32 %v1487, %v1543
    %s1552 = scalar_lea.vmem %s6, 32
    %v1553 = vld [vmem:[%s1552] sm:$0xf]
    %v1554 = vld [vmem:[%s1552 + $0x4] sm:$0xf]
    %v1555 = vld [vmem:[%s1552 + $0x8] sm:$0xf]
    %v1556 = vld [vmem:[%s1552 + $0xc] sm:$0xf]
    %v1557 = vld [vmem:[%s1552 + $0x10] sm:$0xf]
    %v1558 = vld [vmem:[%s1552 + $0x14] sm:$0xf]
    %v1559 = vld [vmem:[%s1552 + $0x18] sm:$0xf]
    %v1560 = vld [vmem:[%s1552 + $0x1c] sm:$0xf]
    %v1561 = vpack.c.bf16 %v1546, %v1544
    %v1562 = vpack.c.bf16 %v1547, %v1545
    %v1563 = vpack.c.bf16 %v1550, %v1548
    %v1564 = vpack.c.bf16 %v1551, %v1549
    %v1573 = vunpack.c.l.b16 %v1553
    %v1574 = vunpack.c.l.b16 %v1554
    %v1575 = vunpack.c.l.b16 %v1555
    %v1576 = vunpack.c.l.b16 %v1556
    %v1577 = vunpack.c.l.b16 %v1557
    %v1578 = vunpack.c.l.b16 %v1558
    %v1579 = vunpack.c.l.b16 %v1559
    %v1580 = vunpack.c.l.b16 %v1560
    %v1581 = vpack.c.b16 %v1574, %v1573
    %v1582 = vpack.c.b16 %v1576, %v1575
    %v1583 = vpack.c.b16 %v1578, %v1577
    %v1584 = vpack.c.b16 %v1580, %v1579
    %v1586 = vsel %vm307, %v1581, 0
    %v1589 = vsel %vm307, %v1582, 0
    %v1592 = vsel %vm307, %v1583, 0
    %v1595 = vsel %vm307, %v1584, 0
    %1597 = vmatprep.subr.bf16.mxu0 %v1562
    %1598 = vmatpush1.bf16.msra.mxu0 %v1561
    %1599 = vmatprep.subr.bf16.mxu0 %v1564
    %1600 = vmatpush1.bf16.msra.mxu0 %v1563
    %1601 = vmatprep.subr.bf16.mxu0 0
    %1602 = vmatpush1.bf16.msra.mxu0 0
    %1603 = vmatprep.subr.bf16.mxu0 0
    %1604 = vmatpush1.bf16.msra.mxu0 0
    %1605 = vmatprep.subr.bf16.mxu0 0
    %1606 = vmatpush1.bf16.msra.mxu0 0
    %1607 = vmatprep.subr.bf16.mxu0 0
    %1608 = vmatpush1.bf16.msra.mxu0 0
    %1609 = vmatprep.subr.bf16.mxu0 0
    %1610 = vmatpush1.bf16.msra.mxu0 0
    %1611 = vmatprep.subr.bf16.mxu0 0
    %1612 = vmatpush1.bf16.msra.mxu0 0
    %1613 = vmatprep.subr.bf16.mxu0 0
    %1614 = vmatpush1.bf16.msra.mxu0 0
    %1615 = vmatprep.subr.bf16.mxu0 0
    %1616 = vmatpush1.bf16.msra.mxu0 0
    %1617 = vmatprep.subr.bf16.mxu0 0
    %1618 = vmatpush1.bf16.msra.mxu0 0
    %1619 = vmatprep.subr.bf16.mxu0 0
    %1620 = vmatpush1.bf16.msra.mxu0 0
    %1621 = vmatprep.subr.bf16.mxu0 0
    %1622 = vmatpush1.bf16.msra.mxu0 0
    %1623 = vmatprep.subr.bf16.mxu0 0
    %1624 = vmatpush1.bf16.msra.mxu0 0
    %1625 = vmatprep.subr.bf16.mxu0 0
    %1626 = vmatpush1.bf16.msra.mxu0 0
    %1627 = vmatprep.subr.bf16.mxu0 0
    %1628 = vmatpush1.bf16.msra.mxu0 0
    %1629 = vmatprep.mubr.bf16.mxu0 0
    %1630 = vmatmul.mubr.bf16.gmra.mrb[0].mxu0 %v1586
    %v1631 = vpop.f32.mrb[0].mxu0
    %v1632 = vadd.f32 0.0, %v1631
    %v1633 = vpop.f32.mrb[0].mxu0
    %v1634 = vadd.f32 0.0, %v1633
    %v1635 = vpop.f32.mrb[0].mxu0
    %v1636 = vadd.f32 0.0, %v1635
    %v1637 = vpop.f32.mrb[0].mxu0
    %v1638 = vadd.f32 0.0, %v1637
    %1639 = vmatprep.mubr.bf16.mxu0 0
    %1640 = vmatmul.mubr.bf16.gmra.mrb[0].mxu0 %v1589
    %v1641 = vpop.f32.mrb[0].mxu0
    %v1642 = vadd.f32 0.0, %v1641
    %v1643 = vpop.f32.mrb[0].mxu0
    %v1644 = vadd.f32 0.0, %v1643
    %v1645 = vpop.f32.mrb[0].mxu0
    %v1646 = vadd.f32 0.0, %v1645
    %v1647 = vpop.f32.mrb[0].mxu0
    %v1648 = vadd.f32 0.0, %v1647
    %1649 = vmatprep.mubr.bf16.mxu0 0
    %1650 = vmatmul.mubr.bf16.gmra.mrb[0].mxu0 %v1592
    %v1651 = vpop.f32.mrb[0].mxu0
    %v1652 = vadd.f32 0.0, %v1651
    %v1653 = vpop.f32.mrb[0].mxu0
    %v1654 = vadd.f32 0.0, %v1653
    %v1655 = vpop.f32.mrb[0].mxu0
    %v1656 = vadd.f32 0.0, %v1655
    %v1657 = vpop.f32.mrb[0].mxu0
    %v1658 = vadd.f32 0.0, %v1657
    %1659 = vmatprep.mubr.bf16.mxu0 0
    %1660 = vmatmul.mubr.bf16.gmra.mrb[0].mxu0 %v1595
    %v1661 = vpop.f32.mrb[0].mxu0
    %v1662 = vadd.f32 0.0, %v1661
    %v1663 = vpop.f32.mrb[0].mxu0
    %v1664 = vadd.f32 0.0, %v1663
    %v1665 = vpop.f32.mrb[0].mxu0
    %v1666 = vadd.f32 0.0, %v1665
    %v1667 = vpop.f32.mrb[0].mxu0
    %v1668 = vadd.f32 0.0, %v1667
    %1669 = vdwg.mxu0
    %v1670 = vadd.f32 %v1632, %v1544
    %v1671 = vadd.f32 %v1634, %v1545
    %v1672 = vadd.f32 %v1636, %v1546
    %v1673 = vadd.f32 %v1638, %v1547
    %v1674 = vadd.f32 %v1642, %v1548
    %v1675 = vadd.f32 %v1644, %v1549
    %v1676 = vadd.f32 %v1646, %v1550
    %v1677 = vadd.f32 %v1648, %v1551
    %v1678 = vadd.f32 %v924, %v1652
    %v1679 = vadd.f32 %v925, %v1654
    %v1680 = vadd.f32 %v926, %v1656
    %v1681 = vadd.f32 %v927, %v1658
    %v1682 = vadd.f32 %v928, %v1662
    %v1683 = vadd.f32 %v929, %v1664
    %v1684 = vadd.f32 %v930, %v1666
    %v1685 = vadd.f32 %v931, %v1668
    %s1686 = scalar_lea.vmem %s5, 128
    %v1687 = vld [vmem:[%s1686] sm:$0xff]
    %v1688 = vld [vmem:[%s1686 + $0x8] sm:$0xff]
    %v1689 = vld [vmem:[%s1686 + $0x10] sm:$0xff]
    %v1690 = vld [vmem:[%s1686 + $0x18] sm:$0xff]
    %v1691 = vld [vmem:[%s1686 + $0x20] sm:$0xff]
    %v1692 = vld [vmem:[%s1686 + $0x28] sm:$0xff]
    %v1693 = vld [vmem:[%s1686 + $0x30] sm:$0xff]
    %v1694 = vld [vmem:[%s1686 + $0x38] sm:$0xff]
    %1696 = vset.pattern.permute.xlu0 0
    %1697 = vperm.xlu0 %1696, %v1687
    %v1698 = vpop.permute.xlu0 %1697
    %1701 = vset.pattern.permute.xlu0 0
    %1702 = vperm.xlu0 %1701, %v1688
    %v1703 = vpop.permute.xlu0 %1702
    %1706 = vset.pattern.permute.xlu0 0
    %1707 = vperm.xlu0 %1706, %v1689
    %v1708 = vpop.permute.xlu0 %1707
    %1711 = vset.pattern.permute.xlu0 0
    %1712 = vperm.xlu0 %1711, %v1690
    %v1713 = vpop.permute.xlu0 %1712
    %1716 = vset.pattern.permute.xlu0 0
    %1717 = vperm.xlu0 %1716, %v1691
    %v1718 = vpop.permute.xlu0 %1717
    %1721 = vset.pattern.permute.xlu0 0
    %1722 = vperm.xlu0 %1721, %v1692
    %v1723 = vpop.permute.xlu0 %1722
    %1726 = vset.pattern.permute.xlu0 0
    %1727 = vperm.xlu0 %1726, %v1693
    %v1728 = vpop.permute.xlu0 %1727
    %1731 = vset.pattern.permute.xlu0 0
    %1732 = vperm.xlu0 %1731, %v1694
    %v1733 = vpop.permute.xlu0 %1732
    %v1735 = vmul.f32 %v1698, %v219
    %v1736 = vmul.f32 %v1698, %v223
    %v1737 = vmul.f32 %v1703, %v219
    %v1738 = vmul.f32 %v1703, %v223
    %v1739 = vmul.f32 %v1708, %v219
    %v1740 = vmul.f32 %v1708, %v223
    %v1741 = vmul.f32 %v1713, %v219
    %v1742 = vmul.f32 %v1713, %v223
    %v1743 = vmul.f32 %v1718, %v219
    %v1744 = vmul.f32 %v1718, %v223
    %v1745 = vmul.f32 %v1723, %v219
    %v1746 = vmul.f32 %v1723, %v223
    %v1747 = vmul.f32 %v1728, %v219
    %v1748 = vmul.f32 %v1728, %v223
    %v1749 = vmul.f32 %v1733, %v219
    %v1750 = vmul.f32 %v1733, %v223
    %1751 = vrot.lane.b32.xlu0 %v1670, 9
    %v1752 = vpop.permute.xlu0 %1751
    %1753 = vrot.lane.b32.xlu0 %v1672, 9
    %v1754 = vpop.permute.xlu0 %1753
    %1755 = vrot.lane.b32.xlu0 %v1674, 9
    %v1756 = vpop.permute.xlu0 %1755
    %1757 = vrot.lane.b32.xlu0 %v1676, 9
    %v1758 = vpop.permute.xlu0 %1757
    %1759 = vrot.lane.b32.xlu0 %v1671, 9
    %v1760 = vpop.permute.xlu0 %1759
    %1761 = vrot.lane.b32.xlu0 %v1673, 9
    %v1762 = vpop.permute.xlu0 %1761
    %1763 = vrot.lane.b32.xlu0 %v1675, 9
    %v1764 = vpop.permute.xlu0 %1763
    %1765 = vrot.lane.b32.xlu0 %v1677, 9
    %v1766 = vpop.permute.xlu0 %1765
    %vm1767 = vcmp.lt.s32.totalorder %v41, 9
    %v1768 = vsel %vm1767, %v1752, %v1760
    %v1769 = vsel %vm1767, %v1754, %v1762
    %v1770 = vsel %vm1767, %v1756, %v1764
    %v1771 = vsel %vm1767, %v1758, %v1766
    %v1772 = vsel %vm1767, %v1760, %v1752
    %v1773 = vsel %vm1767, %v1762, %v1754
    %v1774 = vsel %vm1767, %v1764, %v1756
    %v1775 = vsel %vm1767, %v1766, %v1758
    %v1776 = vsel %vm53, %v1772, 0.0
    %v1777 = vsel %vm54, %v1768, 0.0
    %v1778 = vsel %vm53, %v1773, 0.0
    %v1779 = vsel %vm54, %v1769, 0.0
    %v1780 = vsel %vm53, %v1774, 0.0
    %v1781 = vsel %vm54, %v1770, 0.0
    %v1782 = vsel %vm53, %v1775, 0.0
    %v1783 = vsel %vm54, %v1771, 0.0
    %s1784 = scalar_lea.vmem %s4, 192
    %v1785 = vld [vmem:[%s1784] sm:$0xf]
    %v1786 = vld [vmem:[%s1784 + $0x4] sm:$0xf]
    %v1787 = vld [vmem:[%s1784 + $0x8] sm:$0xf]
    %v1788 = vld [vmem:[%s1784 + $0xc] sm:$0xf]
    %v1789 = vld [vmem:[%s1784 + $0x10] sm:$0xf]
    %v1790 = vld [vmem:[%s1784 + $0x14] sm:$0xf]
    %v1791 = vld [vmem:[%s1784 + $0x18] sm:$0xf]
    %v1792 = vld [vmem:[%s1784 + $0x1c] sm:$0xf]
    %v1793 = vpack.c.bf16 %v1778, %v1776
    %v1794 = vpack.c.bf16 %v1779, %v1777
    %v1795 = vpack.c.bf16 %v1782, %v1780
    %v1796 = vpack.c.bf16 %v1783, %v1781
    %v1805 = vunpack.c.l.b16 %v1785
    %v1806 = vunpack.c.l.b16 %v1786
    %v1807 = vunpack.c.l.b16 %v1787
    %v1808 = vunpack.c.l.b16 %v1788
    %v1809 = vunpack.c.l.b16 %v1789
    %v1810 = vunpack.c.l.b16 %v1790
    %v1811 = vunpack.c.l.b16 %v1791
    %v1812 = vunpack.c.l.b16 %v1792
    %v1813 = vpack.c.b16 %v1806, %v1805
    %v1814 = vpack.c.b16 %v1808, %v1807
    %v1815 = vpack.c.b16 %v1810, %v1809
    %v1816 = vpack.c.b16 %v1812, %v1811
    %v1818 = vsel %vm307, %v1813, 0
    %v1821 = vsel %vm307, %v1814, 0
    %v1824 = vsel %vm307, %v1815, 0
    %v1827 = vsel %vm307, %v1816, 0
    %1829 = vmatprep.subr.bf16.mxu0 %v1794
    %1830 = vmatpush1.bf16.msra.mxu0 %v1793
    %1831 = vmatprep.subr.bf16.mxu0 %v1796
    %1832 = vmatpush1.bf16.msra.mxu0 %v1795
    %1833 = vmatprep.subr.bf16.mxu0 0
    %1834 = vmatpush1.bf16.msra.mxu0 0
    %1835 = vmatprep.subr.bf16.mxu0 0
    %1836 = vmatpush1.bf16.msra.mxu0 0
    %1837 = vmatprep.subr.bf16.mxu0 0
    %1838 = vmatpush1.bf16.msra.mxu0 0
    %1839 = vmatprep.subr.bf16.mxu0 0
    %1840 = vmatpush1.bf16.msra.mxu0 0
    %1841 = vmatprep.subr.bf16.mxu0 0
    %1842 = vmatpush1.bf16.msra.mxu0 0
    %1843 = vmatprep.subr.bf16.mxu0 0
    %1844 = vmatpush1.bf16.msra.mxu0 0
    %1845 = vmatprep.subr.bf16.mxu0 0
    %1846 = vmatpush1.bf16.msra.mxu0 0
    %1847 = vmatprep.subr.bf16.mxu0 0
    %1848 = vmatpush1.bf16.msra.mxu0 0
    %1849 = vmatprep.subr.bf16.mxu0 0
    %1850 = vmatpush1.bf16.msra.mxu0 0
    %1851 = vmatprep.subr.bf16.mxu0 0
    %1852 = vmatpush1.bf16.msra.mxu0 0
    %1853 = vmatprep.subr.bf16.mxu0 0
    %1854 = vmatpush1.bf16.msra.mxu0 0
    %1855 = vmatprep.subr.bf16.mxu0 0
    %1856 = vmatpush1.bf16.msra.mxu0 0
    %1857 = vmatprep.subr.bf16.mxu0 0
    %1858 = vmatpush1.bf16.msra.mxu0 0
    %1859 = vmatprep.subr.bf16.mxu0 0
    %1860 = vmatpush1.bf16.msra.mxu0 0
    %1861 = vmatprep.mubr.bf16.mxu0 0
    %1862 = vmatmul.mubr.bf16.gmra.mrb[0].mxu0 %v1818
    %v1863 = vpop.f32.mrb[0].mxu0
    %v1864 = vadd.f32 0.0, %v1863
    %v1865 = vpop.f32.mrb[0].mxu0
    %v1866 = vadd.f32 0.0, %v1865
    %v1867 = vpop.f32.mrb[0].mxu0
    %v1868 = vadd.f32 0.0, %v1867
    %v1869 = vpop.f32.mrb[0].mxu0
    %v1870 = vadd.f32 0.0, %v1869
    %1871 = vmatprep.mubr.bf16.mxu0 0
    %1872 = vmatmul.mubr.bf16.gmra.mrb[0].mxu0 %v1821
    %v1873 = vpop.f32.mrb[0].mxu0
    %v1874 = vadd.f32 0.0, %v1873
    %v1875 = vpop.f32.mrb[0].mxu0
    %v1876 = vadd.f32 0.0, %v1875
    %v1877 = vpop.f32.mrb[0].mxu0
    %v1878 = vadd.f32 0.0, %v1877
    %v1879 = vpop.f32.mrb[0].mxu0
    %v1880 = vadd.f32 0.0, %v1879
    %1881 = vmatprep.mubr.bf16.mxu0 0
    %1882 = vmatmul.mubr.bf16.gmra.mrb[0].mxu0 %v1824
    %v1883 = vpop.f32.mrb[0].mxu0
    %v1884 = vadd.f32 0.0, %v1883
    %v1885 = vpop.f32.mrb[0].mxu0
    %v1886 = vadd.f32 0.0, %v1885
    %v1887 = vpop.f32.mrb[0].mxu0
    %v1888 = vadd.f32 0.0, %v1887
    %v1889 = vpop.f32.mrb[0].mxu0
    %v1890 = vadd.f32 0.0, %v1889
    %1891 = vmatprep.mubr.bf16.mxu0 0
    %1892 = vmatmul.mubr.bf16.gmra.mrb[0].mxu0 %v1827
    %v1893 = vpop.f32.mrb[0].mxu0
    %v1894 = vadd.f32 0.0, %v1893
    %v1895 = vpop.f32.mrb[0].mxu0
    %v1896 = vadd.f32 0.0, %v1895
    %v1897 = vpop.f32.mrb[0].mxu0
    %v1898 = vadd.f32 0.0, %v1897
    %v1899 = vpop.f32.mrb[0].mxu0
    %v1900 = vadd.f32 0.0, %v1899
    %1901 = vdwg.mxu0
    %v1902 = vadd.f32 %v1735, %v1864
    %v1903 = vadd.f32 %v1736, %v1866
    %v1904 = vadd.f32 %v1737, %v1868
    %v1905 = vadd.f32 %v1738, %v1870
    %v1906 = vadd.f32 %v1739, %v1874
    %v1907 = vadd.f32 %v1740, %v1876
    %v1908 = vadd.f32 %v1741, %v1878
    %v1909 = vadd.f32 %v1742, %v1880
    %v1910 = vadd.f32 %v1743, %v1884
    %v1911 = vadd.f32 %v1744, %v1886
    %v1912 = vadd.f32 %v1745, %v1888
    %v1913 = vadd.f32 %v1746, %v1890
    %v1914 = vadd.f32 %v1747, %v1894
    %v1915 = vadd.f32 %v1748, %v1896
    %v1916 = vadd.f32 %v1749, %v1898
    %v1917 = vadd.f32 %v1750, %v1900
    %1918 = vrot.lane.b32.xlu0 %v1670, 5
    %v1919 = vpop.permute.xlu0 %1918
    %1920 = vrot.lane.b32.xlu0 %v1672, 5
    %v1921 = vpop.permute.xlu0 %1920
    %1922 = vrot.lane.b32.xlu0 %v1674, 5
    %v1923 = vpop.permute.xlu0 %1922
    %1924 = vrot.lane.b32.xlu0 %v1676, 5
    %v1925 = vpop.permute.xlu0 %1924
    %1926 = vrot.lane.b32.xlu0 %v1671, 5
    %v1927 = vpop.permute.xlu0 %1926
    %1928 = vrot.lane.b32.xlu0 %v1673, 5
    %v1929 = vpop.permute.xlu0 %1928
    %1930 = vrot.lane.b32.xlu0 %v1675, 5
    %v1931 = vpop.permute.xlu0 %1930
    %1932 = vrot.lane.b32.xlu0 %v1677, 5
    %v1933 = vpop.permute.xlu0 %1932
    %v1934 = vsel %vm1013, %v1919, %v1927
    %v1935 = vsel %vm1013, %v1921, %v1929
    %v1936 = vsel %vm1013, %v1923, %v1931
    %v1937 = vsel %vm1013, %v1925, %v1933
    %v1938 = vsel %vm1013, %v1927, %v1919
    %v1939 = vsel %vm1013, %v1929, %v1921
    %v1940 = vsel %vm1013, %v1931, %v1923
    %v1941 = vsel %vm1013, %v1933, %v1925
    %v1942 = vsel %vm51, %v1938, 0.0
    %v1943 = vsel %vm52, %v1934, 0.0
    %v1944 = vsel %vm51, %v1939, 0.0
    %v1945 = vsel %vm52, %v1935, 0.0
    %v1946 = vsel %vm51, %v1940, 0.0
    %v1947 = vsel %vm52, %v1936, 0.0
    %v1948 = vsel %vm51, %v1941, 0.0
    %v1949 = vsel %vm52, %v1937, 0.0
    %s1950 = scalar_lea.vmem %s4, 224
    %v1951 = vld [vmem:[%s1950] sm:$0xf]
    %v1952 = vld [vmem:[%s1950 + $0x4] sm:$0xf]
    %v1953 = vld [vmem:[%s1950 + $0x8] sm:$0xf]
    %v1954 = vld [vmem:[%s1950 + $0xc] sm:$0xf]
    %v1955 = vld [vmem:[%s1950 + $0x10] sm:$0xf]
    %v1956 = vld [vmem:[%s1950 + $0x14] sm:$0xf]
    %v1957 = vld [vmem:[%s1950 + $0x18] sm:$0xf]
    %v1958 = vld [vmem:[%s1950 + $0x1c] sm:$0xf]
    %v1959 = vpack.c.bf16 %v1944, %v1942
    %v1960 = vpack.c.bf16 %v1945, %v1943
    %v1961 = vpack.c.bf16 %v1948, %v1946
    %v1962 = vpack.c.bf16 %v1949, %v1947
    %v1971 = vunpack.c.l.b16 %v1951
    %v1972 = vunpack.c.l.b16 %v1952
    %v1973 = vunpack.c.l.b16 %v1953
    %v1974 = vunpack.c.l.b16 %v1954
    %v1975 = vunpack.c.l.b16 %v1955
    %v1976 = vunpack.c.l.b16 %v1956
    %v1977 = vunpack.c.l.b16 %v1957
    %v1978 = vunpack.c.l.b16 %v1958
    %v1979 = vpack.c.b16 %v1972, %v1971
    %v1980 = vpack.c.b16 %v1974, %v1973
    %v1981 = vpack.c.b16 %v1976, %v1975
    %v1982 = vpack.c.b16 %v1978, %v1977
    %v1984 = vsel %vm307, %v1979, 0
    %v1987 = vsel %vm307, %v1980, 0
    %v1990 = vsel %vm307, %v1981, 0
    %v1993 = vsel %vm307, %v1982, 0
    %1995 = vmatprep.subr.bf16.mxu0 %v1960
    %1996 = vmatpush1.bf16.msra.mxu0 %v1959
    %1997 = vmatprep.subr.bf16.mxu0 %v1962
    %1998 = vmatpush1.bf16.msra.mxu0 %v1961
    %1999 = vmatprep.subr.bf16.mxu0 0
    %2000 = vmatpush1.bf16.msra.mxu0 0
    %2001 = vmatprep.subr.bf16.mxu0 0
    %2002 = vmatpush1.bf16.msra.mxu0 0
    %2003 = vmatprep.subr.bf16.mxu0 0
    %2004 = vmatpush1.bf16.msra.mxu0 0
    %2005 = vmatprep.subr.bf16.mxu0 0
    %2006 = vmatpush1.bf16.msra.mxu0 0
    %2007 = vmatprep.subr.bf16.mxu0 0
    %2008 = vmatpush1.bf16.msra.mxu0 0
    %2009 = vmatprep.subr.bf16.mxu0 0
    %2010 = vmatpush1.bf16.msra.mxu0 0
    %2011 = vmatprep.subr.bf16.mxu0 0
    %2012 = vmatpush1.bf16.msra.mxu0 0
    %2013 = vmatprep.subr.bf16.mxu0 0
    %2014 = vmatpush1.bf16.msra.mxu0 0
    %2015 = vmatprep.subr.bf16.mxu0 0
    %2016 = vmatpush1.bf16.msra.mxu0 0
    %2017 = vmatprep.subr.bf16.mxu0 0
    %2018 = vmatpush1.bf16.msra.mxu0 0
    %2019 = vmatprep.subr.bf16.mxu0 0
    %2020 = vmatpush1.bf16.msra.mxu0 0
    %2021 = vmatprep.subr.bf16.mxu0 0
    %2022 = vmatpush1.bf16.msra.mxu0 0
    %2023 = vmatprep.subr.bf16.mxu0 0
    %2024 = vmatpush1.bf16.msra.mxu0 0
    %2025 = vmatprep.subr.bf16.mxu0 0
    %2026 = vmatpush1.bf16.msra.mxu0 0
    %2027 = vmatprep.mubr.bf16.mxu0 0
    %2028 = vmatmul.mubr.bf16.gmra.mrb[0].mxu0 %v1984
    %v2029 = vpop.f32.mrb[0].mxu0
    %v2030 = vadd.f32 0.0, %v2029
    %v2031 = vpop.f32.mrb[0].mxu0
    %v2032 = vadd.f32 0.0, %v2031
    %v2033 = vpop.f32.mrb[0].mxu0
    %v2034 = vadd.f32 0.0, %v2033
    %v2035 = vpop.f32.mrb[0].mxu0
    %v2036 = vadd.f32 0.0, %v2035
    %2037 = vmatprep.mubr.bf16.mxu0 0
    %2038 = vmatmul.mubr.bf16.gmra.mrb[0].mxu0 %v1987
    %v2039 = vpop.f32.mrb[0].mxu0
    %v2040 = vadd.f32 0.0, %v2039
    %v2041 = vpop.f32.mrb[0].mxu0
    %v2042 = vadd.f32 0.0, %v2041
    %v2043 = vpop.f32.mrb[0].mxu0
    %v2044 = vadd.f32 0.0, %v2043
    %v2045 = vpop.f32.mrb[0].mxu0
    %v2046 = vadd.f32 0.0, %v2045
    %2047 = vmatprep.mubr.bf16.mxu0 0
    %2048 = vmatmul.mubr.bf16.gmra.mrb[0].mxu0 %v1990
    %v2049 = vpop.f32.mrb[0].mxu0
    %v2050 = vadd.f32 0.0, %v2049
    %v2051 = vpop.f32.mrb[0].mxu0
    %v2052 = vadd.f32 0.0, %v2051
    %v2053 = vpop.f32.mrb[0].mxu0
    %v2054 = vadd.f32 0.0, %v2053
    %v2055 = vpop.f32.mrb[0].mxu0
    %v2056 = vadd.f32 0.0, %v2055
    %2057 = vmatprep.mubr.bf16.mxu0 0
    %2058 = vmatmul.mubr.bf16.gmra.mrb[0].mxu0 %v1993
    %v2059 = vpop.f32.mrb[0].mxu0
    %v2060 = vadd.f32 0.0, %v2059
    %v2061 = vpop.f32.mrb[0].mxu0
    %v2062 = vadd.f32 0.0, %v2061
    %v2063 = vpop.f32.mrb[0].mxu0
    %v2064 = vadd.f32 0.0, %v2063
    %v2065 = vpop.f32.mrb[0].mxu0
    %v2066 = vadd.f32 0.0, %v2065
    %2067 = vdwg.mxu0
    %v2068 = vadd.f32 %v1902, %v2030
    %v2069 = vadd.f32 %v1903, %v2032
    %v2070 = vadd.f32 %v1904, %v2034
    %v2071 = vadd.f32 %v1905, %v2036
    %v2072 = vadd.f32 %v1906, %v2040
    %v2073 = vadd.f32 %v1907, %v2042
    %v2074 = vadd.f32 %v1908, %v2044
    %v2075 = vadd.f32 %v1909, %v2046
    %v2076 = vadd.f32 %v1910, %v2050
    %v2077 = vadd.f32 %v1911, %v2052
    %v2078 = vadd.f32 %v1912, %v2054
    %v2079 = vadd.f32 %v1913, %v2056
    %v2080 = vadd.f32 %v1914, %v2060
    %v2081 = vadd.f32 %v1915, %v2062
    %v2082 = vadd.f32 %v1916, %v2064
    %v2083 = vadd.f32 %v1917, %v2066
    %2084 = vrot.lane.b32.xlu0 %v1670, 1
    %v2085 = vpop.permute.xlu0 %2084
    %2086 = vrot.lane.b32.xlu0 %v1672, 1
    %v2087 = vpop.permute.xlu0 %2086
    %2088 = vrot.lane.b32.xlu0 %v1674, 1
    %v2089 = vpop.permute.xlu0 %2088
    %2090 = vrot.lane.b32.xlu0 %v1676, 1
    %v2091 = vpop.permute.xlu0 %2090
    %2092 = vrot.lane.b32.xlu0 %v1671, 1
    %v2093 = vpop.permute.xlu0 %2092
    %2094 = vrot.lane.b32.xlu0 %v1673, 1
    %v2095 = vpop.permute.xlu0 %2094
    %2096 = vrot.lane.b32.xlu0 %v1675, 1
    %v2097 = vpop.permute.xlu0 %2096
    %2098 = vrot.lane.b32.xlu0 %v1677, 1
    %v2099 = vpop.permute.xlu0 %2098
    %v2100 = vsel %vm592, %v2085, %v2093
    %v2101 = vsel %vm592, %v2087, %v2095
    %v2102 = vsel %vm592, %v2089, %v2097
    %v2103 = vsel %vm592, %v2091, %v2099
    %v2104 = vsel %vm592, %v2093, %v2085
    %v2105 = vsel %vm592, %v2095, %v2087
    %v2106 = vsel %vm592, %v2097, %v2089
    %v2107 = vsel %vm592, %v2099, %v2091
    %v2108 = vsel %vm45, %v2104, 0.0
    %v2109 = vsel %vm46, %v2100, 0.0
    %v2110 = vsel %vm45, %v2105, 0.0
    %v2111 = vsel %vm46, %v2101, 0.0
    %v2112 = vsel %vm45, %v2106, 0.0
    %v2113 = vsel %vm46, %v2102, 0.0
    %v2114 = vsel %vm45, %v2107, 0.0
    %v2115 = vsel %vm46, %v2103, 0.0
    %s2116 = scalar_lea.vmem %s4, 256
    %v2117 = vld [vmem:[%s2116] sm:$0xf]
    %v2118 = vld [vmem:[%s2116 + $0x4] sm:$0xf]
    %v2119 = vld [vmem:[%s2116 + $0x8] sm:$0xf]
    %v2120 = vld [vmem:[%s2116 + $0xc] sm:$0xf]
    %v2121 = vld [vmem:[%s2116 + $0x10] sm:$0xf]
    %v2122 = vld [vmem:[%s2116 + $0x14] sm:$0xf]
    %v2123 = vld [vmem:[%s2116 + $0x18] sm:$0xf]
    %v2124 = vld [vmem:[%s2116 + $0x1c] sm:$0xf]
    %v2125 = vpack.c.bf16 %v2110, %v2108
    %v2126 = vpack.c.bf16 %v2111, %v2109
    %v2127 = vpack.c.bf16 %v2114, %v2112
    %v2128 = vpack.c.bf16 %v2115, %v2113
    %v2137 = vunpack.c.l.b16 %v2117
    %v2138 = vunpack.c.l.b16 %v2118
    %v2139 = vunpack.c.l.b16 %v2119
    %v2140 = vunpack.c.l.b16 %v2120
    %v2141 = vunpack.c.l.b16 %v2121
    %v2142 = vunpack.c.l.b16 %v2122
    %v2143 = vunpack.c.l.b16 %v2123
    %v2144 = vunpack.c.l.b16 %v2124
    %v2145 = vpack.c.b16 %v2138, %v2137
    %v2146 = vpack.c.b16 %v2140, %v2139
    %v2147 = vpack.c.b16 %v2142, %v2141
    %v2148 = vpack.c.b16 %v2144, %v2143
    %v2150 = vsel %vm307, %v2145, 0
    %v2153 = vsel %vm307, %v2146, 0
    %v2156 = vsel %vm307, %v2147, 0
    %v2159 = vsel %vm307, %v2148, 0
    %2161 = vmatprep.subr.bf16.mxu0 %v2126
    %2162 = vmatpush1.bf16.msra.mxu0 %v2125
    %2163 = vmatprep.subr.bf16.mxu0 %v2128
    %2164 = vmatpush1.bf16.msra.mxu0 %v2127
    %2165 = vmatprep.subr.bf16.mxu0 0
    %2166 = vmatpush1.bf16.msra.mxu0 0
    %2167 = vmatprep.subr.bf16.mxu0 0
    %2168 = vmatpush1.bf16.msra.mxu0 0
    %2169 = vmatprep.subr.bf16.mxu0 0
    %2170 = vmatpush1.bf16.msra.mxu0 0
    %2171 = vmatprep.subr.bf16.mxu0 0
    %2172 = vmatpush1.bf16.msra.mxu0 0
    %2173 = vmatprep.subr.bf16.mxu0 0
    %2174 = vmatpush1.bf16.msra.mxu0 0
    %2175 = vmatprep.subr.bf16.mxu0 0
    %2176 = vmatpush1.bf16.msra.mxu0 0
    %2177 = vmatprep.subr.bf16.mxu0 0
    %2178 = vmatpush1.bf16.msra.mxu0 0
    %2179 = vmatprep.subr.bf16.mxu0 0
    %2180 = vmatpush1.bf16.msra.mxu0 0
    %2181 = vmatprep.subr.bf16.mxu0 0
    %2182 = vmatpush1.bf16.msra.mxu0 0
    %2183 = vmatprep.subr.bf16.mxu0 0
    %2184 = vmatpush1.bf16.msra.mxu0 0
    %2185 = vmatprep.subr.bf16.mxu0 0
    %2186 = vmatpush1.bf16.msra.mxu0 0
    %2187 = vmatprep.subr.bf16.mxu0 0
    %2188 = vmatpush1.bf16.msra.mxu0 0
    %2189 = vmatprep.subr.bf16.mxu0 0
    %2190 = vmatpush1.bf16.msra.mxu0 0
    %2191 = vmatprep.subr.bf16.mxu0 0
    %2192 = vmatpush1.bf16.msra.mxu0 0
    %2193 = vmatprep.mubr.bf16.mxu0 0
    %2194 = vmatmul.mubr.bf16.gmra.mrb[0].mxu0 %v2150
    %v2195 = vpop.f32.mrb[0].mxu0
    %v2196 = vadd.f32 0.0, %v2195
    %v2197 = vpop.f32.mrb[0].mxu0
    %v2198 = vadd.f32 0.0, %v2197
    %v2199 = vpop.f32.mrb[0].mxu0
    %v2200 = vadd.f32 0.0, %v2199
    %v2201 = vpop.f32.mrb[0].mxu0
    %v2202 = vadd.f32 0.0, %v2201
    %2203 = vmatprep.mubr.bf16.mxu0 0
    %2204 = vmatmul.mubr.bf16.gmra.mrb[0].mxu0 %v2153
    %v2205 = vpop.f32.mrb[0].mxu0
    %v2206 = vadd.f32 0.0, %v2205
    %v2207 = vpop.f32.mrb[0].mxu0
    %v2208 = vadd.f32 0.0, %v2207
    %v2209 = vpop.f32.mrb[0].mxu0
    %v2210 = vadd.f32 0.0, %v2209
    %v2211 = vpop.f32.mrb[0].mxu0
    %v2212 = vadd.f32 0.0, %v2211
    %2213 = vmatprep.mubr.bf16.mxu0 0
    %2214 = vmatmul.mubr.bf16.gmra.mrb[0].mxu0 %v2156
    %v2215 = vpop.f32.mrb[0].mxu0
    %v2216 = vadd.f32 0.0, %v2215
    %v2217 = vpop.f32.mrb[0].mxu0
    %v2218 = vadd.f32 0.0, %v2217
    %v2219 = vpop.f32.mrb[0].mxu0
    %v2220 = vadd.f32 0.0, %v2219
    %v2221 = vpop.f32.mrb[0].mxu0
    %v2222 = vadd.f32 0.0, %v2221
    %2223 = vmatprep.mubr.bf16.mxu0 0
    %2224 = vmatmul.mubr.bf16.gmra.mrb[0].mxu0 %v2159
    %v2225 = vpop.f32.mrb[0].mxu0
    %v2226 = vadd.f32 0.0, %v2225
    %v2227 = vpop.f32.mrb[0].mxu0
    %v2228 = vadd.f32 0.0, %v2227
    %v2229 = vpop.f32.mrb[0].mxu0
    %v2230 = vadd.f32 0.0, %v2229
    %v2231 = vpop.f32.mrb[0].mxu0
    %v2232 = vadd.f32 0.0, %v2231
    %2233 = vdwg.mxu0
    %v2234 = vadd.f32 %v2068, %v2196
    %v2235 = vadd.f32 %v2069, %v2198
    %v2236 = vadd.f32 %v2070, %v2200
    %v2237 = vadd.f32 %v2071, %v2202
    %v2238 = vadd.f32 %v2072, %v2206
    %v2239 = vadd.f32 %v2073, %v2208
    %v2240 = vadd.f32 %v2074, %v2210
    %v2241 = vadd.f32 %v2075, %v2212
    %v2242 = vadd.f32 %v2076, %v2216
    %v2243 = vadd.f32 %v2077, %v2218
    %v2244 = vadd.f32 %v2078, %v2220
    %v2245 = vadd.f32 %v2079, %v2222
    %v2246 = vadd.f32 %v2080, %v2226
    %v2247 = vadd.f32 %v2081, %v2228
    %v2248 = vadd.f32 %v2082, %v2230
    %v2249 = vadd.f32 %v2083, %v2232
    %v2250 = vxor.u32 %v2242, 2147483648
    %v2251 = vxor.u32 %v2243, 2147483648
    %v2252 = vxor.u32 %v2244, 2147483648
    %v2253 = vxor.u32 %v2245, 2147483648
    %v2254 = vxor.u32 %v2246, 2147483648
    %v2255 = vxor.u32 %v2247, 2147483648
    %v2256 = vxor.u32 %v2248, 2147483648
    %v2257 = vxor.u32 %v2249, 2147483648
    %v2258 = vmul.f32 %v2250, 1.442695
    %v2259 = vpow.pop %v2258
    %v2260 = vmul.f32 %v2251, 1.442695
    %v2261 = vpow.pop %v2260
    %v2262 = vmul.f32 %v2252, 1.442695
    %v2263 = vpow.pop %v2262
    %v2264 = vmul.f32 %v2253, 1.442695
    %v2265 = vpow.pop %v2264
    %v2266 = vmul.f32 %v2254, 1.442695
    %v2267 = vpow.pop %v2266
    %v2268 = vmul.f32 %v2255, 1.442695
    %v2269 = vpow.pop %v2268
    %v2270 = vmul.f32 %v2256, 1.442695
    %v2271 = vpow.pop %v2270
    %v2272 = vmul.f32 %v2257, 1.442695
    %v2273 = vpow.pop %v2272
    %v2274 = vadd.f32 %v2259, 1.0
    %v2275 = vadd.f32 %v2261, 1.0
    %v2276 = vadd.f32 %v2263, 1.0
    %v2277 = vadd.f32 %v2265, 1.0
    %v2278 = vadd.f32 %v2267, 1.0
    %v2279 = vadd.f32 %v2269, 1.0
    %v2280 = vadd.f32 %v2271, 1.0
    %v2281 = vadd.f32 %v2273, 1.0
    %v2282 = vrcp.pop %v2274
    %v2283 = vmul.f32 1.0, %v2282
    %v2284 = vrcp.pop %v2275
    %v2285 = vmul.f32 1.0, %v2284
    %v2286 = vrcp.pop %v2276
    %v2287 = vmul.f32 1.0, %v2286
    %v2288 = vrcp.pop %v2277
    %v2289 = vmul.f32 1.0, %v2288
    %v2290 = vrcp.pop %v2278
    %v2291 = vmul.f32 1.0, %v2290
    %v2292 = vrcp.pop %v2279
    %v2293 = vmul.f32 1.0, %v2292
    %v2294 = vrcp.pop %v2280
    %v2295 = vmul.f32 1.0, %v2294
    %v2296 = vrcp.pop %v2281
    %v2297 = vmul.f32 1.0, %v2296
    %v2298 = vmul.f32 %v2234, %v2283
    %v2299 = vmul.f32 %v2235, %v2285
    %v2300 = vmul.f32 %v2236, %v2287
    %v2301 = vmul.f32 %v2237, %v2289
    %v2302 = vmul.f32 %v2238, %v2291
    %v2303 = vmul.f32 %v2239, %v2293
    %v2304 = vmul.f32 %v2240, %v2295
    %v2305 = vmul.f32 %v2241, %v2297
    %s2306 = scalar_lea.vmem %s6, 64
    %v2307 = vld [vmem:[%s2306] sm:$0xf]
    %v2308 = vld [vmem:[%s2306 + $0x4] sm:$0xf]
    %v2309 = vld [vmem:[%s2306 + $0x8] sm:$0xf]
    %v2310 = vld [vmem:[%s2306 + $0xc] sm:$0xf]
    %v2311 = vld [vmem:[%s2306 + $0x10] sm:$0xf]
    %v2312 = vld [vmem:[%s2306 + $0x14] sm:$0xf]
    %v2313 = vld [vmem:[%s2306 + $0x18] sm:$0xf]
    %v2314 = vld [vmem:[%s2306 + $0x1c] sm:$0xf]
    %v2315 = vpack.c.bf16 %v2300, %v2298
    %v2316 = vpack.c.bf16 %v2301, %v2299
    %v2317 = vpack.c.bf16 %v2304, %v2302
    %v2318 = vpack.c.bf16 %v2305, %v2303
    %v2327 = vunpack.c.l.b16 %v2307
    %v2328 = vunpack.c.l.b16 %v2308
    %v2329 = vunpack.c.l.b16 %v2309
    %v2330 = vunpack.c.l.b16 %v2310
    %v2331 = vunpack.c.l.b16 %v2311
    %v2332 = vunpack.c.l.b16 %v2312
    %v2333 = vunpack.c.l.b16 %v2313
    %v2334 = vunpack.c.l.b16 %v2314
    %v2335 = vpack.c.b16 %v2328, %v2327
    %v2336 = vpack.c.b16 %v2330, %v2329
    %v2337 = vpack.c.b16 %v2332, %v2331
    %v2338 = vpack.c.b16 %v2334, %v2333
    %v2340 = vsel %vm307, %v2335, 0
    %v2343 = vsel %vm307, %v2336, 0
    %v2346 = vsel %vm307, %v2337, 0
    %v2349 = vsel %vm307, %v2338, 0
    %2351 = vmatprep.subr.bf16.mxu0 %v2316
    %2352 = vmatpush1.bf16.msra.mxu0 %v2315
    %2353 = vmatprep.subr.bf16.mxu0 %v2318
    %2354 = vmatpush1.bf16.msra.mxu0 %v2317
    %2355 = vmatprep.subr.bf16.mxu0 0
    %2356 = vmatpush1.bf16.msra.mxu0 0
    %2357 = vmatprep.subr.bf16.mxu0 0
    %2358 = vmatpush1.bf16.msra.mxu0 0
    %2359 = vmatprep.subr.bf16.mxu0 0
    %2360 = vmatpush1.bf16.msra.mxu0 0
    %2361 = vmatprep.subr.bf16.mxu0 0
    %2362 = vmatpush1.bf16.msra.mxu0 0
    %2363 = vmatprep.subr.bf16.mxu0 0
    %2364 = vmatpush1.bf16.msra.mxu0 0
    %2365 = vmatprep.subr.bf16.mxu0 0
    %2366 = vmatpush1.bf16.msra.mxu0 0
    %2367 = vmatprep.subr.bf16.mxu0 0
    %2368 = vmatpush1.bf16.msra.mxu0 0
    %2369 = vmatprep.subr.bf16.mxu0 0
    %2370 = vmatpush1.bf16.msra.mxu0 0
    %2371 = vmatprep.subr.bf16.mxu0 0
    %2372 = vmatpush1.bf16.msra.mxu0 0
    %2373 = vmatprep.subr.bf16.mxu0 0
    %2374 = vmatpush1.bf16.msra.mxu0 0
    %2375 = vmatprep.subr.bf16.mxu0 0
    %2376 = vmatpush1.bf16.msra.mxu0 0
    %2377 = vmatprep.subr.bf16.mxu0 0
    %2378 = vmatpush1.bf16.msra.mxu0 0
    %2379 = vmatprep.subr.bf16.mxu0 0
    %2380 = vmatpush1.bf16.msra.mxu0 0
    %2381 = vmatprep.subr.bf16.mxu0 0
    %2382 = vmatpush1.bf16.msra.mxu0 0
    %2383 = vmatprep.mubr.bf16.mxu0 0
    %2384 = vmatmul.mubr.bf16.gmra.mrb[0].mxu0 %v2340
    %v2385 = vpop.f32.mrb[0].mxu0
    %v2386 = vadd.f32 0.0, %v2385
    %v2387 = vpop.f32.mrb[0].mxu0
    %v2388 = vadd.f32 0.0, %v2387
    %v2389 = vpop.f32.mrb[0].mxu0
    %v2390 = vadd.f32 0.0, %v2389
    %v2391 = vpop.f32.mrb[0].mxu0
    %v2392 = vadd.f32 0.0, %v2391
    %2393 = vmatprep.mubr.bf16.mxu0 0
    %2394 = vmatmul.mubr.bf16.gmra.mrb[0].mxu0 %v2343
    %v2395 = vpop.f32.mrb[0].mxu0
    %v2396 = vadd.f32 0.0, %v2395
    %v2397 = vpop.f32.mrb[0].mxu0
    %v2398 = vadd.f32 0.0, %v2397
    %v2399 = vpop.f32.mrb[0].mxu0
    %v2400 = vadd.f32 0.0, %v2399
    %v2401 = vpop.f32.mrb[0].mxu0
    %v2402 = vadd.f32 0.0, %v2401
    %2403 = vmatprep.mubr.bf16.mxu0 0
    %2404 = vmatmul.mubr.bf16.gmra.mrb[0].mxu0 %v2346
    %v2405 = vpop.f32.mrb[0].mxu0
    %v2406 = vadd.f32 0.0, %v2405
    %v2407 = vpop.f32.mrb[0].mxu0
    %v2408 = vadd.f32 0.0, %v2407
    %v2409 = vpop.f32.mrb[0].mxu0
    %v2410 = vadd.f32 0.0, %v2409
    %v2411 = vpop.f32.mrb[0].mxu0
    %v2412 = vadd.f32 0.0, %v2411
    %2413 = vmatprep.mubr.bf16.mxu0 0
    %2414 = vmatmul.mubr.bf16.gmra.mrb[0].mxu0 %v2349
    %v2415 = vpop.f32.mrb[0].mxu0
    %v2416 = vadd.f32 0.0, %v2415
    %v2417 = vpop.f32.mrb[0].mxu0
    %v2418 = vadd.f32 0.0, %v2417
    %v2419 = vpop.f32.mrb[0].mxu0
    %v2420 = vadd.f32 0.0, %v2419
    %v2421 = vpop.f32.mrb[0].mxu0
    %v2422 = vadd.f32 0.0, %v2421
    %2423 = vdwg.mxu0
    %v2424 = vadd.f32 %v2386, %v2298
    %v2425 = vadd.f32 %v2388, %v2299
    %v2426 = vadd.f32 %v2390, %v2300
    %v2427 = vadd.f32 %v2392, %v2301
    %v2428 = vadd.f32 %v2396, %v2302
    %v2429 = vadd.f32 %v2398, %v2303
    %v2430 = vadd.f32 %v2400, %v2304
    %v2431 = vadd.f32 %v2402, %v2305
    %v2432 = vadd.f32 %v1678, %v2406
    %v2433 = vadd.f32 %v1679, %v2408
    %v2434 = vadd.f32 %v1680, %v2410
    %v2435 = vadd.f32 %v1681, %v2412
    %v2436 = vadd.f32 %v1682, %v2416
    %v2437 = vadd.f32 %v1683, %v2418
    %v2438 = vadd.f32 %v1684, %v2420
    %v2439 = vadd.f32 %v1685, %v2422
    %s2440 = scalar_lea.vmem %s5, 192
    %v2441 = vld [vmem:[%s2440] sm:$0xff]
    %v2442 = vld [vmem:[%s2440 + $0x8] sm:$0xff]
    %v2443 = vld [vmem:[%s2440 + $0x10] sm:$0xff]
    %v2444 = vld [vmem:[%s2440 + $0x18] sm:$0xff]
    %v2445 = vld [vmem:[%s2440 + $0x20] sm:$0xff]
    %v2446 = vld [vmem:[%s2440 + $0x28] sm:$0xff]
    %v2447 = vld [vmem:[%s2440 + $0x30] sm:$0xff]
    %v2448 = vld [vmem:[%s2440 + $0x38] sm:$0xff]
    %2450 = vset.pattern.permute.xlu0 0
    %2451 = vperm.xlu0 %2450, %v2441
    %v2452 = vpop.permute.xlu0 %2451
    %2455 = vset.pattern.permute.xlu0 0
    %2456 = vperm.xlu0 %2455, %v2442
    %v2457 = vpop.permute.xlu0 %2456
    %2460 = vset.pattern.permute.xlu0 0
    %2461 = vperm.xlu0 %2460, %v2443
    %v2462 = vpop.permute.xlu0 %2461
    %2465 = vset.pattern.permute.xlu0 0
    %2466 = vperm.xlu0 %2465, %v2444
    %v2467 = vpop.permute.xlu0 %2466
    %2470 = vset.pattern.permute.xlu0 0
    %2471 = vperm.xlu0 %2470, %v2445
    %v2472 = vpop.permute.xlu0 %2471
    %2475 = vset.pattern.permute.xlu0 0
    %2476 = vperm.xlu0 %2475, %v2446
    %v2477 = vpop.permute.xlu0 %2476
    %2480 = vset.pattern.permute.xlu0 0
    %2481 = vperm.xlu0 %2480, %v2447
    %v2482 = vpop.permute.xlu0 %2481
    %2485 = vset.pattern.permute.xlu0 0
    %2486 = vperm.xlu0 %2485, %v2448
    %v2487 = vpop.permute.xlu0 %2486
    %v2489 = vmul.f32 %v2452, %v219
    %v2490 = vmul.f32 %v2452, %v223
    %v2491 = vmul.f32 %v2457, %v219
    %v2492 = vmul.f32 %v2457, %v223
    %v2493 = vmul.f32 %v2462, %v219
    %v2494 = vmul.f32 %v2462, %v223
    %v2495 = vmul.f32 %v2467, %v219
    %v2496 = vmul.f32 %v2467, %v223
    %v2497 = vmul.f32 %v2472, %v219
    %v2498 = vmul.f32 %v2472, %v223
    %v2499 = vmul.f32 %v2477, %v219
    %v2500 = vmul.f32 %v2477, %v223
    %v2501 = vmul.f32 %v2482, %v219
    %v2502 = vmul.f32 %v2482, %v223
    %v2503 = vmul.f32 %v2487, %v219
    %v2504 = vmul.f32 %v2487, %v223
    %2505 = vrot.lane.b32.xlu0 %v2424, 17
    %v2506 = vpop.permute.xlu0 %2505
    %2507 = vrot.lane.b32.xlu0 %v2426, 17
    %v2508 = vpop.permute.xlu0 %2507
    %2509 = vrot.lane.b32.xlu0 %v2428, 17
    %v2510 = vpop.permute.xlu0 %2509
    %2511 = vrot.lane.b32.xlu0 %v2430, 17
    %v2512 = vpop.permute.xlu0 %2511
    %2513 = vrot.lane.b32.xlu0 %v2425, 17
    %v2514 = vpop.permute.xlu0 %2513
    %2515 = vrot.lane.b32.xlu0 %v2427, 17
    %v2516 = vpop.permute.xlu0 %2515
    %2517 = vrot.lane.b32.xlu0 %v2429, 17
    %v2518 = vpop.permute.xlu0 %2517
    %2519 = vrot.lane.b32.xlu0 %v2431, 17
    %v2520 = vpop.permute.xlu0 %2519
    %vm2521 = vcmp.lt.s32.totalorder %v41, 17
    %v2522 = vsel %vm2521, %v2506, %v2514
    %v2523 = vsel %vm2521, %v2508, %v2516
    %v2524 = vsel %vm2521, %v2510, %v2518
    %v2525 = vsel %vm2521, %v2512, %v2520
    %v2526 = vsel %vm2521, %v2514, %v2506
    %v2527 = vsel %vm2521, %v2516, %v2508
    %v2528 = vsel %vm2521, %v2518, %v2510
    %v2529 = vsel %vm2521, %v2520, %v2512
    %v2530 = vsel %vm55, %v2526, 0.0
    %v2531 = vsel %vm56, %v2522, 0.0
    %v2532 = vsel %vm55, %v2527, 0.0
    %v2533 = vsel %vm56, %v2523, 0.0
    %v2534 = vsel %vm55, %v2528, 0.0
    %v2535 = vsel %vm56, %v2524, 0.0
    %v2536 = vsel %vm55, %v2529, 0.0
    %v2537 = vsel %vm56, %v2525, 0.0
    %s2538 = scalar_lea.vmem %s4, 288
    %v2539 = vld [vmem:[%s2538] sm:$0xf]
    %v2540 = vld [vmem:[%s2538 + $0x4] sm:$0xf]
    %v2541 = vld [vmem:[%s2538 + $0x8] sm:$0xf]
    %v2542 = vld [vmem:[%s2538 + $0xc] sm:$0xf]
    %v2543 = vld [vmem:[%s2538 + $0x10] sm:$0xf]
    %v2544 = vld [vmem:[%s2538 + $0x14] sm:$0xf]
    %v2545 = vld [vmem:[%s2538 + $0x18] sm:$0xf]
    %v2546 = vld [vmem:[%s2538 + $0x1c] sm:$0xf]
    %v2547 = vpack.c.bf16 %v2532, %v2530
    %v2548 = vpack.c.bf16 %v2533, %v2531
    %v2549 = vpack.c.bf16 %v2536, %v2534
    %v2550 = vpack.c.bf16 %v2537, %v2535
    %v2559 = vunpack.c.l.b16 %v2539
    %v2560 = vunpack.c.l.b16 %v2540
    %v2561 = vunpack.c.l.b16 %v2541
    %v2562 = vunpack.c.l.b16 %v2542
    %v2563 = vunpack.c.l.b16 %v2543
    %v2564 = vunpack.c.l.b16 %v2544
    %v2565 = vunpack.c.l.b16 %v2545
    %v2566 = vunpack.c.l.b16 %v2546
    %v2567 = vpack.c.b16 %v2560, %v2559
    %v2568 = vpack.c.b16 %v2562, %v2561
    %v2569 = vpack.c.b16 %v2564, %v2563
    %v2570 = vpack.c.b16 %v2566, %v2565
    %v2572 = vsel %vm307, %v2567, 0
    %v2575 = vsel %vm307, %v2568, 0
    %v2578 = vsel %vm307, %v2569, 0
    %v2581 = vsel %vm307, %v2570, 0
    %2583 = vmatprep.subr.bf16.mxu0 %v2548
    %2584 = vmatpush1.bf16.msra.mxu0 %v2547
    %2585 = vmatprep.subr.bf16.mxu0 %v2550
    %2586 = vmatpush1.bf16.msra.mxu0 %v2549
    %2587 = vmatprep.subr.bf16.mxu0 0
    %2588 = vmatpush1.bf16.msra.mxu0 0
    %2589 = vmatprep.subr.bf16.mxu0 0
    %2590 = vmatpush1.bf16.msra.mxu0 0
    %2591 = vmatprep.subr.bf16.mxu0 0
    %2592 = vmatpush1.bf16.msra.mxu0 0
    %2593 = vmatprep.subr.bf16.mxu0 0
    %2594 = vmatpush1.bf16.msra.mxu0 0
    %2595 = vmatprep.subr.bf16.mxu0 0
    %2596 = vmatpush1.bf16.msra.mxu0 0
    %2597 = vmatprep.subr.bf16.mxu0 0
    %2598 = vmatpush1.bf16.msra.mxu0 0
    %2599 = vmatprep.subr.bf16.mxu0 0
    %2600 = vmatpush1.bf16.msra.mxu0 0
    %2601 = vmatprep.subr.bf16.mxu0 0
    %2602 = vmatpush1.bf16.msra.mxu0 0
    %2603 = vmatprep.subr.bf16.mxu0 0
    %2604 = vmatpush1.bf16.msra.mxu0 0
    %2605 = vmatprep.subr.bf16.mxu0 0
    %2606 = vmatpush1.bf16.msra.mxu0 0
    %2607 = vmatprep.subr.bf16.mxu0 0
    %2608 = vmatpush1.bf16.msra.mxu0 0
    %2609 = vmatprep.subr.bf16.mxu0 0
    %2610 = vmatpush1.bf16.msra.mxu0 0
    %2611 = vmatprep.subr.bf16.mxu0 0
    %2612 = vmatpush1.bf16.msra.mxu0 0
    %2613 = vmatprep.subr.bf16.mxu0 0
    %2614 = vmatpush1.bf16.msra.mxu0 0
    %2615 = vmatprep.mubr.bf16.mxu0 0
    %2616 = vmatmul.mubr.bf16.gmra.mrb[0].mxu0 %v2572
    %v2617 = vpop.f32.mrb[0].mxu0
    %v2618 = vadd.f32 0.0, %v2617
    %v2619 = vpop.f32.mrb[0].mxu0
    %v2620 = vadd.f32 0.0, %v2619
    %v2621 = vpop.f32.mrb[0].mxu0
    %v2622 = vadd.f32 0.0, %v2621
    %v2623 = vpop.f32.mrb[0].mxu0
    %v2624 = vadd.f32 0.0, %v2623
    %2625 = vmatprep.mubr.bf16.mxu0 0
    %2626 = vmatmul.mubr.bf16.gmra.mrb[0].mxu0 %v2575
    %v2627 = vpop.f32.mrb[0].mxu0
    %v2628 = vadd.f32 0.0, %v2627
    %v2629 = vpop.f32.mrb[0].mxu0
    %v2630 = vadd.f32 0.0, %v2629
    %v2631 = vpop.f32.mrb[0].mxu0
    %v2632 = vadd.f32 0.0, %v2631
    %v2633 = vpop.f32.mrb[0].mxu0
    %v2634 = vadd.f32 0.0, %v2633
    %2635 = vmatprep.mubr.bf16.mxu0 0
    %2636 = vmatmul.mubr.bf16.gmra.mrb[0].mxu0 %v2578
    %v2637 = vpop.f32.mrb[0].mxu0
    %v2638 = vadd.f32 0.0, %v2637
    %v2639 = vpop.f32.mrb[0].mxu0
    %v2640 = vadd.f32 0.0, %v2639
    %v2641 = vpop.f32.mrb[0].mxu0
    %v2642 = vadd.f32 0.0, %v2641
    %v2643 = vpop.f32.mrb[0].mxu0
    %v2644 = vadd.f32 0.0, %v2643
    %2645 = vmatprep.mubr.bf16.mxu0 0
    %2646 = vmatmul.mubr.bf16.gmra.mrb[0].mxu0 %v2581
    %v2647 = vpop.f32.mrb[0].mxu0
    %v2648 = vadd.f32 0.0, %v2647
    %v2649 = vpop.f32.mrb[0].mxu0
    %v2650 = vadd.f32 0.0, %v2649
    %v2651 = vpop.f32.mrb[0].mxu0
    %v2652 = vadd.f32 0.0, %v2651
    %v2653 = vpop.f32.mrb[0].mxu0
    %v2654 = vadd.f32 0.0, %v2653
    %2655 = vdwg.mxu0
    %v2656 = vadd.f32 %v2489, %v2618
    %v2657 = vadd.f32 %v2490, %v2620
    %v2658 = vadd.f32 %v2491, %v2622
    %v2659 = vadd.f32 %v2492, %v2624
    %v2660 = vadd.f32 %v2493, %v2628
    %v2661 = vadd.f32 %v2494, %v2630
    %v2662 = vadd.f32 %v2495, %v2632
    %v2663 = vadd.f32 %v2496, %v2634
    %v2664 = vadd.f32 %v2497, %v2638
    %v2665 = vadd.f32 %v2498, %v2640
    %v2666 = vadd.f32 %v2499, %v2642
    %v2667 = vadd.f32 %v2500, %v2644
    %v2668 = vadd.f32 %v2501, %v2648
    %v2669 = vadd.f32 %v2502, %v2650
    %v2670 = vadd.f32 %v2503, %v2652
    %v2671 = vadd.f32 %v2504, %v2654
    %2672 = vrot.lane.b32.xlu0 %v2424, 9
    %v2673 = vpop.permute.xlu0 %2672
    %2674 = vrot.lane.b32.xlu0 %v2426, 9
    %v2675 = vpop.permute.xlu0 %2674
    %2676 = vrot.lane.b32.xlu0 %v2428, 9
    %v2677 = vpop.permute.xlu0 %2676
    %2678 = vrot.lane.b32.xlu0 %v2430, 9
    %v2679 = vpop.permute.xlu0 %2678
    %2680 = vrot.lane.b32.xlu0 %v2425, 9
    %v2681 = vpop.permute.xlu0 %2680
    %2682 = vrot.lane.b32.xlu0 %v2427, 9
    %v2683 = vpop.permute.xlu0 %2682
    %2684 = vrot.lane.b32.xlu0 %v2429, 9
    %v2685 = vpop.permute.xlu0 %2684
    %2686 = vrot.lane.b32.xlu0 %v2431, 9
    %v2687 = vpop.permute.xlu0 %2686
    %v2688 = vsel %vm1767, %v2673, %v2681
    %v2689 = vsel %vm1767, %v2675, %v2683
    %v2690 = vsel %vm1767, %v2677, %v2685
    %v2691 = vsel %vm1767, %v2679, %v2687
    %v2692 = vsel %vm1767, %v2681, %v2673
    %v2693 = vsel %vm1767, %v2683, %v2675
    %v2694 = vsel %vm1767, %v2685, %v2677
    %v2695 = vsel %vm1767, %v2687, %v2679
    %v2696 = vsel %vm53, %v2692, 0.0
    %v2697 = vsel %vm54, %v2688, 0.0
    %v2698 = vsel %vm53, %v2693, 0.0
    %v2699 = vsel %vm54, %v2689, 0.0
    %v2700 = vsel %vm53, %v2694, 0.0
    %v2701 = vsel %vm54, %v2690, 0.0
    %v2702 = vsel %vm53, %v2695, 0.0
    %v2703 = vsel %vm54, %v2691, 0.0
    %s2704 = scalar_lea.vmem %s4, 320
    %v2705 = vld [vmem:[%s2704] sm:$0xf]
    %v2706 = vld [vmem:[%s2704 + $0x4] sm:$0xf]
    %v2707 = vld [vmem:[%s2704 + $0x8] sm:$0xf]
    %v2708 = vld [vmem:[%s2704 + $0xc] sm:$0xf]
    %v2709 = vld [vmem:[%s2704 + $0x10] sm:$0xf]
    %v2710 = vld [vmem:[%s2704 + $0x14] sm:$0xf]
    %v2711 = vld [vmem:[%s2704 + $0x18] sm:$0xf]
    %v2712 = vld [vmem:[%s2704 + $0x1c] sm:$0xf]
    %v2713 = vpack.c.bf16 %v2698, %v2696
    %v2714 = vpack.c.bf16 %v2699, %v2697
    %v2715 = vpack.c.bf16 %v2702, %v2700
    %v2716 = vpack.c.bf16 %v2703, %v2701
    %v2725 = vunpack.c.l.b16 %v2705
    %v2726 = vunpack.c.l.b16 %v2706
    %v2727 = vunpack.c.l.b16 %v2707
    %v2728 = vunpack.c.l.b16 %v2708
    %v2729 = vunpack.c.l.b16 %v2709
    %v2730 = vunpack.c.l.b16 %v2710
    %v2731 = vunpack.c.l.b16 %v2711
    %v2732 = vunpack.c.l.b16 %v2712
    %v2733 = vpack.c.b16 %v2726, %v2725
    %v2734 = vpack.c.b16 %v2728, %v2727
    %v2735 = vpack.c.b16 %v2730, %v2729
    %v2736 = vpack.c.b16 %v2732, %v2731
    %v2738 = vsel %vm307, %v2733, 0
    %v2741 = vsel %vm307, %v2734, 0
    %v2744 = vsel %vm307, %v2735, 0
    %v2747 = vsel %vm307, %v2736, 0
    %2749 = vmatprep.subr.bf16.mxu0 %v2714
    %2750 = vmatpush1.bf16.msra.mxu0 %v2713
    %2751 = vmatprep.subr.bf16.mxu0 %v2716
    %2752 = vmatpush1.bf16.msra.mxu0 %v2715
    %2753 = vmatprep.subr.bf16.mxu0 0
    %2754 = vmatpush1.bf16.msra.mxu0 0
    %2755 = vmatprep.subr.bf16.mxu0 0
    %2756 = vmatpush1.bf16.msra.mxu0 0
    %2757 = vmatprep.subr.bf16.mxu0 0
    %2758 = vmatpush1.bf16.msra.mxu0 0
    %2759 = vmatprep.subr.bf16.mxu0 0
    %2760 = vmatpush1.bf16.msra.mxu0 0
    %2761 = vmatprep.subr.bf16.mxu0 0
    %2762 = vmatpush1.bf16.msra.mxu0 0
    %2763 = vmatprep.subr.bf16.mxu0 0
    %2764 = vmatpush1.bf16.msra.mxu0 0
    %2765 = vmatprep.subr.bf16.mxu0 0
    %2766 = vmatpush1.bf16.msra.mxu0 0
    %2767 = vmatprep.subr.bf16.mxu0 0
    %2768 = vmatpush1.bf16.msra.mxu0 0
    %2769 = vmatprep.subr.bf16.mxu0 0
    %2770 = vmatpush1.bf16.msra.mxu0 0
    %2771 = vmatprep.subr.bf16.mxu0 0
    %2772 = vmatpush1.bf16.msra.mxu0 0
    %2773 = vmatprep.subr.bf16.mxu0 0
    %2774 = vmatpush1.bf16.msra.mxu0 0
    %2775 = vmatprep.subr.bf16.mxu0 0
    %2776 = vmatpush1.bf16.msra.mxu0 0
    %2777 = vmatprep.subr.bf16.mxu0 0
    %2778 = vmatpush1.bf16.msra.mxu0 0
    %2779 = vmatprep.subr.bf16.mxu0 0
    %2780 = vmatpush1.bf16.msra.mxu0 0
    %2781 = vmatprep.mubr.bf16.mxu0 0
    %2782 = vmatmul.mubr.bf16.gmra.mrb[0].mxu0 %v2738
    %v2783 = vpop.f32.mrb[0].mxu0
    %v2784 = vadd.f32 0.0, %v2783
    %v2785 = vpop.f32.mrb[0].mxu0
    %v2786 = vadd.f32 0.0, %v2785
    %v2787 = vpop.f32.mrb[0].mxu0
    %v2788 = vadd.f32 0.0, %v2787
    %v2789 = vpop.f32.mrb[0].mxu0
    %v2790 = vadd.f32 0.0, %v2789
    %2791 = vmatprep.mubr.bf16.mxu0 0
    %2792 = vmatmul.mubr.bf16.gmra.mrb[0].mxu0 %v2741
    %v2793 = vpop.f32.mrb[0].mxu0
    %v2794 = vadd.f32 0.0, %v2793
    %v2795 = vpop.f32.mrb[0].mxu0
    %v2796 = vadd.f32 0.0, %v2795
    %v2797 = vpop.f32.mrb[0].mxu0
    %v2798 = vadd.f32 0.0, %v2797
    %v2799 = vpop.f32.mrb[0].mxu0
    %v2800 = vadd.f32 0.0, %v2799
    %2801 = vmatprep.mubr.bf16.mxu0 0
    %2802 = vmatmul.mubr.bf16.gmra.mrb[0].mxu0 %v2744
    %v2803 = vpop.f32.mrb[0].mxu0
    %v2804 = vadd.f32 0.0, %v2803
    %v2805 = vpop.f32.mrb[0].mxu0
    %v2806 = vadd.f32 0.0, %v2805
    %v2807 = vpop.f32.mrb[0].mxu0
    %v2808 = vadd.f32 0.0, %v2807
    %v2809 = vpop.f32.mrb[0].mxu0
    %v2810 = vadd.f32 0.0, %v2809
    %2811 = vmatprep.mubr.bf16.mxu0 0
    %2812 = vmatmul.mubr.bf16.gmra.mrb[0].mxu0 %v2747
    %v2813 = vpop.f32.mrb[0].mxu0
    %v2814 = vadd.f32 0.0, %v2813
    %v2815 = vpop.f32.mrb[0].mxu0
    %v2816 = vadd.f32 0.0, %v2815
    %v2817 = vpop.f32.mrb[0].mxu0
    %v2818 = vadd.f32 0.0, %v2817
    %v2819 = vpop.f32.mrb[0].mxu0
    %v2820 = vadd.f32 0.0, %v2819
    %2821 = vdwg.mxu0
    %v2822 = vadd.f32 %v2656, %v2784
    %v2823 = vadd.f32 %v2657, %v2786
    %v2824 = vadd.f32 %v2658, %v2788
    %v2825 = vadd.f32 %v2659, %v2790
    %v2826 = vadd.f32 %v2660, %v2794
    %v2827 = vadd.f32 %v2661, %v2796
    %v2828 = vadd.f32 %v2662, %v2798
    %v2829 = vadd.f32 %v2663, %v2800
    %v2830 = vadd.f32 %v2664, %v2804
    %v2831 = vadd.f32 %v2665, %v2806
    %v2832 = vadd.f32 %v2666, %v2808
    %v2833 = vadd.f32 %v2667, %v2810
    %v2834 = vadd.f32 %v2668, %v2814
    %v2835 = vadd.f32 %v2669, %v2816
    %v2836 = vadd.f32 %v2670, %v2818
    %v2837 = vadd.f32 %v2671, %v2820
    %2838 = vrot.lane.b32.xlu0 %v2424, 1
    %v2839 = vpop.permute.xlu0 %2838
    %2840 = vrot.lane.b32.xlu0 %v2426, 1
    %v2841 = vpop.permute.xlu0 %2840
    %2842 = vrot.lane.b32.xlu0 %v2428, 1
    %v2843 = vpop.permute.xlu0 %2842
    %2844 = vrot.lane.b32.xlu0 %v2430, 1
    %v2845 = vpop.permute.xlu0 %2844
    %2846 = vrot.lane.b32.xlu0 %v2425, 1
    %v2847 = vpop.permute.xlu0 %2846
    %2848 = vrot.lane.b32.xlu0 %v2427, 1
    %v2849 = vpop.permute.xlu0 %2848
    %2850 = vrot.lane.b32.xlu0 %v2429, 1
    %v2851 = vpop.permute.xlu0 %2850
    %2852 = vrot.lane.b32.xlu0 %v2431, 1
    %v2853 = vpop.permute.xlu0 %2852
    %v2854 = vsel %vm592, %v2839, %v2847
    %v2855 = vsel %vm592, %v2841, %v2849
    %v2856 = vsel %vm592, %v2843, %v2851
    %v2857 = vsel %vm592, %v2845, %v2853
    %v2858 = vsel %vm592, %v2847, %v2839
    %v2859 = vsel %vm592, %v2849, %v2841
    %v2860 = vsel %vm592, %v2851, %v2843
    %v2861 = vsel %vm592, %v2853, %v2845
    %v2862 = vsel %vm45, %v2858, 0.0
    %v2863 = vsel %vm46, %v2854, 0.0
    %v2864 = vsel %vm45, %v2859, 0.0
    %v2865 = vsel %vm46, %v2855, 0.0
    %v2866 = vsel %vm45, %v2860, 0.0
    %v2867 = vsel %vm46, %v2856, 0.0
    %v2868 = vsel %vm45, %v2861, 0.0
    %v2869 = vsel %vm46, %v2857, 0.0
    %s2870 = scalar_lea.vmem %s4, 352
    %v2871 = vld [vmem:[%s2870] sm:$0xf]
    %v2872 = vld [vmem:[%s2870 + $0x4] sm:$0xf]
    %v2873 = vld [vmem:[%s2870 + $0x8] sm:$0xf]
    %v2874 = vld [vmem:[%s2870 + $0xc] sm:$0xf]
    %v2875 = vld [vmem:[%s2870 + $0x10] sm:$0xf]
    %v2876 = vld [vmem:[%s2870 + $0x14] sm:$0xf]
    %v2877 = vld [vmem:[%s2870 + $0x18] sm:$0xf]
    %v2878 = vld [vmem:[%s2870 + $0x1c] sm:$0xf]
    %v2879 = vpack.c.bf16 %v2864, %v2862
    %v2880 = vpack.c.bf16 %v2865, %v2863
    %v2881 = vpack.c.bf16 %v2868, %v2866
    %v2882 = vpack.c.bf16 %v2869, %v2867
    %v2891 = vunpack.c.l.b16 %v2871
    %v2892 = vunpack.c.l.b16 %v2872
    %v2893 = vunpack.c.l.b16 %v2873
    %v2894 = vunpack.c.l.b16 %v2874
    %v2895 = vunpack.c.l.b16 %v2875
    %v2896 = vunpack.c.l.b16 %v2876
    %v2897 = vunpack.c.l.b16 %v2877
    %v2898 = vunpack.c.l.b16 %v2878
    %v2899 = vpack.c.b16 %v2892, %v2891
    %v2900 = vpack.c.b16 %v2894, %v2893
    %v2901 = vpack.c.b16 %v2896, %v2895
    %v2902 = vpack.c.b16 %v2898, %v2897
    %v2904 = vsel %vm307, %v2899, 0
    %v2907 = vsel %vm307, %v2900, 0
    %v2910 = vsel %vm307, %v2901, 0
    %v2913 = vsel %vm307, %v2902, 0
    %2915 = vmatprep.subr.bf16.mxu0 %v2880
    %2916 = vmatpush1.bf16.msra.mxu0 %v2879
    %2917 = vmatprep.subr.bf16.mxu0 %v2882
    %2918 = vmatpush1.bf16.msra.mxu0 %v2881
    %2919 = vmatprep.subr.bf16.mxu0 0
    %2920 = vmatpush1.bf16.msra.mxu0 0
    %2921 = vmatprep.subr.bf16.mxu0 0
    %2922 = vmatpush1.bf16.msra.mxu0 0
    %2923 = vmatprep.subr.bf16.mxu0 0
    %2924 = vmatpush1.bf16.msra.mxu0 0
    %2925 = vmatprep.subr.bf16.mxu0 0
    %2926 = vmatpush1.bf16.msra.mxu0 0
    %2927 = vmatprep.subr.bf16.mxu0 0
    %2928 = vmatpush1.bf16.msra.mxu0 0
    %2929 = vmatprep.subr.bf16.mxu0 0
    %2930 = vmatpush1.bf16.msra.mxu0 0
    %2931 = vmatprep.subr.bf16.mxu0 0
    %2932 = vmatpush1.bf16.msra.mxu0 0
    %2933 = vmatprep.subr.bf16.mxu0 0
    %2934 = vmatpush1.bf16.msra.mxu0 0
    %2935 = vmatprep.subr.bf16.mxu0 0
    %2936 = vmatpush1.bf16.msra.mxu0 0
    %2937 = vmatprep.subr.bf16.mxu0 0
    %2938 = vmatpush1.bf16.msra.mxu0 0
    %2939 = vmatprep.subr.bf16.mxu0 0
    %2940 = vmatpush1.bf16.msra.mxu0 0
    %2941 = vmatprep.subr.bf16.mxu0 0
    %2942 = vmatpush1.bf16.msra.mxu0 0
    %2943 = vmatprep.subr.bf16.mxu0 0
    %2944 = vmatpush1.bf16.msra.mxu0 0
    %2945 = vmatprep.subr.bf16.mxu0 0
    %2946 = vmatpush1.bf16.msra.mxu0 0
    %2947 = vmatprep.mubr.bf16.mxu0 0
    %2948 = vmatmul.mubr.bf16.gmra.mrb[0].mxu0 %v2904
    %v2949 = vpop.f32.mrb[0].mxu0
    %v2950 = vadd.f32 0.0, %v2949
    %v2951 = vpop.f32.mrb[0].mxu0
    %v2952 = vadd.f32 0.0, %v2951
    %v2953 = vpop.f32.mrb[0].mxu0
    %v2954 = vadd.f32 0.0, %v2953
    %v2955 = vpop.f32.mrb[0].mxu0
    %v2956 = vadd.f32 0.0, %v2955
    %2957 = vmatprep.mubr.bf16.mxu0 0
    %2958 = vmatmul.mubr.bf16.gmra.mrb[0].mxu0 %v2907
    %v2959 = vpop.f32.mrb[0].mxu0
    %v2960 = vadd.f32 0.0, %v2959
    %v2961 = vpop.f32.mrb[0].mxu0
    %v2962 = vadd.f32 0.0, %v2961
    %v2963 = vpop.f32.mrb[0].mxu0
    %v2964 = vadd.f32 0.0, %v2963
    %v2965 = vpop.f32.mrb[0].mxu0
    %v2966 = vadd.f32 0.0, %v2965
    %2967 = vmatprep.mubr.bf16.mxu0 0
    %2968 = vmatmul.mubr.bf16.gmra.mrb[0].mxu0 %v2910
    %v2969 = vpop.f32.mrb[0].mxu0
    %v2970 = vadd.f32 0.0, %v2969
    %v2971 = vpop.f32.mrb[0].mxu0
    %v2972 = vadd.f32 0.0, %v2971
    %v2973 = vpop.f32.mrb[0].mxu0
    %v2974 = vadd.f32 0.0, %v2973
    %v2975 = vpop.f32.mrb[0].mxu0
    %v2976 = vadd.f32 0.0, %v2975
    %2977 = vmatprep.mubr.bf16.mxu0 0
    %2978 = vmatmul.mubr.bf16.gmra.mrb[0].mxu0 %v2913
    %v2979 = vpop.f32.mrb[0].mxu0
    %v2980 = vadd.f32 0.0, %v2979
    %v2981 = vpop.f32.mrb[0].mxu0
    %v2982 = vadd.f32 0.0, %v2981
    %v2983 = vpop.f32.mrb[0].mxu0
    %v2984 = vadd.f32 0.0, %v2983
    %v2985 = vpop.f32.mrb[0].mxu0
    %v2986 = vadd.f32 0.0, %v2985
    %2987 = vdwg.mxu0
    %v2988 = vadd.f32 %v2822, %v2950
    %v2989 = vadd.f32 %v2823, %v2952
    %v2990 = vadd.f32 %v2824, %v2954
    %v2991 = vadd.f32 %v2825, %v2956
    %v2992 = vadd.f32 %v2826, %v2960
    %v2993 = vadd.f32 %v2827, %v2962
    %v2994 = vadd.f32 %v2828, %v2964
    %v2995 = vadd.f32 %v2829, %v2966
    %v2996 = vadd.f32 %v2830, %v2970
    %v2997 = vadd.f32 %v2831, %v2972
    %v2998 = vadd.f32 %v2832, %v2974
    %v2999 = vadd.f32 %v2833, %v2976
    %v3000 = vadd.f32 %v2834, %v2980
    %v3001 = vadd.f32 %v2835, %v2982
    %v3002 = vadd.f32 %v2836, %v2984
    %v3003 = vadd.f32 %v2837, %v2986
    %v3004 = vxor.u32 %v2996, 2147483648
    %v3005 = vxor.u32 %v2997, 2147483648
    %v3006 = vxor.u32 %v2998, 2147483648
    %v3007 = vxor.u32 %v2999, 2147483648
    %v3008 = vxor.u32 %v3000, 2147483648
    %v3009 = vxor.u32 %v3001, 2147483648
    %v3010 = vxor.u32 %v3002, 2147483648
    %v3011 = vxor.u32 %v3003, 2147483648
    %v3012 = vmul.f32 %v3004, 1.442695
    %v3013 = vpow.pop %v3012
    %v3014 = vmul.f32 %v3005, 1.442695
    %v3015 = vpow.pop %v3014
    %v3016 = vmul.f32 %v3006, 1.442695
    %v3017 = vpow.pop %v3016
    %v3018 = vmul.f32 %v3007, 1.442695
    %v3019 = vpow.pop %v3018
    %v3020 = vmul.f32 %v3008, 1.442695
    %v3021 = vpow.pop %v3020
    %v3022 = vmul.f32 %v3009, 1.442695
    %v3023 = vpow.pop %v3022
    %v3024 = vmul.f32 %v3010, 1.442695
    %v3025 = vpow.pop %v3024
    %v3026 = vmul.f32 %v3011, 1.442695
    %v3027 = vpow.pop %v3026
    %v3028 = vadd.f32 %v3013, 1.0
    %v3029 = vadd.f32 %v3015, 1.0
    %v3030 = vadd.f32 %v3017, 1.0
    %v3031 = vadd.f32 %v3019, 1.0
    %v3032 = vadd.f32 %v3021, 1.0
    %v3033 = vadd.f32 %v3023, 1.0
    %v3034 = vadd.f32 %v3025, 1.0
    %v3035 = vadd.f32 %v3027, 1.0
    %v3036 = vrcp.pop %v3028
    %v3037 = vmul.f32 1.0, %v3036
    %v3038 = vrcp.pop %v3029
    %v3039 = vmul.f32 1.0, %v3038
    %v3040 = vrcp.pop %v3030
    %v3041 = vmul.f32 1.0, %v3040
    %v3042 = vrcp.pop %v3031
    %v3043 = vmul.f32 1.0, %v3042
    %v3044 = vrcp.pop %v3032
    %v3045 = vmul.f32 1.0, %v3044
    %v3046 = vrcp.pop %v3033
    %v3047 = vmul.f32 1.0, %v3046
    %v3048 = vrcp.pop %v3034
    %v3049 = vmul.f32 1.0, %v3048
    %v3050 = vrcp.pop %v3035
    %v3051 = vmul.f32 1.0, %v3050
    %v3052 = vmul.f32 %v2988, %v3037
    %v3053 = vmul.f32 %v2989, %v3039
    %v3054 = vmul.f32 %v2990, %v3041
    %v3055 = vmul.f32 %v2991, %v3043
    %v3056 = vmul.f32 %v2992, %v3045
    %v3057 = vmul.f32 %v2993, %v3047
    %v3058 = vmul.f32 %v2994, %v3049
    %v3059 = vmul.f32 %v2995, %v3051
    %s3060 = scalar_lea.vmem %s6, 96
    %v3061 = vld [vmem:[%s3060] sm:$0xf]
    %v3062 = vld [vmem:[%s3060 + $0x4] sm:$0xf]
    %v3063 = vld [vmem:[%s3060 + $0x8] sm:$0xf]
    %v3064 = vld [vmem:[%s3060 + $0xc] sm:$0xf]
    %v3065 = vld [vmem:[%s3060 + $0x10] sm:$0xf]
    %v3066 = vld [vmem:[%s3060 + $0x14] sm:$0xf]
    %v3067 = vld [vmem:[%s3060 + $0x18] sm:$0xf]
    %v3068 = vld [vmem:[%s3060 + $0x1c] sm:$0xf]
    %v3069 = vpack.c.bf16 %v3054, %v3052
    %v3070 = vpack.c.bf16 %v3055, %v3053
    %v3071 = vpack.c.bf16 %v3058, %v3056
    %v3072 = vpack.c.bf16 %v3059, %v3057
    %v3081 = vunpack.c.l.b16 %v3061
    %v3082 = vunpack.c.l.b16 %v3062
    %v3083 = vunpack.c.l.b16 %v3063
    %v3084 = vunpack.c.l.b16 %v3064
    %v3085 = vunpack.c.l.b16 %v3065
    %v3086 = vunpack.c.l.b16 %v3066
    %v3087 = vunpack.c.l.b16 %v3067
    %v3088 = vunpack.c.l.b16 %v3068
    %v3089 = vpack.c.b16 %v3082, %v3081
    %v3090 = vpack.c.b16 %v3084, %v3083
    %v3091 = vpack.c.b16 %v3086, %v3085
    %v3092 = vpack.c.b16 %v3088, %v3087
    %v3094 = vsel %vm307, %v3089, 0
    %v3097 = vsel %vm307, %v3090, 0
    %v3100 = vsel %vm307, %v3091, 0
    %v3103 = vsel %vm307, %v3092, 0
    %3105 = vmatprep.subr.bf16.mxu0 %v3070
    %3106 = vmatpush1.bf16.msra.mxu0 %v3069
    %3107 = vmatprep.subr.bf16.mxu0 %v3072
    %3108 = vmatpush1.bf16.msra.mxu0 %v3071
    %3109 = vmatprep.subr.bf16.mxu0 0
    %3110 = vmatpush1.bf16.msra.mxu0 0
    %3111 = vmatprep.subr.bf16.mxu0 0
    %3112 = vmatpush1.bf16.msra.mxu0 0
    %3113 = vmatprep.subr.bf16.mxu0 0
    %3114 = vmatpush1.bf16.msra.mxu0 0
    %3115 = vmatprep.subr.bf16.mxu0 0
    %3116 = vmatpush1.bf16.msra.mxu0 0
    %3117 = vmatprep.subr.bf16.mxu0 0
    %3118 = vmatpush1.bf16.msra.mxu0 0
    %3119 = vmatprep.subr.bf16.mxu0 0
    %3120 = vmatpush1.bf16.msra.mxu0 0
    %3121 = vmatprep.subr.bf16.mxu0 0
    %3122 = vmatpush1.bf16.msra.mxu0 0
    %3123 = vmatprep.subr.bf16.mxu0 0
    %3124 = vmatpush1.bf16.msra.mxu0 0
    %3125 = vmatprep.subr.bf16.mxu0 0
    %3126 = vmatpush1.bf16.msra.mxu0 0
    %3127 = vmatprep.subr.bf16.mxu0 0
    %3128 = vmatpush1.bf16.msra.mxu0 0
    %3129 = vmatprep.subr.bf16.mxu0 0
    %3130 = vmatpush1.bf16.msra.mxu0 0
    %3131 = vmatprep.subr.bf16.mxu0 0
    %3132 = vmatpush1.bf16.msra.mxu0 0
    %3133 = vmatprep.subr.bf16.mxu0 0
    %3134 = vmatpush1.bf16.msra.mxu0 0
    %3135 = vmatprep.subr.bf16.mxu0 0
    %3136 = vmatpush1.bf16.msra.mxu0 0
    %3137 = vmatprep.mubr.bf16.mxu0 0
    %3138 = vmatmul.mubr.bf16.gmra.mrb[0].mxu0 %v3094
    %v3139 = vpop.f32.mrb[0].mxu0
    %v3140 = vpop.f32.mrb[0].mxu0
    %v3141 = vpop.f32.mrb[0].mxu0
    %v3142 = vpop.f32.mrb[0].mxu0
    %3143 = vmatprep.mubr.bf16.mxu0 0
    %3144 = vmatmul.mubr.bf16.gmra.mrb[0].mxu0 %v3097
    %v3145 = vpop.f32.mrb[0].mxu0
    %v3146 = vpop.f32.mrb[0].mxu0
    %v3147 = vpop.f32.mrb[0].mxu0
    %v3148 = vpop.f32.mrb[0].mxu0
    %3149 = vmatprep.mubr.bf16.mxu0 0
    %3150 = vmatmul.mubr.bf16.gmra.mrb[0].mxu0 %v3100
    %v3151 = vpop.f32.mrb[0].mxu0
    %v3152 = vadd.f32 0.0, %v3151
    %v3153 = vpop.f32.mrb[0].mxu0
    %v3154 = vadd.f32 0.0, %v3153
    %v3155 = vpop.f32.mrb[0].mxu0
    %v3156 = vadd.f32 0.0, %v3155
    %v3157 = vpop.f32.mrb[0].mxu0
    %v3158 = vadd.f32 0.0, %v3157
    %3159 = vmatprep.mubr.bf16.mxu0 0
    %3160 = vmatmul.mubr.bf16.gmra.mrb[0].mxu0 %v3103
    %v3161 = vpop.f32.mrb[0].mxu0
    %v3162 = vadd.f32 0.0, %v3161
    %v3163 = vpop.f32.mrb[0].mxu0
    %v3164 = vadd.f32 0.0, %v3163
    %v3165 = vpop.f32.mrb[0].mxu0
    %v3166 = vadd.f32 0.0, %v3165
    %v3167 = vpop.f32.mrb[0].mxu0
    %v3168 = vadd.f32 0.0, %v3167
    %3169 = vdwg.mxu0
    %v3170 = vadd.f32 %v2432, %v3152
    %v3171 = vadd.f32 %v2433, %v3154
    %v3172 = vadd.f32 %v2434, %v3156
    %v3173 = vadd.f32 %v2435, %v3158
    %v3174 = vadd.f32 %v2436, %v3162
    %v3175 = vadd.f32 %v2437, %v3164
    %v3176 = vadd.f32 %v2438, %v3166
    %v3177 = vadd.f32 %v2439, %v3168
    %v3178 = vmax.f32 %v3170, 0.0
    %v3179 = vmax.f32 %v3171, 0.0
    %v3180 = vmax.f32 %v3172, 0.0
    %v3181 = vmax.f32 %v3173, 0.0
    %v3182 = vmax.f32 %v3174, 0.0
    %v3183 = vmax.f32 %v3175, 0.0
    %v3184 = vmax.f32 %v3176, 0.0
    %v3185 = vmax.f32 %v3177, 0.0
    %v3186 = vld [vmem:[%s7] sm:$0xf]
    %v3187 = vld [vmem:[%s7 + $0x4] sm:$0xf]
    %v3188 = vld [vmem:[%s7 + $0x8] sm:$0xf]
    %v3189 = vld [vmem:[%s7 + $0xc] sm:$0xf]
    %v3190 = vld [vmem:[%s7 + $0x10] sm:$0xf]
    %v3191 = vld [vmem:[%s7 + $0x14] sm:$0xf]
    %v3192 = vld [vmem:[%s7 + $0x18] sm:$0xf]
    %v3193 = vld [vmem:[%s7 + $0x1c] sm:$0xf]
    %v3194 = vpack.c.bf16 %v3180, %v3178
    %v3195 = vpack.c.bf16 %v3181, %v3179
    %v3196 = vpack.c.bf16 %v3184, %v3182
    %v3197 = vpack.c.bf16 %v3185, %v3183
    %v3198 = vld [vmem:[%s8] sm:$0xff]
    %v3199 = vld [vmem:[%s8 + $0x8] sm:$0xff]
    %v3200 = vld [vmem:[%s8 + $0x10] sm:$0xff]
    %v3201 = vld [vmem:[%s8 + $0x18] sm:$0xff]
    %v3202 = vld [vmem:[%s8 + $0x20] sm:$0xff]
    %v3203 = vld [vmem:[%s8 + $0x28] sm:$0xff]
    %v3204 = vld [vmem:[%s8 + $0x30] sm:$0xff]
    %v3205 = vld [vmem:[%s8 + $0x38] sm:$0xff]
    %3207 = vset.pattern.permute.xlu0 0
    %3208 = vperm.xlu0 %3207, %v3198
    %v3209 = vpop.permute.xlu0 %3208
    %3212 = vset.pattern.permute.xlu0 0
    %3213 = vperm.xlu0 %3212, %v3199
    %v3214 = vpop.permute.xlu0 %3213
    %3217 = vset.pattern.permute.xlu0 0
    %3218 = vperm.xlu0 %3217, %v3200
    %v3219 = vpop.permute.xlu0 %3218
    %3222 = vset.pattern.permute.xlu0 0
    %3223 = vperm.xlu0 %3222, %v3201
    %v3224 = vpop.permute.xlu0 %3223
    %3227 = vset.pattern.permute.xlu0 0
    %3228 = vperm.xlu0 %3227, %v3202
    %v3229 = vpop.permute.xlu0 %3228
    %3232 = vset.pattern.permute.xlu0 0
    %3233 = vperm.xlu0 %3232, %v3203
    %v3234 = vpop.permute.xlu0 %3233
    %3237 = vset.pattern.permute.xlu0 0
    %3238 = vperm.xlu0 %3237, %v3204
    %v3239 = vpop.permute.xlu0 %3238
    %3242 = vset.pattern.permute.xlu0 0
    %3243 = vperm.xlu0 %3242, %v3205
    %v3244 = vpop.permute.xlu0 %3243
    %v3254 = vunpack.c.l.b16 %v3186
    %v3255 = vunpack.c.l.b16 %v3187
    %v3256 = vunpack.c.l.b16 %v3188
    %v3257 = vunpack.c.l.b16 %v3189
    %v3258 = vunpack.c.l.b16 %v3190
    %v3259 = vunpack.c.l.b16 %v3191
    %v3260 = vunpack.c.l.b16 %v3192
    %v3261 = vunpack.c.l.b16 %v3193
    %v3262 = vpack.c.b16 %v3255, %v3254
    %v3263 = vpack.c.b16 %v3257, %v3256
    %v3264 = vpack.c.b16 %v3259, %v3258
    %v3265 = vpack.c.b16 %v3261, %v3260
    %v3267 = vsel %vm307, %v3262, 0
    %v3270 = vsel %vm307, %v3263, 0
    %v3273 = vsel %vm307, %v3264, 0
    %v3276 = vsel %vm307, %v3265, 0
    %3278 = vmatprep.subr.bf16.mxu0 %v3195
    %3279 = vmatpush1.bf16.msra.mxu0 %v3194
    %3280 = vmatprep.subr.bf16.mxu0 %v3197
    %3281 = vmatpush1.bf16.msra.mxu0 %v3196
    %3282 = vmatprep.subr.bf16.mxu0 0
    %3283 = vmatpush1.bf16.msra.mxu0 0
    %3284 = vmatprep.subr.bf16.mxu0 0
    %3285 = vmatpush1.bf16.msra.mxu0 0
    %3286 = vmatprep.subr.bf16.mxu0 0
    %3287 = vmatpush1.bf16.msra.mxu0 0
    %3288 = vmatprep.subr.bf16.mxu0 0
    %3289 = vmatpush1.bf16.msra.mxu0 0
    %3290 = vmatprep.subr.bf16.mxu0 0
    %3291 = vmatpush1.bf16.msra.mxu0 0
    %3292 = vmatprep.subr.bf16.mxu0 0
    %3293 = vmatpush1.bf16.msra.mxu0 0
    %3294 = vmatprep.subr.bf16.mxu0 0
    %3295 = vmatpush1.bf16.msra.mxu0 0
    %3296 = vmatprep.subr.bf16.mxu0 0
    %3297 = vmatpush1.bf16.msra.mxu0 0
    %3298 = vmatprep.subr.bf16.mxu0 0
    %3299 = vmatpush1.bf16.msra.mxu0 0
    %3300 = vmatprep.subr.bf16.mxu0 0
    %3301 = vmatpush1.bf16.msra.mxu0 0
    %3302 = vmatprep.subr.bf16.mxu0 0
    %3303 = vmatpush1.bf16.msra.mxu0 0
    %3304 = vmatprep.subr.bf16.mxu0 0
    %3305 = vmatpush1.bf16.msra.mxu0 0
    %3306 = vmatprep.subr.bf16.mxu0 0
    %3307 = vmatpush1.bf16.msra.mxu0 0
    %3308 = vmatprep.subr.bf16.mxu0 0
    %3309 = vmatpush1.bf16.msra.mxu0 0
    %3310 = vmatprep.mubr.bf16.mxu0 0
    %3311 = vmatmul.mubr.bf16.gmra.mrb[0].mxu0 %v3267
    %v3312 = vpop.f32.mrb[0].mxu0
    %v3313 = vadd.f32 %v3209, %v3312
    %v3314 = vpop.f32.mrb[0].mxu0
    %v3315 = vadd.f32 %v3209, %v3314
    %v3316 = vpop.f32.mrb[0].mxu0
    %v3317 = vadd.f32 %v3214, %v3316
    %v3318 = vpop.f32.mrb[0].mxu0
    %v3319 = vadd.f32 %v3214, %v3318
    %3320 = vmatprep.mubr.bf16.mxu0 0
    %3321 = vmatmul.mubr.bf16.gmra.mrb[0].mxu0 %v3270
    %v3322 = vpop.f32.mrb[0].mxu0
    %v3323 = vadd.f32 %v3219, %v3322
    %v3324 = vpop.f32.mrb[0].mxu0
    %v3325 = vadd.f32 %v3219, %v3324
    %v3326 = vpop.f32.mrb[0].mxu0
    %v3327 = vadd.f32 %v3224, %v3326
    %v3328 = vpop.f32.mrb[0].mxu0
    %v3329 = vadd.f32 %v3224, %v3328
    %3330 = vmatprep.mubr.bf16.mxu0 0
    %3331 = vmatmul.mubr.bf16.gmra.mrb[0].mxu0 %v3273
    %v3332 = vpop.f32.mrb[0].mxu0
    %v3333 = vadd.f32 %v3229, %v3332
    %v3334 = vpop.f32.mrb[0].mxu0
    %v3335 = vadd.f32 %v3229, %v3334
    %v3336 = vpop.f32.mrb[0].mxu0
    %v3337 = vadd.f32 %v3234, %v3336
    %v3338 = vpop.f32.mrb[0].mxu0
    %v3339 = vadd.f32 %v3234, %v3338
    %3340 = vmatprep.mubr.bf16.mxu0 0
    %3341 = vmatmul.mubr.bf16.gmra.mrb[0].mxu0 %v3276
    %v3342 = vpop.f32.mrb[0].mxu0
    %v3343 = vadd.f32 %v3239, %v3342
    %v3344 = vpop.f32.mrb[0].mxu0
    %v3345 = vadd.f32 %v3239, %v3344
    %v3346 = vpop.f32.mrb[0].mxu0
    %v3347 = vadd.f32 %v3244, %v3346
    %v3348 = vpop.f32.mrb[0].mxu0
    %v3349 = vadd.f32 %v3244, %v3348
    %3350 = vdwg.mxu0
    %v3351 = vmax.f32 %v3313, 0.0
    %v3352 = vmax.f32 %v3315, 0.0
    %v3353 = vmax.f32 %v3317, 0.0
    %v3354 = vmax.f32 %v3319, 0.0
    %v3355 = vmax.f32 %v3323, 0.0
    %v3356 = vmax.f32 %v3325, 0.0
    %v3357 = vmax.f32 %v3327, 0.0
    %v3358 = vmax.f32 %v3329, 0.0
    %v3359 = vmax.f32 %v3333, 0.0
    %v3360 = vmax.f32 %v3335, 0.0
    %v3361 = vmax.f32 %v3337, 0.0
    %v3362 = vmax.f32 %v3339, 0.0
    %v3363 = vmax.f32 %v3343, 0.0
    %v3364 = vmax.f32 %v3345, 0.0
    %v3365 = vmax.f32 %v3347, 0.0
    %v3366 = vmax.f32 %v3349, 0.0
    %v3367 = vld [vmem:[%s9] sm:$0xf]
    %v3368 = vpack.c.bf16 %v3353, %v3351
    %v3369 = vpack.c.bf16 %v3354, %v3352
    %v3370 = vpack.c.bf16 %v3357, %v3355
    %v3371 = vpack.c.bf16 %v3358, %v3356
    %v3372 = vpack.c.bf16 %v3361, %v3359
    %v3373 = vpack.c.bf16 %v3362, %v3360
    %v3374 = vpack.c.bf16 %v3365, %v3363
    %v3375 = vpack.c.bf16 %v3366, %v3364
    %v3376 = vld [vmem:[%s10] sm:$0xff]
    %3378 = vset.pattern.permute.xlu0 0
    %3379 = vperm.xlu0 %3378, %v3376
    %v3380 = vpop.permute.xlu0 %3379
    %vm3382 = vcmask 523264
    %v3384 = vsel %vm3382, %v3367, 0
    %3386 = vmatprep.subr.bf16.mxu0 %v3369
    %3387 = vmatpush1.bf16.msra.mxu0 %v3368
    %3388 = vmatprep.subr.bf16.mxu0 %v3371
    %3389 = vmatpush1.bf16.msra.mxu0 %v3370
    %3390 = vmatprep.subr.bf16.mxu0 %v3373
    %3391 = vmatpush1.bf16.msra.mxu0 %v3372
    %3392 = vmatprep.subr.bf16.mxu0 %v3375
    %3393 = vmatpush1.bf16.msra.mxu0 %v3374
    %3394 = vmatprep.subr.bf16.mxu0 0
    %3395 = vmatpush1.bf16.msra.mxu0 0
    %3396 = vmatprep.subr.bf16.mxu0 0
    %3397 = vmatpush1.bf16.msra.mxu0 0
    %3398 = vmatprep.subr.bf16.mxu0 0
    %3399 = vmatpush1.bf16.msra.mxu0 0
    %3400 = vmatprep.subr.bf16.mxu0 0
    %3401 = vmatpush1.bf16.msra.mxu0 0
    %3402 = vmatprep.subr.bf16.mxu0 0
    %3403 = vmatpush1.bf16.msra.mxu0 0
    %3404 = vmatprep.subr.bf16.mxu0 0
    %3405 = vmatpush1.bf16.msra.mxu0 0
    %3406 = vmatprep.subr.bf16.mxu0 0
    %3407 = vmatpush1.bf16.msra.mxu0 0
    %3408 = vmatprep.subr.bf16.mxu0 0
    %3409 = vmatpush1.bf16.msra.mxu0 0
    %3410 = vmatprep.subr.bf16.mxu0 0
    %3411 = vmatpush1.bf16.msra.mxu0 0
    %3412 = vmatprep.subr.bf16.mxu0 0
    %3413 = vmatpush1.bf16.msra.mxu0 0
    %3414 = vmatprep.subr.bf16.mxu0 0
    %3415 = vmatpush1.bf16.msra.mxu0 0
    %3416 = vmatprep.subr.bf16.mxu0 0
    %3417 = vmatpush1.bf16.msra.mxu0 0
    %3418 = vmatprep.mubr.bf16.mxu0 0
    %3419 = vmatmul.mubr.bf16.gmra.mrb[0].mxu0 %v3384
    %v3420 = vpop.f32.mrb[0].mxu0
    %v3421 = vadd.f32 %v3380, %v3420
    %v3422 = vpop.f32.mrb[0].mxu0
    %v3423 = vadd.f32 %v3380, %v3422
    %v3424 = vpop.f32.mrb[0].mxu0
    %v3425 = vpop.f32.mrb[0].mxu0
    %3426 = vdwg.mxu0
    %3427 = vst [vmem:[#allocation2] sm:$0xff] %v3421
    %s3428 = scalar_lea.vmem [#allocation2], 8
    %3429 = vst [vmem:[%s3428] sm:$0xff] %v3423
    // Predicated region
    $region46: #{tpu_custom_call.1} parent=1 // pred_check
      _
    $region47: #{tpu_custom_call.1} parent=1 // pred_check_branch
      %3431 = sbr.rel (0) target = $region49
    $region48: #{tpu_custom_call.1} parent=1 // pred_region
      %s3433 = ssub.s32 256, 256
      %3434 = vsyncadd [#allocation3], %s3433
      %s3435 = sshll.u32 [#allocation2], 4
      %s3436 = int_to_ptr.vmem [resolvable:$true] %s3435
      %3441 = dma.vmem_to_hbm [thread:$0]  %s3436, 256, %s11, [#allocation3], 128, 128, 8
    $region49: #{tpu_custom_call.1} parent=1 // pred_fallthru
      _
    // Predicated region
    $region50: #{tpu_custom_call.1} parent=1 // pred_check
      _
    $region51: #{tpu_custom_call.1} parent=1 // pred_check_branch
      %3443 = sbr.rel (0) target = $region53
    $region52: #{tpu_custom_call.1} parent=1 // pred_region
      %3444 = dma.done [#allocation3], 256
    $region53: #{tpu_custom_call.1} parent=1 // pred_fallthru
      _
    %3445 = vsyncpa [#allocation3], 1

</llo_original>
